<compile_context>
chip_gen: v7x
topology: tpu7x:2x2x1
jax: 0.10.0
libtpu: 0.0.40
codegen_flags: <defaults>
</compile_context>

<pallas_src>
import jax
import jax.numpy as jnp
from jax import lax
from jax.experimental import pallas as pl
from jax.experimental.pallas import tpu as pltpu

MXU_DTYPE = jnp.bfloat16            # MXU operand dtype (accumulation stays f32)
VMEM_LIMIT = 48 * 1024 * 1024       # <= v7x 64 MiB/TC; comfortable on v5e/v6e


def _ru(x, m):
    return (x + m - 1) // m * m


def _pick_tile(m, unit, cap=512):
    """Largest multiple of `unit` that divides m and is <= cap (falls back to unit)."""
    best = unit
    t = unit
    while t <= min(m, cap):
        if m % t == 0:
            best = t
        t += unit
    return best


# ------------------------------------------------------------------ im2col glue
# TODO(synk): fuse im2col into the conv matmul (K-block index_map over stride-2
#             shifted windows) so the ~9x patch tensor never hits HBM.
def im2col(x, kh, kw, stride, pad):
    B, C, H, W = x.shape
    xp = jnp.pad(x, ((0, 0), (0, 0), (pad, pad), (pad, pad)))
    Ho = (H + 2 * pad - kh) // stride + 1
    Wo = (W + 2 * pad - kw) // stride + 1
    cols = []
    for i in range(kh):
        for j in range(kw):
            cols.append(xp[:, :, i:i + stride * Ho:stride, j:j + stride * Wo:stride])
    patches = jnp.stack(cols, axis=2)                   # (B, C, kh*kw, Ho, Wo)
    patches = jnp.transpose(patches, (0, 3, 4, 1, 2))   # (B, Ho, Wo, C, kh*kw)
    return patches.reshape(B, Ho, Wo, C * kh * kw)


# ------------------------------------------------------------------ tiled matmul kernel

def _make_mm_kernel(epilogue, n_valid):
    def epilogue_fn(acc, bias, scale=None, shift=None):
        y = acc + bias
        if epilogue == 'relu_bn':
            # Conv2d -> ReLU -> BatchNorm2d (eval-mode BN folded into scale/shift)
            y = jnp.maximum(y, 0.0) * scale + shift
        elif epilogue == 'logsoftmax':
            col = lax.broadcasted_iota(jnp.int32, y.shape, 1)
            y = jnp.where(col < n_valid, y, -1e30)       # mask padded lanes
            m = jnp.max(y, axis=-1, keepdims=True)
            z = y - m
            y = z - jnp.log(jnp.sum(jnp.exp(z), axis=-1, keepdims=True))
        return y

    if epilogue == 'relu_bn':
        def kernel(x_ref, w_ref, b_ref, scale_ref, shift_ref, o_ref, acc_ref):
            @pl.when(pl.program_id(2) == 0)
            def _():
                acc_ref[...] = jnp.zeros_like(acc_ref)

            acc_ref[...] += jnp.dot(x_ref[...].astype(MXU_DTYPE),
                                    w_ref[...].astype(MXU_DTYPE),
                                    preferred_element_type=jnp.float32)

            @pl.when(pl.program_id(2) == pl.num_programs(2) - 1)
            def _():
                o_ref[...] = epilogue_fn(acc_ref[...], b_ref[...],
                                         scale_ref[...], shift_ref[...]).astype(o_ref.dtype)
    else:
        def kernel(x_ref, w_ref, b_ref, o_ref, acc_ref):
            @pl.when(pl.program_id(2) == 0)
            def _():
                acc_ref[...] = jnp.zeros_like(acc_ref)

            acc_ref[...] += jnp.dot(x_ref[...].astype(MXU_DTYPE),
                                    w_ref[...].astype(MXU_DTYPE),
                                    preferred_element_type=jnp.float32)

            @pl.when(pl.program_id(2) == pl.num_programs(2) - 1)
            def _():
                o_ref[...] = epilogue_fn(acc_ref[...], b_ref[...]).astype(o_ref.dtype)

    return kernel


def stacked_matmul(x_stack, w_stack, bias, scale=None, shift=None, *,
                   epilogue='linear', out_dtype=jnp.float32, n_valid=None,
                   tm=None, tm_max=512, tn_max=512):
    """out = sum_k x_stack[k] @ w_stack[k] + bias, with a fused epilogue.

    x_stack: (KB, M, K), w_stack: (KB, K, N), bias/scale/shift: (1, N).
    Returns (M_pad, N_pad) in out_dtype; caller slices padding off.
    """
    KB, M, K = x_stack.shape
    KB2, K2, N = w_stack.shape
    assert KB == KB2 and K == K2

    if tm is None:
        tm = min(tm_max, _ru(M, 8))
        M_pad = _ru(M, tm)
        if M_pad != M:
            x_stack = jnp.pad(x_stack, ((0, 0), (0, M_pad - M), (0, 0)))
    else:
        assert M % tm == 0 and tm % 8 == 0
        M_pad = M

    tn = min(tn_max, _ru(N, 128))
    N_pad = _ru(N, tn)
    if epilogue == 'logsoftmax':
        # TODO(synk): two-pass (max then sum) reduction to support vocab > tn_max lanes.
        assert N_pad == tn, "log_softmax epilogue needs a single lane tile"
        if n_valid is None:
            n_valid = N
    if N_pad != N:
        w_stack = jnp.pad(w_stack, ((0, 0), (0, 0), (0, N_pad - N)))
        bias = jnp.pad(bias, ((0, 0), (0, N_pad - N)))
        if scale is not None:
            scale = jnp.pad(scale, ((0, 0), (0, N_pad - N)))
            shift = jnp.pad(shift, ((0, 0), (0, N_pad - N)))

    grid = (M_pad // tm, N_pad // tn, KB)

    vec_spec = pl.BlockSpec((1, tn), lambda i, j, k: (0, j))
    in_specs = [
        pl.BlockSpec((None, tm, K), lambda i, j, k: (k, i, 0)),
        pl.BlockSpec((None, K, tn), lambda i, j, k: (k, 0, j)),
        vec_spec,
    ]
    args = [x_stack, w_stack, bias]
    if epilogue == 'relu_bn':
        in_specs += [vec_spec, vec_spec]
        args += [scale, shift]

    return pl.pallas_call(
        _make_mm_kernel(epilogue, n_valid),
        out_shape=jax.ShapeDtypeStruct((M_pad, N_pad), out_dtype),
        grid=grid,
        in_specs=in_specs,
        out_specs=pl.BlockSpec((tm, tn), lambda i, j, k: (i, j)),
        scratch_shapes=[pltpu.VMEM((tm, tn), jnp.float32)],
        compiler_params=pltpu.CompilerParams(
            dimension_semantics=("parallel", "parallel", "arbitrary"),
            vmem_limit_bytes=VMEM_LIMIT),
    )(*args)


def conv_bn_relu(patches, w_oihw, b, scale, shift):
    # patches: (B, Ho, Wo, K) bf16; w: (Cout, Cin, kh, kw). Returns (B, Ho, Wo, Cout) bf16.
    B, Ho, Wo, K = patches.shape
    Cout = w_oihw.shape[0]
    x_stack = patches.reshape(1, B * Ho * Wo, K)
    w_stack = jnp.transpose(w_oihw.reshape(Cout, K))[None].astype(MXU_DTYPE)
    out = stacked_matmul(x_stack, w_stack,
                         b.reshape(1, -1).astype(jnp.float32),
                         scale.reshape(1, -1).astype(jnp.float32),
                         shift.reshape(1, -1).astype(jnp.float32),
                         epilogue='relu_bn', out_dtype=MXU_DTYPE)
    return out[:B * Ho * Wo, :Cout].reshape(B, Ho, Wo, Cout)


# ------------------------------------------------------------------ fused bidirectional LSTM

def _make_bilstm_kernel(ts, hp, t_real, t_pad):
    def cell(xg, whh, h_prev, c_prev, valid):
        gates = xg + jnp.dot(h_prev.astype(MXU_DTYPE), whh,
                             preferred_element_type=jnp.float32)
        i = jax.nn.sigmoid(gates[:, 0 * hp:1 * hp])
        f = jax.nn.sigmoid(gates[:, 1 * hp:2 * hp])
        g = jnp.tanh(gates[:, 2 * hp:3 * hp])
        o = jax.nn.sigmoid(gates[:, 3 * hp:4 * hp])
        c = (f * c_prev + i * g) * valid        # padded time steps keep state exactly 0
        h = o * jnp.tanh(c)
        return h, c

    def kernel(xgf_ref, xgb_ref, whf_ref, whb_ref, of_ref, ob_ref,
               hf_s, cf_s, hb_s, cb_s):
        tb = pl.program_id(0)

        @pl.when(tb == 0)
        def _():
            hf_s[...] = jnp.zeros_like(hf_s)
            cf_s[...] = jnp.zeros_like(cf_s)
            hb_s[...] = jnp.zeros_like(hb_s)
            cb_s[...] = jnp.zeros_like(cb_s)

        # TODO(synk): hold W_hh weight-stationary across the unrolled loop with
        #             pltpu.matmul_push_rhs / matmul_acc_lhs / matmul_pop.
        def step(s, carry):
            # forward direction: global time tb*ts + s, block-local index s
            vf = (tb * ts + s < t_real).astype(jnp.float32)
            hf, cf = cell(xgf_ref[pl.ds(s, 1)][0], whf_ref[...],
                          hf_s[...], cf_s[...], vf)
            hf_s[...] = hf
            cf_s[...] = cf
            of_ref[pl.ds(s, 1)] = hf[None].astype(of_ref.dtype)

            # backward direction: global time t_pad-1-(tb*ts+s), block-local ts-1-s
            lb = ts - 1 - s
            vb = (t_pad - 1 - (tb * ts + s) < t_real).astype(jnp.float32)
            hb, cb = cell(xgb_ref[pl.ds(lb, 1)][0], whb_ref[...],
                          hb_s[...], cb_s[...], vb)
            hb_s[...] = hb
            cb_s[...] = cb
            ob_ref[pl.ds(lb, 1)] = hb[None].astype(ob_ref.dtype)
            return carry

        lax.fori_loop(0, ts, step, 0, unroll=True)

    return kernel


def bilstm_layer(xg, whh_f, whh_b, B_pad, T_pad, t_real, hp, ts):
    # xg: (T_pad, B_pad, 8*hp) f32, columns [fwd gates | bwd gates].
    # Both directions run in the same grid step; the backward one reads the reversed
    # time block and the bwd gate column half purely via BlockSpec index maps.
    n_tb = T_pad // ts
    G = 4 * hp
    return pl.pallas_call(
        _make_bilstm_kernel(ts, hp, t_real, T_pad),
        out_shape=(jax.ShapeDtypeStruct((T_pad, B_pad, hp), MXU_DTYPE),
                   jax.ShapeDtypeStruct((T_pad, B_pad, hp), MXU_DTYPE)),
        grid=(n_tb,),
        in_specs=[
            pl.BlockSpec((ts, B_pad, G), lambda tb: (tb, 0, 0)),             # fwd xg
            pl.BlockSpec((ts, B_pad, G), lambda tb: (n_tb - 1 - tb, 0, 1)),  # bwd xg (rev)
            pl.BlockSpec((hp, G), lambda tb: (0, 0)),                        # W_hh fwd
            pl.BlockSpec((hp, G), lambda tb: (0, 0)),                        # W_hh bwd
        ],
        out_specs=[
            pl.BlockSpec((ts, B_pad, hp), lambda tb: (tb, 0, 0)),
            pl.BlockSpec((ts, B_pad, hp), lambda tb: (n_tb - 1 - tb, 0, 0)),
        ],
        scratch_shapes=[pltpu.VMEM((B_pad, hp), jnp.float32)] * 4,
        compiler_params=pltpu.CompilerParams(
            dimension_semantics=("arbitrary",),
            vmem_limit_bytes=VMEM_LIMIT),
    )(xg, xg, whh_f, whh_b)


# ------------------------------------------------------------------ parameter packing
# NOTE: when hp > H the extra rows/cols of W and the bias padding are exactly zero,
#       which keeps padded h/c lanes at 0 through the recurrence (sigmoid(0)*tanh(0)=0).

def _gate_pad_cols(w_t, H, hp):
    # w_t: (K, 4H), gate-blocked columns [i|f|g|o] -> (K, 4*hp), each gate padded to hp.
    if hp == H:
        return w_t
    parts = [jnp.pad(w_t[:, g * H:(g + 1) * H], ((0, 0), (0, hp - H))) for g in range(4)]
    return jnp.concatenate(parts, axis=1)


def _pack_lstm_params(params, H, hp):
    packed = []
    for li, lp in enumerate(params['lstm']):
        if li == 0:
            cols = [_gate_pad_cols(jnp.transpose(lp[f'w_ih_{tag}']), H, hp)
                    for tag in ('f', 'b')]
            w_ih_stack = jnp.concatenate(cols, axis=1)[None]            # (1, D, 8*hp)
        else:
            blocks = []
            for k in range(2):                                          # source direction
                cols = []
                for tag in ('f', 'b'):                                  # target direction
                    w_t = jnp.transpose(lp[f'w_ih_{tag}'][:, k * H:(k + 1) * H])
                    w_t = _gate_pad_cols(w_t, H, hp)
                    cols.append(jnp.pad(w_t, ((0, hp - H), (0, 0))))    # (hp, 4*hp)
                blocks.append(jnp.concatenate(cols, axis=1))            # (hp, 8*hp)
            w_ih_stack = jnp.stack(blocks, axis=0)                      # (2, hp, 8*hp)

        biases, whh = [], {}
        for tag in ('f', 'b'):
            bsum = (lp[f'b_ih_{tag}'] + lp[f'b_hh_{tag}']).reshape(1, -1)
            biases.append(_gate_pad_cols(bsum, H, hp))
            w_t = _gate_pad_cols(jnp.transpose(lp[f'w_hh_{tag}']), H, hp)
            whh[tag] = jnp.pad(w_t, ((0, hp - H), (0, 0))).astype(MXU_DTYPE)  # (hp, 4*hp)

        packed.append(dict(
            w_ih_stack=w_ih_stack.astype(MXU_DTYPE),
            bias=jnp.concatenate(biases, axis=1).astype(jnp.float32),   # (1, 8*hp)
            w_hh_f=whh['f'], w_hh_b=whh['b'],
        ))
    return packed


def _pack_fc(params, H, hp):
    fc_w = params['fc_w']                                               # (O, 2H)
    parts = []
    for k in range(2):
        w_t = jnp.transpose(fc_w[:, k * H:(k + 1) * H])                 # (H, O)
        parts.append(jnp.pad(w_t, ((0, hp - H), (0, 0))))
    fc_stack = jnp.stack(parts, axis=0).astype(MXU_DTYPE)               # (2, hp, O)
    return fc_stack, params['fc_b'].reshape(1, -1).astype(jnp.float32)


# ------------------------------------------------------------------ model forward

def asr_ctc_forward(x_bft, params):
    H = params['hidden_dim']
    hp = _ru(H, 32)                    # gate lane quantum; H=32 -> no gate padding at all
    B = x_bft.shape[0]

    x = x_bft[:, None, :, :].astype(MXU_DTYPE)                          # (B,1,F,T) NCHW

    # conv1 -> ReLU -> BN1
    p1 = im2col(x, 3, 3, 2, 1)
    y1 = conv_bn_relu(p1, params['conv1_w'], params['conv1_b'],
                      params['bn1_scale'], params['bn1_shift'])         # (B,F1,T1,32)
    # TODO(synk): emit this layout (and the time-major one below) straight from the
    #             conv matmul's out BlockSpec instead of XLA transposes.
    x = jnp.transpose(y1, (0, 3, 1, 2))                                 # (B,32,F1,T1)

    # conv2 -> ReLU -> BN2
    p2 = im2col(x, 3, 3, 2, 1)
    y2 = conv_bn_relu(p2, params['conv2_w'], params['conv2_b'],
                      params['bn2_scale'], params['bn2_shift'])         # (B,F2,T2,32)
    _, F2, T2, C = y2.shape

    # PyTorch: (B,C,F2,T2).permute(0,3,1,2).reshape(B,T2,C*F2) -> time-major features.
    feats = jnp.transpose(y2, (2, 0, 3, 1)).reshape(T2, B, C * F2)

    # conv_dropout / inter-layer LSTM dropout / fc_dropout: identity in eval mode.

    B_pad = _ru(B, 8)                  # sublane padding for the recurrence
    ts = min(32, T2)                   # recurrent steps per grid iteration
    T_pad = _ru(T2, ts)
    feats = jnp.pad(feats, ((0, T_pad - T2), (0, B_pad - B), (0, 0)))
    M = T_pad * B_pad
    tm = _pick_tile(M, B_pad, 512)     # large, MXU-filling M tiles that divide M

    # TODO(synk): on v5e, store xg in bf16 (out_dtype) to halve its HBM traffic.
    x_stack = feats.reshape(1, M, C * F2)
    for lp in _pack_lstm_params(params, H, hp):
        # Input projection for both directions at once -> (M, 8*hp) lane-dense slab.
        xg = stacked_matmul(x_stack, lp['w_ih_stack'], lp['bias'],
                            epilogue='linear', out_dtype=jnp.float32, tm=tm)
        xg = xg.reshape(T_pad, B_pad, 8 * hp)
        hf, hb = bilstm_layer(xg, lp['w_hh_f'], lp['w_hh_b'],
                              B_pad, T_pad, T2, hp, ts)
        # fwd/bwd halves stay two K-blocks downstream -> the 2H concat never happens.
        x_stack = jnp.stack([hf.reshape(M, hp), hb.reshape(M, hp)], axis=0)

    # fc + log_softmax fused, lane-dense (out_dim padded to 128 and sliced after).
    fc_stack, fc_b = _pack_fc(params, H, hp)
    out_dim = params['fc_w'].shape[0]
    y = stacked_matmul(x_stack, fc_stack, fc_b, epilogue='logsoftmax',
                       out_dtype=jnp.float32, n_valid=out_dim, tm=tm)
    y = y.reshape(T_pad, B_pad, -1)[:T2, :B, :out_dim]
    return jnp.transpose(y, (1, 0, 2))                                  # (B, T2, out_dim)


def get_output_lengths(input_lengths_T):
    lengths = input_lengths_T
    lengths = (lengths - 1) // 2 + 1
    lengths = (lengths - 1) // 2 + 1
    return lengths


# ------------------------------------------------------------------ params & reference

def init_params(key, input_dim, hidden_dim, output_dim, num_layers=3):
    ks = iter(jax.random.split(key, 64))

    def u(shape, bound):
        return jax.random.uniform(next(ks), shape, jnp.float32, -bound, bound)

    eps = 1e-5

    def bn(c):
        gamma = 1.0 + u((c,), 0.2)
        beta = u((c,), 0.1)
        mean = u((c,), 0.1)
        var = 1.0 + u((c,), 0.2)
        scale = gamma / jnp.sqrt(var + eps)
        shift = beta - mean * scale
        return scale, shift

    params = {'hidden_dim': hidden_dim}
    params['conv1_w'] = u((32, 1, 3, 3), 1.0 / 3.0)
    params['conv1_b'] = u((32,), 1.0 / 3.0)
    params['bn1_scale'], params['bn1_shift'] = bn(32)
    params['conv2_w'] = u((32, 32, 3, 3), 1.0 / (32.0 * 9.0) ** 0.5)
    params['conv2_b'] = u((32,), 1.0 / (32.0 * 9.0) ** 0.5)
    params['bn2_scale'], params['bn2_shift'] = bn(32)

    lstm_in = 32 * (input_dim // 4)
    bound = 1.0 / hidden_dim ** 0.5
    layers = []
    d = lstm_in
    for _ in range(num_layers):
        lp = {}
        for tag in ('f', 'b'):
            lp[f'w_ih_{tag}'] = u((4 * hidden_dim, d), bound)
            lp[f'w_hh_{tag}'] = u((4 * hidden_dim, hidden_dim), bound)
            lp[f'b_ih_{tag}'] = u((4 * hidden_dim,), bound)
            lp[f'b_hh_{tag}'] = u((4 * hidden_dim,), bound)
        layers.append(lp)
        d = 2 * hidden_dim
    params['lstm'] = layers

    fb = 1.0 / (2.0 * hidden_dim) ** 0.5
    params['fc_w'] = u((output_dim, 2 * hidden_dim), fb)
    params['fc_b'] = u((output_dim,), fb)
    return params


def reference_forward(x_bft, params):
    """Pure-JAX f32 reference with identical math (sanity check only)."""
    hi = lax.Precision.HIGHEST
    H = params['hidden_dim']
    x = x_bft[:, None, :, :]

    def conv(x, w, b):
        y = lax.conv_general_dilated(x, w, (2, 2), ((1, 1), (1, 1)),
                                     dimension_numbers=('NCHW', 'OIHW', 'NCHW'),
                                     precision=hi)
        return y + b[None, :, None, None]

    y = conv(x, params['conv1_w'], params['conv1_b'])
    y = jnp.maximum(y, 0.0)
    y = y * params['bn1_scale'][None, :, None, None] + params['bn1_shift'][None, :, None, None]
    y = conv(y, params['conv2_w'], params['conv2_b'])
    y = jnp.maximum(y, 0.0)
    y = y * params['bn2_scale'][None, :, None, None] + params['bn2_shift'][None, :, None, None]
    B, C, Fp, Tp = y.shape
    y = jnp.transpose(y, (0, 3, 1, 2)).reshape(B, Tp, C * Fp)

    def lstm_dir(xs, w_ih, w_hh, b_ih, b_hh):
        def step(carry, x_t):
            h, c = carry
            gates = (jnp.dot(x_t, w_ih.T, precision=hi)
                     + jnp.dot(h, w_hh.T, precision=hi) + b_ih + b_hh)
            i = jax.nn.sigmoid(gates[:, :H])
            f = jax.nn.sigmoid(gates[:, H:2 * H])
            g = jnp.tanh(gates[:, 2 * H:3 * H])
            o = jax.nn.sigmoid(gates[:, 3 * H:])
            c = f * c + i * g
            h = o * jnp.tanh(c)
            return (h, c), h
        init = (jnp.zeros((xs.shape[1], H), jnp.float32),
                jnp.zeros((xs.shape[1], H), jnp.float32))
        _, ys = lax.scan(step, init, xs)
        return ys

    xs = jnp.transpose(y, (1, 0, 2))
    for lp in params['lstm']:
        fwd = lstm_dir(xs, lp['w_ih_f'], lp['w_hh_f'], lp['b_ih_f'], lp['b_hh_f'])
        bwd = lstm_dir(xs[::-1], lp['w_ih_b'], lp['w_hh_b'], lp['b_ih_b'], lp['b_hh_b'])[::-1]
        xs = jnp.concatenate([fwd, bwd], axis=-1)
    y = jnp.transpose(xs, (1, 0, 2))
    logits = jnp.dot(y, params['fc_w'].T, precision=hi) + params['fc_b']
    return jax.nn.log_softmax(logits, axis=2)


# ------------------------------------------------------------------ main

if __name__ == "__main__":
    B, input_dim, T_len = 2, 16, 16
    hidden_dim, output_dim, num_layers = 32, 16, 3

    key = jax.random.PRNGKey(0)
    pk, xk = jax.random.split(key)
    params = init_params(pk, input_dim, hidden_dim, output_dim, num_layers)
    x = jax.random.normal(xk, (B, input_dim, T_len), jnp.float32)

    forward = jax.jit(lambda inp: asr_ctc_forward(inp, params))
    out = jax.block_until_ready(forward(x))

    ref = reference_forward(x, params)
    assert out.shape == ref.shape, (out.shape, ref.shape)
    assert out.shape == (B, T_len // 4, output_dim), out.shape

    # Tolerance accounts for bf16 MXU operands / bf16 hidden states compounding
    # across 3 stacked bidirectional layers (accumulation and h/c state stay f32).
    max_err = float(jnp.max(jnp.abs(out - ref)))
    if max_err < 6e-2:
        print("KERNEL_OK")
    else:
        raise AssertionError(f"mismatch vs reference, max_err={max_err}")
</pallas_src>

<mosaic_0001>
module attributes {stable_mosaic.version = 11 : i64} {
  func.func @kernel(%arg0: i32, %arg1: i32, %arg2: i32, %arg3: memref<1x128x9xbf16, #tpu.memory_space<vmem>>, %arg4: memref<1x9x128xbf16, #tpu.memory_space<vmem>>, %arg5: memref<1x128xf32, #tpu.memory_space<vmem>>, %arg6: memref<1x128xf32, #tpu.memory_space<vmem>>, %arg7: memref<1x128xf32, #tpu.memory_space<vmem>>, %arg8: memref<128x128xbf16, #tpu.memory_space<vmem>>, %arg9: memref<128x128xf32, #tpu.memory_space<vmem>>) attributes {dimension_semantics = [#tpu.dimension_semantics<parallel>, #tpu.dimension_semantics<parallel>, #tpu.dimension_semantics<arbitrary>], iteration_bounds = array<i64: 1, 1, 1>, scalar_prefetch = 0 : i64, scratch_operands = 1 : i64, tpu.core_type = #tpu.core_type<tc>, window_params = [{transform_indices = @transform_0, window_bounds = array<i64: 1, 128, 9>}, {transform_indices = @transform_1, window_bounds = array<i64: 1, 9, 128>}, {transform_indices = @transform_2, window_bounds = array<i64: 1, 128>}, {transform_indices = @transform_3, window_bounds = array<i64: 1, 128>}, {transform_indices = @transform_4, window_bounds = array<i64: 1, 128>}, {transform_indices = @transform_5, window_bounds = array<i64: 128, 128>}]} {
    %c0_i32 = arith.constant 0 : i32
    %0 = arith.cmpi eq, %arg2, %c0_i32 : i32
    %1 = arith.extui %0 : i1 to i32
    %c0_i32_0 = arith.constant 0 : i32
    %2 = arith.cmpi ne, %1, %c0_i32_0 : i32
    scf.if %2 {
      %cst_12 = arith.constant 0.000000e+00 : f32
      %14 = vector.broadcast %cst_12 : f32 to vector<128x128xf32>
      %c0_13 = arith.constant 0 : index
      %c0_14 = arith.constant 0 : index
      %15 = vector.load %arg9[%c0_13, %c0_14] : memref<128x128xf32, #tpu.memory_space<vmem>>, vector<128x128xf32>
      tpu.vector_store %arg9[%c0_13, %c0_14], %14 {strides = array<i32>} : memref<128x128xf32, #tpu.memory_space<vmem>>, vector<128x128xf32>,
    } else {
    }
    %c0 = arith.constant 0 : index
    %c0_1 = arith.constant 0 : index
    %3 = vector.load %arg9[%c0, %c0_1] : memref<128x128xf32, #tpu.memory_space<vmem>>, vector<128x128xf32>
    %c0_2 = arith.constant 0 : index
    %c0_3 = arith.constant 0 : index
    %c0_4 = arith.constant 0 : index
    %4 = vector.load %arg3[%c0_2, %c0_3, %c0_4] : memref<1x128x9xbf16, #tpu.memory_space<vmem>>, vector<1x128x9xbf16>
    %5 = vector.shape_cast %4 : vector<1x128x9xbf16> to vector<128x9xbf16>
    %c0_5 = arith.constant 0 : index
    %c0_6 = arith.constant 0 : index
    %c0_7 = arith.constant 0 : index
    %6 = vector.load %arg4[%c0_5, %c0_6, %c0_7] : memref<1x9x128xbf16, #tpu.memory_space<vmem>>, vector<1x9x128xbf16>
    %7 = vector.shape_cast %6 : vector<1x9x128xbf16> to vector<9x128xbf16>
    %cst = arith.constant dense<0.000000e+00> : vector<128x128xf32>
    %8 = tpu.matmul %5, %7, %cst {dimension_numbers = #tpu.dot_dimension_numbers<[1], [0], [0], [1], [0, 0, 1, 1], [], []>} : vector<128x9xbf16>, vector<9x128xbf16>, vector<128x128xf32> -> vector<128x128xf32>
    %9 = arith.addf %3, %8 : vector<128x128xf32>
    %c0_8 = arith.constant 0 : index
    %c0_9 = arith.constant 0 : index
    %10 = vector.load %arg9[%c0_8, %c0_9] : memref<128x128xf32, #tpu.memory_space<vmem>>, vector<128x128xf32>
    tpu.vector_store %arg9[%c0_8, %c0_9], %9 {strides = array<i32>} : memref<128x128xf32, #tpu.memory_space<vmem>>, vector<128x128xf32>,
    %c0_i32_10 = arith.constant 0 : i32
    %11 = arith.cmpi eq, %arg2, %c0_i32_10 : i32
    %12 = arith.extui %11 : i1 to i32
    %c0_i32_11 = arith.constant 0 : i32
    %13 = arith.cmpi ne, %12, %c0_i32_11 : i32
    scf.if %13 {
      %c0_12 = arith.constant 0 : index
      %c0_13 = arith.constant 0 : index
      %14 = vector.load %arg9[%c0_12, %c0_13] : memref<128x128xf32, #tpu.memory_space<vmem>>, vector<128x128xf32>
      %c0_14 = arith.constant 0 : index
      %c0_15 = arith.constant 0 : index
      %15 = vector.load %arg5[%c0_14, %c0_15] : memref<1x128xf32, #tpu.memory_space<vmem>>, vector<1x128xf32>
      %c0_16 = arith.constant 0 : index
      %c0_17 = arith.constant 0 : index
      %16 = vector.load %arg6[%c0_16, %c0_17] : memref<1x128xf32, #tpu.memory_space<vmem>>, vector<1x128xf32>
      %c0_18 = arith.constant 0 : index
      %c0_19 = arith.constant 0 : index
      %17 = vector.load %arg7[%c0_18, %c0_19] : memref<1x128xf32, #tpu.memory_space<vmem>>, vector<1x128xf32>
      %18 = vector.broadcast %15 : vector<1x128xf32> to vector<128x128xf32>
      %19 = arith.addf %14, %18 : vector<128x128xf32>
      %cst_20 = arith.constant 0.000000e+00 : f32
      %20 = vector.broadcast %cst_20 : f32 to vector<128x128xf32>
      %21 = arith.maximumf %19, %20 : vector<128x128xf32>
      %22 = vector.broadcast %16 : vector<1x128xf32> to vector<128x128xf32>
      %23 = arith.mulf %21, %22 : vector<128x128xf32>
      %24 = vector.broadcast %17 : vector<1x128xf32> to vector<128x128xf32>
      %25 = arith.addf %23, %24 : vector<128x128xf32>
      %26 = arith.truncf %25 : vector<128x128xf32> to vector<128x128xbf16>
      %c0_21 = arith.constant 0 : index
      %c0_22 = arith.constant 0 : index
      %27 = vector.load %arg8[%c0_21, %c0_22] : memref<128x128xbf16, #tpu.memory_space<vmem>>, vector<128x128xbf16>
      tpu.vector_store %arg8[%c0_21, %c0_22], %26 {strides = array<i32>} : memref<128x128xbf16, #tpu.memory_space<vmem>>, vector<128x128xbf16>,
    } else {
    }
    return
  }
  func.func @transform_0(%arg0: i32, %arg1: i32, %arg2: i32) -> (i32, i32, i32) {
    %c0_i32 = arith.constant 0 : i32
    %c0_i32_0 = arith.constant 0 : i32
    return %arg2, %arg0, %c0_i32 : i32, i32, i32
  }
  func.func @transform_1(%arg0: i32, %arg1: i32, %arg2: i32) -> (i32, i32, i32) {
    %c0_i32 = arith.constant 0 : i32
    %c0_i32_0 = arith.constant 0 : i32
    return %arg2, %c0_i32, %arg1 : i32, i32, i32
  }
  func.func @transform_2(%arg0: i32, %arg1: i32, %arg2: i32) -> (i32, i32) {
    %c0_i32 = arith.constant 0 : i32
    %c0_i32_0 = arith.constant 0 : i32
    return %c0_i32, %arg1 : i32, i32
  }
  func.func @transform_3(%arg0: i32, %arg1: i32, %arg2: i32) -> (i32, i32) {
    %c0_i32 = arith.constant 0 : i32
    %c0_i32_0 = arith.constant 0 : i32
    return %c0_i32, %arg1 : i32, i32
  }
  func.func @transform_4(%arg0: i32, %arg1: i32, %arg2: i32) -> (i32, i32) {
    %c0_i32 = arith.constant 0 : i32
    %c0_i32_0 = arith.constant 0 : i32
    return %c0_i32, %arg1 : i32, i32
  }
  func.func @transform_5(%arg0: i32, %arg1: i32, %arg2: i32) -> (i32, i32) {
    %c0_i32 = arith.constant 0 : i32
    return %arg0, %arg1 : i32, i32
  }
}

module attributes {stable_mosaic.version = 11 : i64} {
  func.func @kernel(%arg0: i32, %arg1: i32, %arg2: i32, %arg3: memref<1x32x288xbf16, #tpu.memory_space<vmem>>, %arg4: memref<1x288x128xbf16, #tpu.memory_space<vmem>>, %arg5: memref<1x128xf32, #tpu.memory_space<vmem>>, %arg6: memref<1x128xf32, #tpu.memory_space<vmem>>, %arg7: memref<1x128xf32, #tpu.memory_space<vmem>>, %arg8: memref<32x128xbf16, #tpu.memory_space<vmem>>, %arg9: memref<32x128xf32, #tpu.memory_space<vmem>>) attributes {dimension_semantics = [#tpu.dimension_semantics<parallel>, #tpu.dimension_semantics<parallel>, #tpu.dimension_semantics<arbitrary>], iteration_bounds = array<i64: 1, 1, 1>, scalar_prefetch = 0 : i64, scratch_operands = 1 : i64, tpu.core_type = #tpu.core_type<tc>, window_params = [{transform_indices = @transform_0, window_bounds = array<i64: 1, 32, 288>}, {transform_indices = @transform_1, window_bounds = array<i64: 1, 288, 128>}, {transform_indices = @transform_2, window_bounds = array<i64: 1, 128>}, {transform_indices = @transform_3, window_bounds = array<i64: 1, 128>}, {transform_indices = @transform_4, window_bounds = array<i64: 1, 128>}, {transform_indices = @transform_5, window_bounds = array<i64: 32, 128>}]} {
    %c0_i32 = arith.constant 0 : i32
    %0 = arith.cmpi eq, %arg2, %c0_i32 : i32
    %1 = arith.extui %0 : i1 to i32
    %c0_i32_0 = arith.constant 0 : i32
    %2 = arith.cmpi ne, %1, %c0_i32_0 : i32
    scf.if %2 {
      %cst_12 = arith.constant 0.000000e+00 : f32
      %14 = vector.broadcast %cst_12 : f32 to vector<32x128xf32>
      %c0_13 = arith.constant 0 : index
      %c0_14 = arith.constant 0 : index
      %15 = vector.load %arg9[%c0_13, %c0_14] : memref<32x128xf32, #tpu.memory_space<vmem>>, vector<32x128xf32>
      tpu.vector_store %arg9[%c0_13, %c0_14], %14 {strides = array<i32>} : memref<32x128xf32, #tpu.memory_space<vmem>>, vector<32x128xf32>,
    } else {
    }
    %c0 = arith.constant 0 : index
    %c0_1 = arith.constant 0 : index
    %3 = vector.load %arg9[%c0, %c0_1] : memref<32x128xf32, #tpu.memory_space<vmem>>, vector<32x128xf32>
    %c0_2 = arith.constant 0 : index
    %c0_3 = arith.constant 0 : index
    %c0_4 = arith.constant 0 : index
    %4 = vector.load %arg3[%c0_2, %c0_3, %c0_4] : memref<1x32x288xbf16, #tpu.memory_space<vmem>>, vector<1x32x288xbf16>
    %5 = vector.shape_cast %4 : vector<1x32x288xbf16> to vector<32x288xbf16>
    %c0_5 = arith.constant 0 : index
    %c0_6 = arith.constant 0 : index
    %c0_7 = arith.constant 0 : index
    %6 = vector.load %arg4[%c0_5, %c0_6, %c0_7] : memref<1x288x128xbf16, #tpu.memory_space<vmem>>, vector<1x288x128xbf16>
    %7 = vector.shape_cast %6 : vector<1x288x128xbf16> to vector<288x128xbf16>
    %cst = arith.constant dense<0.000000e+00> : vector<32x128xf32>
    %8 = tpu.matmul %5, %7, %cst {dimension_numbers = #tpu.dot_dimension_numbers<[1], [0], [0], [1], [0, 0, 1, 1], [], []>} : vector<32x288xbf16>, vector<288x128xbf16>, vector<32x128xf32> -> vector<32x128xf32>
    %9 = arith.addf %3, %8 : vector<32x128xf32>
    %c0_8 = arith.constant 0 : index
    %c0_9 = arith.constant 0 : index
    %10 = vector.load %arg9[%c0_8, %c0_9] : memref<32x128xf32, #tpu.memory_space<vmem>>, vector<32x128xf32>
    tpu.vector_store %arg9[%c0_8, %c0_9], %9 {strides = array<i32>} : memref<32x128xf32, #tpu.memory_space<vmem>>, vector<32x128xf32>,
    %c0_i32_10 = arith.constant 0 : i32
    %11 = arith.cmpi eq, %arg2, %c0_i32_10 : i32
    %12 = arith.extui %11 : i1 to i32
    %c0_i32_11 = arith.constant 0 : i32
    %13 = arith.cmpi ne, %12, %c0_i32_11 : i32
    scf.if %13 {
      %c0_12 = arith.constant 0 : index
      %c0_13 = arith.constant 0 : index
      %14 = vector.load %arg9[%c0_12, %c0_13] : memref<32x128xf32, #tpu.memory_space<vmem>>, vector<32x128xf32>
      %c0_14 = arith.constant 0 : index
      %c0_15 = arith.constant 0 : index
      %15 = vector.load %arg5[%c0_14, %c0_15] : memref<1x128xf32, #tpu.memory_space<vmem>>, vector<1x128xf32>
      %c0_16 = arith.constant 0 : index
      %c0_17 = arith.constant 0 : index
      %16 = vector.load %arg6[%c0_16, %c0_17] : memref<1x128xf32, #tpu.memory_space<vmem>>, vector<1x128xf32>
      %c0_18 = arith.constant 0 : index
      %c0_19 = arith.constant 0 : index
      %17 = vector.load %arg7[%c0_18, %c0_19] : memref<1x128xf32, #tpu.memory_space<vmem>>, vector<1x128xf32>
      %18 = vector.broadcast %15 : vector<1x128xf32> to vector<32x128xf32>
      %19 = arith.addf %14, %18 : vector<32x128xf32>
      %cst_20 = arith.constant 0.000000e+00 : f32
      %20 = vector.broadcast %cst_20 : f32 to vector<32x128xf32>
      %21 = arith.maximumf %19, %20 : vector<32x128xf32>
      %22 = vector.broadcast %16 : vector<1x128xf32> to vector<32x128xf32>
      %23 = arith.mulf %21, %22 : vector<32x128xf32>
      %24 = vector.broadcast %17 : vector<1x128xf32> to vector<32x128xf32>
      %25 = arith.addf %23, %24 : vector<32x128xf32>
      %26 = arith.truncf %25 : vector<32x128xf32> to vector<32x128xbf16>
      %c0_21 = arith.constant 0 : index
      %c0_22 = arith.constant 0 : index
      %27 = vector.load %arg8[%c0_21, %c0_22] : memref<32x128xbf16, #tpu.memory_space<vmem>>, vector<32x128xbf16>
      tpu.vector_store %arg8[%c0_21, %c0_22], %26 {strides = array<i32>} : memref<32x128xbf16, #tpu.memory_space<vmem>>, vector<32x128xbf16>,
    } else {
    }
    return
  }
  func.func @transform_0(%arg0: i32, %arg1: i32, %arg2: i32) -> (i32, i32, i32) {
    %c0_i32 = arith.constant 0 : i32
    %c0_i32_0 = arith.constant 0 : i32
    return %arg2, %arg0, %c0_i32 : i32, i32, i32
  }
  func.func @transform_1(%arg0: i32, %arg1: i32, %arg2: i32) -> (i32, i32, i32) {
    %c0_i32 = arith.constant 0 : i32
    %c0_i32_0 = arith.constant 0 : i32
    return %arg2, %c0_i32, %arg1 : i32, i32, i32
  }
  func.func @transform_2(%arg0: i32, %arg1: i32, %arg2: i32) -> (i32, i32) {
    %c0_i32 = arith.constant 0 : i32
    %c0_i32_0 = arith.constant 0 : i32
    return %c0_i32, %arg1 : i32, i32
  }
  func.func @transform_3(%arg0: i32, %arg1: i32, %arg2: i32) -> (i32, i32) {
    %c0_i32 = arith.constant 0 : i32
    %c0_i32_0 = arith.constant 0 : i32
    return %c0_i32, %arg1 : i32, i32
  }
  func.func @transform_4(%arg0: i32, %arg1: i32, %arg2: i32) -> (i32, i32) {
    %c0_i32 = arith.constant 0 : i32
    %c0_i32_0 = arith.constant 0 : i32
    return %c0_i32, %arg1 : i32, i32
  }
  func.func @transform_5(%arg0: i32, %arg1: i32, %arg2: i32) -> (i32, i32) {
    %c0_i32 = arith.constant 0 : i32
    return %arg0, %arg1 : i32, i32
  }
}

module attributes {stable_mosaic.version = 11 : i64} {
  func.func @kernel(%arg0: i32, %arg1: i32, %arg2: i32, %arg3: memref<1x32x128xbf16, #tpu.memory_space<vmem>>, %arg4: memref<1x128x256xbf16, #tpu.memory_space<vmem>>, %arg5: memref<1x256xf32, #tpu.memory_space<vmem>>, %arg6: memref<32x256xf32, #tpu.memory_space<vmem>>, %arg7: memref<32x256xf32, #tpu.memory_space<vmem>>) attributes {dimension_semantics = [#tpu.dimension_semantics<parallel>, #tpu.dimension_semantics<parallel>, #tpu.dimension_semantics<arbitrary>], iteration_bounds = array<i64: 1, 1, 1>, scalar_prefetch = 0 : i64, scratch_operands = 1 : i64, tpu.core_type = #tpu.core_type<tc>, window_params = [{transform_indices = @transform_0, window_bounds = array<i64: 1, 32, 128>}, {transform_indices = @transform_1, window_bounds = array<i64: 1, 128, 256>}, {transform_indices = @transform_2, window_bounds = array<i64: 1, 256>}, {transform_indices = @transform_3, window_bounds = array<i64: 32, 256>}]} {
    %c0_i32 = arith.constant 0 : i32
    %0 = arith.cmpi eq, %arg2, %c0_i32 : i32
    %1 = arith.extui %0 : i1 to i32
    %c0_i32_0 = arith.constant 0 : i32
    %2 = arith.cmpi ne, %1, %c0_i32_0 : i32
    scf.if %2 {
      %cst_12 = arith.constant 0.000000e+00 : f32
      %14 = vector.broadcast %cst_12 : f32 to vector<32x256xf32>
      %c0_13 = arith.constant 0 : index
      %c0_14 = arith.constant 0 : index
      %15 = vector.load %arg7[%c0_13, %c0_14] : memref<32x256xf32, #tpu.memory_space<vmem>>, vector<32x256xf32>
      tpu.vector_store %arg7[%c0_13, %c0_14], %14 {strides = array<i32>} : memref<32x256xf32, #tpu.memory_space<vmem>>, vector<32x256xf32>,
    } else {
    }
    %c0 = arith.constant 0 : index
    %c0_1 = arith.constant 0 : index
    %3 = vector.load %arg7[%c0, %c0_1] : memref<32x256xf32, #tpu.memory_space<vmem>>, vector<32x256xf32>
    %c0_2 = arith.constant 0 : index
    %c0_3 = arith.constant 0 : index
    %c0_4 = arith.constant 0 : index
    %4 = vector.load %arg3[%c0_2, %c0_3, %c0_4] : memref<1x32x128xbf16, #tpu.memory_space<vmem>>, vector<1x32x128xbf16>
    %5 = vector.shape_cast %4 : vector<1x32x128xbf16> to vector<32x128xbf16>
    %c0_5 = arith.constant 0 : index
    %c0_6 = arith.constant 0 : index
    %c0_7 = arith.constant 0 : index
    %6 = vector.load %arg4[%c0_5, %c0_6, %c0_7] : memref<1x128x256xbf16, #tpu.memory_space<vmem>>, vector<1x128x256xbf16>
    %7 = vector.shape_cast %6 : vector<1x128x256xbf16> to vector<128x256xbf16>
    %cst = arith.constant dense<0.000000e+00> : vector<32x256xf32>
    %8 = tpu.matmul %5, %7, %cst {dimension_numbers = #tpu.dot_dimension_numbers<[1], [0], [0], [1], [0, 0, 1, 1], [], []>} : vector<32x128xbf16>, vector<128x256xbf16>, vector<32x256xf32> -> vector<32x256xf32>
    %9 = arith.addf %3, %8 : vector<32x256xf32>
    %c0_8 = arith.constant 0 : index
    %c0_9 = arith.constant 0 : index
    %10 = vector.load %arg7[%c0_8, %c0_9] : memref<32x256xf32, #tpu.memory_space<vmem>>, vector<32x256xf32>
    tpu.vector_store %arg7[%c0_8, %c0_9], %9 {strides = array<i32>} : memref<32x256xf32, #tpu.memory_space<vmem>>, vector<32x256xf32>,
    %c0_i32_10 = arith.constant 0 : i32
    %11 = arith.cmpi eq, %arg2, %c0_i32_10 : i32
    %12 = arith.extui %11 : i1 to i32
    %c0_i32_11 = arith.constant 0 : i32
    %13 = arith.cmpi ne, %12, %c0_i32_11 : i32
    scf.if %13 {
      %c0_12 = arith.constant 0 : index
      %c0_13 = arith.constant 0 : index
      %14 = vector.load %arg7[%c0_12, %c0_13] : memref<32x256xf32, #tpu.memory_space<vmem>>, vector<32x256xf32>
      %c0_14 = arith.constant 0 : index
      %c0_15 = arith.constant 0 : index
      %15 = vector.load %arg5[%c0_14, %c0_15] : memref<1x256xf32, #tpu.memory_space<vmem>>, vector<1x256xf32>
      %16 = vector.broadcast %15 : vector<1x256xf32> to vector<32x256xf32>
      %17 = arith.addf %14, %16 : vector<32x256xf32>
      %c0_16 = arith.constant 0 : index
      %c0_17 = arith.constant 0 : index
      %18 = vector.load %arg6[%c0_16, %c0_17] : memref<32x256xf32, #tpu.memory_space<vmem>>, vector<32x256xf32>
      tpu.vector_store %arg6[%c0_16, %c0_17], %17 {strides = array<i32>} : memref<32x256xf32, #tpu.memory_space<vmem>>, vector<32x256xf32>,
    } else {
    }
    return
  }
  func.func @transform_0(%arg0: i32, %arg1: i32, %arg2: i32) -> (i32, i32, i32) {
    %c0_i32 = arith.constant 0 : i32
    %c0_i32_0 = arith.constant 0 : i32
    return %arg2, %arg0, %c0_i32 : i32, i32, i32
  }
  func.func @transform_1(%arg0: i32, %arg1: i32, %arg2: i32) -> (i32, i32, i32) {
    %c0_i32 = arith.constant 0 : i32
    %c0_i32_0 = arith.constant 0 : i32
    return %arg2, %c0_i32, %arg1 : i32, i32, i32
  }
  func.func @transform_2(%arg0: i32, %arg1: i32, %arg2: i32) -> (i32, i32) {
    %c0_i32 = arith.constant 0 : i32
    %c0_i32_0 = arith.constant 0 : i32
    return %c0_i32, %arg1 : i32, i32
  }
  func.func @transform_3(%arg0: i32, %arg1: i32, %arg2: i32) -> (i32, i32) {
    %c0_i32 = arith.constant 0 : i32
    return %arg0, %arg1 : i32, i32
  }
}

module attributes {stable_mosaic.version = 11 : i64} {
  func.func @kernel(%arg0: i32, %arg1: memref<4x8x128xf32, #tpu.memory_space<vmem>>, %arg2: memref<4x8x128xf32, #tpu.memory_space<vmem>>, %arg3: memref<32x128xbf16, #tpu.memory_space<vmem>>, %arg4: memref<32x128xbf16, #tpu.memory_space<vmem>>, %arg5: memref<4x8x32xbf16, #tpu.memory_space<vmem>>, %arg6: memref<4x8x32xbf16, #tpu.memory_space<vmem>>, %arg7: memref<8x32xf32, #tpu.memory_space<vmem>>, %arg8: memref<8x32xf32, #tpu.memory_space<vmem>>, %arg9: memref<8x32xf32, #tpu.memory_space<vmem>>, %arg10: memref<8x32xf32, #tpu.memory_space<vmem>>) attributes {dimension_semantics = [#tpu.dimension_semantics<arbitrary>], iteration_bounds = array<i64: 1>, scalar_prefetch = 0 : i64, scratch_operands = 4 : i64, tpu.core_type = #tpu.core_type<tc>, window_params = [{transform_indices = @transform_0, window_bounds = array<i64: 4, 8, 128>}, {transform_indices = @transform_1, window_bounds = array<i64: 4, 8, 128>}, {pipeline_mode = #tpu.pipeline_mode<synchronous>, transform_indices = @transform_2, window_bounds = array<i64: 32, 128>}, {pipeline_mode = #tpu.pipeline_mode<synchronous>, transform_indices = @transform_3, window_bounds = array<i64: 32, 128>}, {transform_indices = @transform_4, window_bounds = array<i64: 4, 8, 32>}, {transform_indices = @transform_5, window_bounds = array<i64: 4, 8, 32>}]} {
    %c0_i32 = arith.constant 0 : i32
    %0 = arith.cmpi eq, %arg0, %c0_i32 : i32
    %1 = arith.extui %0 : i1 to i32
    %c0_i32_0 = arith.constant 0 : i32
    %2 = arith.cmpi ne, %1, %c0_i32_0 : i32
    scf.if %2 {
      %cst_168 = arith.constant 0.000000e+00 : f32
      %387 = vector.broadcast %cst_168 : f32 to vector<8x32xf32>
      %c0_169 = arith.constant 0 : index
      %c0_170 = arith.constant 0 : index
      %388 = vector.load %arg7[%c0_169, %c0_170] : memref<8x32xf32, #tpu.memory_space<vmem>>, vector<8x32xf32>
      tpu.vector_store %arg7[%c0_169, %c0_170], %387 {strides = array<i32>} : memref<8x32xf32, #tpu.memory_space<vmem>>, vector<8x32xf32>,
      %cst_171 = arith.constant 0.000000e+00 : f32
      %389 = vector.broadcast %cst_171 : f32 to vector<8x32xf32>
      %c0_172 = arith.constant 0 : index
      %c0_173 = arith.constant 0 : index
      %390 = vector.load %arg8[%c0_172, %c0_173] : memref<8x32xf32, #tpu.memory_space<vmem>>, vector<8x32xf32>
      tpu.vector_store %arg8[%c0_172, %c0_173], %389 {strides = array<i32>} : memref<8x32xf32, #tpu.memory_space<vmem>>, vector<8x32xf32>,
      %cst_174 = arith.constant 0.000000e+00 : f32
      %391 = vector.broadcast %cst_174 : f32 to vector<8x32xf32>
      %c0_175 = arith.constant 0 : index
      %c0_176 = arith.constant 0 : index
      %392 = vector.load %arg9[%c0_175, %c0_176] : memref<8x32xf32, #tpu.memory_space<vmem>>, vector<8x32xf32>
      tpu.vector_store %arg9[%c0_175, %c0_176], %391 {strides = array<i32>} : memref<8x32xf32, #tpu.memory_space<vmem>>, vector<8x32xf32>,
      %cst_177 = arith.constant 0.000000e+00 : f32
      %393 = vector.broadcast %cst_177 : f32 to vector<8x32xf32>
      %c0_178 = arith.constant 0 : index
      %c0_179 = arith.constant 0 : index
      %394 = vector.load %arg10[%c0_178, %c0_179] : memref<8x32xf32, #tpu.memory_space<vmem>>, vector<8x32xf32>
      tpu.vector_store %arg10[%c0_178, %c0_179], %393 {strides = array<i32>} : memref<8x32xf32, #tpu.memory_space<vmem>>, vector<8x32xf32>,
    } else {
    }
    %c0_i32_1 = arith.constant 0 : i32
    %c4_i32 = arith.constant 4 : i32
    %3 = arith.muli %arg0, %c4_i32 : i32
    %4 = arith.addi %3, %c0_i32_1 : i32
    %c4_i32_2 = arith.constant 4 : i32
    %5 = arith.cmpi slt, %4, %c4_i32_2 : i32
    %6 = arith.extui %5 : i1 to i32
    %7 = arith.sitofp %6 : i32 to f32
    %8 = arith.index_cast %c0_i32_1 : i32 to index
    %c0 = arith.constant 0 : index
    %c0_3 = arith.constant 0 : index
    %9 = vector.load %arg1[%8, %c0, %c0_3] : memref<4x8x128xf32, #tpu.memory_space<vmem>>, vector<1x8x128xf32>
    %10 = vector.shape_cast %9 : vector<1x8x128xf32> to vector<8x128xf32>
    %c0_4 = arith.constant 0 : index
    %c0_5 = arith.constant 0 : index
    %11 = vector.load %arg3[%c0_4, %c0_5] : memref<32x128xbf16, #tpu.memory_space<vmem>>, vector<32x128xbf16>
    %c0_6 = arith.constant 0 : index
    %c0_7 = arith.constant 0 : index
    %12 = vector.load %arg7[%c0_6, %c0_7] : memref<8x32xf32, #tpu.memory_space<vmem>>, vector<8x32xf32>
    %c0_8 = arith.constant 0 : index
    %c0_9 = arith.constant 0 : index
    %13 = vector.load %arg8[%c0_8, %c0_9] : memref<8x32xf32, #tpu.memory_space<vmem>>, vector<8x32xf32>
    %14 = arith.truncf %12 : vector<8x32xf32> to vector<8x32xbf16>
    %cst = arith.constant dense<0.000000e+00> : vector<8x128xf32>
    %15 = tpu.matmul %14, %11, %cst {dimension_numbers = #tpu.dot_dimension_numbers<[1], [0], [0], [1], [0, 0, 1, 1], [], []>} : vector<8x32xbf16>, vector<32x128xbf16>, vector<8x128xf32> -> vector<8x128xf32>
    %16 = arith.addf %10, %15 : vector<8x128xf32>
    %17 = vector.extract_strided_slice %16 {offsets = [0, 0], sizes = [8, 32], strides = [1, 1]} : vector<8x128xf32> to vector<8x32xf32>
    %18 = arith.negf %17 : vector<8x32xf32>
    %19 = math.exp %18 : vector<8x32xf32>
    %cst_10 = arith.constant 1.000000e+00 : f32
    %20 = vector.broadcast %cst_10 : f32 to vector<8x32xf32>
    %21 = arith.addf %20, %19 : vector<8x32xf32>
    %22 = arith.divf %20, %21 : vector<8x32xf32>
    %23 = vector.extract_strided_slice %16 {offsets = [0, 32], sizes = [8, 32], strides = [1, 1]} : vector<8x128xf32> to vector<8x32xf32>
    %24 = arith.negf %23 : vector<8x32xf32>
    %25 = math.exp %24 : vector<8x32xf32>
    %cst_11 = arith.constant 1.000000e+00 : f32
    %26 = vector.broadcast %cst_11 : f32 to vector<8x32xf32>
    %27 = arith.addf %26, %25 : vector<8x32xf32>
    %28 = arith.divf %26, %27 : vector<8x32xf32>
    %29 = vector.extract_strided_slice %16 {offsets = [0, 64], sizes = [8, 32], strides = [1, 1]} : vector<8x128xf32> to vector<8x32xf32>
    %30 = math.tanh %29 : vector<8x32xf32>
    %31 = vector.extract_strided_slice %16 {offsets = [0, 96], sizes = [8, 32], strides = [1, 1]} : vector<8x128xf32> to vector<8x32xf32>
    %32 = arith.negf %31 : vector<8x32xf32>
    %33 = math.exp %32 : vector<8x32xf32>
    %cst_12 = arith.constant 1.000000e+00 : f32
    %34 = vector.broadcast %cst_12 : f32 to vector<8x32xf32>
    %35 = arith.addf %34, %33 : vector<8x32xf32>
    %36 = arith.divf %34, %35 : vector<8x32xf32>
    %37 = arith.mulf %28, %13 : vector<8x32xf32>
    %38 = arith.mulf %22, %30 : vector<8x32xf32>
    %39 = arith.addf %37, %38 : vector<8x32xf32>
    %40 = vector.broadcast %7 : f32 to vector<8x32xf32>
    %41 = arith.mulf %39, %40 : vector<8x32xf32>
    %42 = math.tanh %41 : vector<8x32xf32>
    %43 = arith.mulf %36, %42 : vector<8x32xf32>
    %c0_13 = arith.constant 0 : index
    %c0_14 = arith.constant 0 : index
    %44 = vector.load %arg7[%c0_13, %c0_14] : memref<8x32xf32, #tpu.memory_space<vmem>>, vector<8x32xf32>
    tpu.vector_store %arg7[%c0_13, %c0_14], %43 {strides = array<i32>} : memref<8x32xf32, #tpu.memory_space<vmem>>, vector<8x32xf32>,
    %c0_15 = arith.constant 0 : index
    %c0_16 = arith.constant 0 : index
    %45 = vector.load %arg8[%c0_15, %c0_16] : memref<8x32xf32, #tpu.memory_space<vmem>>, vector<8x32xf32>
    tpu.vector_store %arg8[%c0_15, %c0_16], %41 {strides = array<i32>} : memref<8x32xf32, #tpu.memory_space<vmem>>, vector<8x32xf32>,
    %46 = vector.shape_cast %43 : vector<8x32xf32> to vector<1x8x32xf32>
    %47 = arith.truncf %46 : vector<1x8x32xf32> to vector<1x8x32xbf16>
    %48 = arith.index_cast %c0_i32_1 : i32 to index
    %c0_17 = arith.constant 0 : index
    %c0_18 = arith.constant 0 : index
    %49 = vector.load %arg5[%48, %c0_17, %c0_18] : memref<4x8x32xbf16, #tpu.memory_space<vmem>>, vector<1x8x32xbf16>
    tpu.vector_store %arg5[%48, %c0_17, %c0_18], %47 {strides = array<i32>} : memref<4x8x32xbf16, #tpu.memory_space<vmem>>, vector<1x8x32xbf16>,
    %c3_i32 = arith.constant 3 : i32
    %50 = arith.subi %c3_i32, %c0_i32_1 : i32
    %c4_i32_19 = arith.constant 4 : i32
    %51 = arith.muli %arg0, %c4_i32_19 : i32
    %52 = arith.addi %51, %c0_i32_1 : i32
    %c3_i32_20 = arith.constant 3 : i32
    %53 = arith.subi %c3_i32_20, %52 : i32
    %c4_i32_21 = arith.constant 4 : i32
    %54 = arith.cmpi slt, %53, %c4_i32_21 : i32
    %55 = arith.extui %54 : i1 to i32
    %56 = arith.sitofp %55 : i32 to f32
    %57 = arith.index_cast %50 : i32 to index
    %c0_22 = arith.constant 0 : index
    %c0_23 = arith.constant 0 : index
    %58 = vector.load %arg2[%57, %c0_22, %c0_23] : memref<4x8x128xf32, #tpu.memory_space<vmem>>, vector<1x8x128xf32>
    %59 = vector.shape_cast %58 : vector<1x8x128xf32> to vector<8x128xf32>
    %c0_24 = arith.constant 0 : index
    %c0_25 = arith.constant 0 : index
    %60 = vector.load %arg4[%c0_24, %c0_25] : memref<32x128xbf16, #tpu.memory_space<vmem>>, vector<32x128xbf16>
    %c0_26 = arith.constant 0 : index
    %c0_27 = arith.constant 0 : index
    %61 = vector.load %arg9[%c0_26, %c0_27] : memref<8x32xf32, #tpu.memory_space<vmem>>, vector<8x32xf32>
    %c0_28 = arith.constant 0 : index
    %c0_29 = arith.constant 0 : index
    %62 = vector.load %arg10[%c0_28, %c0_29] : memref<8x32xf32, #tpu.memory_space<vmem>>, vector<8x32xf32>
    %63 = arith.truncf %61 : vector<8x32xf32> to vector<8x32xbf16>
    %cst_30 = arith.constant dense<0.000000e+00> : vector<8x128xf32>
    %64 = tpu.matmul %63, %60, %cst_30 {dimension_numbers = #tpu.dot_dimension_numbers<[1], [0], [0], [1], [0, 0, 1, 1], [], []>} : vector<8x32xbf16>, vector<32x128xbf16>, vector<8x128xf32> -> vector<8x128xf32>
    %65 = arith.addf %59, %64 : vector<8x128xf32>
    %66 = vector.extract_strided_slice %65 {offsets = [0, 0], sizes = [8, 32], strides = [1, 1]} : vector<8x128xf32> to vector<8x32xf32>
    %67 = arith.negf %66 : vector<8x32xf32>
    %68 = math.exp %67 : vector<8x32xf32>
    %cst_31 = arith.constant 1.000000e+00 : f32
    %69 = vector.broadcast %cst_31 : f32 to vector<8x32xf32>
    %70 = arith.addf %69, %68 : vector<8x32xf32>
    %71 = arith.divf %69, %70 : vector<8x32xf32>
    %72 = vector.extract_strided_slice %65 {offsets = [0, 32], sizes = [8, 32], strides = [1, 1]} : vector<8x128xf32> to vector<8x32xf32>
    %73 = arith.negf %72 : vector<8x32xf32>
    %74 = math.exp %73 : vector<8x32xf32>
    %cst_32 = arith.constant 1.000000e+00 : f32
    %75 = vector.broadcast %cst_32 : f32 to vector<8x32xf32>
    %76 = arith.addf %75, %74 : vector<8x32xf32>
    %77 = arith.divf %75, %76 : vector<8x32xf32>
    %78 = vector.extract_strided_slice %65 {offsets = [0, 64], sizes = [8, 32], strides = [1, 1]} : vector<8x128xf32> to vector<8x32xf32>
    %79 = math.tanh %78 : vector<8x32xf32>
    %80 = vector.extract_strided_slice %65 {offsets = [0, 96], sizes = [8, 32], strides = [1, 1]} : vector<8x128xf32> to vector<8x32xf32>
    %81 = arith.negf %80 : vector<8x32xf32>
    %82 = math.exp %81 : vector<8x32xf32>
    %cst_33 = arith.constant 1.000000e+00 : f32
    %83 = vector.broadcast %cst_33 : f32 to vector<8x32xf32>
    %84 = arith.addf %83, %82 : vector<8x32xf32>
    %85 = arith.divf %83, %84 : vector<8x32xf32>
    %86 = arith.mulf %77, %62 : vector<8x32xf32>
    %87 = arith.mulf %71, %79 : vector<8x32xf32>
    %88 = arith.addf %86, %87 : vector<8x32xf32>
    %89 = vector.broadcast %56 : f32 to vector<8x32xf32>
    %90 = arith.mulf %88, %89 : vector<8x32xf32>
    %91 = math.tanh %90 : vector<8x32xf32>
    %92 = arith.mulf %85, %91 : vector<8x32xf32>
    %c0_34 = arith.constant 0 : index
    %c0_35 = arith.constant 0 : index
    %93 = vector.load %arg9[%c0_34, %c0_35] : memref<8x32xf32, #tpu.memory_space<vmem>>, vector<8x32xf32>
    tpu.vector_store %arg9[%c0_34, %c0_35], %92 {strides = array<i32>} : memref<8x32xf32, #tpu.memory_space<vmem>>, vector<8x32xf32>,
    %c0_36 = arith.constant 0 : index
    %c0_37 = arith.constant 0 : index
    %94 = vector.load %arg10[%c0_36, %c0_37] : memref<8x32xf32, #tpu.memory_space<vmem>>, vector<8x32xf32>
    tpu.vector_store %arg10[%c0_36, %c0_37], %90 {strides = array<i32>} : memref<8x32xf32, #tpu.memory_space<vmem>>, vector<8x32xf32>,
    %95 = vector.shape_cast %92 : vector<8x32xf32> to vector<1x8x32xf32>
    %96 = arith.truncf %95 : vector<1x8x32xf32> to vector<1x8x32xbf16>
    %97 = arith.index_cast %50 : i32 to index
    %c0_38 = arith.constant 0 : index
    %c0_39 = arith.constant 0 : index
    %98 = vector.load %arg6[%97, %c0_38, %c0_39] : memref<4x8x32xbf16, #tpu.memory_space<vmem>>, vector<1x8x32xbf16>
    tpu.vector_store %arg6[%97, %c0_38, %c0_39], %96 {strides = array<i32>} : memref<4x8x32xbf16, #tpu.memory_space<vmem>>, vector<1x8x32xbf16>,
    %c1_i32 = arith.constant 1 : i32
    %c4_i32_40 = arith.constant 4 : i32
    %99 = arith.muli %arg0, %c4_i32_40 : i32
    %100 = arith.addi %99, %c1_i32 : i32
    %c4_i32_41 = arith.constant 4 : i32
    %101 = arith.cmpi slt, %100, %c4_i32_41 : i32
    %102 = arith.extui %101 : i1 to i32
    %103 = arith.sitofp %102 : i32 to f32
    %104 = arith.index_cast %c1_i32 : i32 to index
    %c0_42 = arith.constant 0 : index
    %c0_43 = arith.constant 0 : index
    %105 = vector.load %arg1[%104, %c0_42, %c0_43] : memref<4x8x128xf32, #tpu.memory_space<vmem>>, vector<1x8x128xf32>
    %106 = vector.shape_cast %105 : vector<1x8x128xf32> to vector<8x128xf32>
    %c0_44 = arith.constant 0 : index
    %c0_45 = arith.constant 0 : index
    %107 = vector.load %arg3[%c0_44, %c0_45] : memref<32x128xbf16, #tpu.memory_space<vmem>>, vector<32x128xbf16>
    %c0_46 = arith.constant 0 : index
    %c0_47 = arith.constant 0 : index
    %108 = vector.load %arg7[%c0_46, %c0_47] : memref<8x32xf32, #tpu.memory_space<vmem>>, vector<8x32xf32>
    %c0_48 = arith.constant 0 : index
    %c0_49 = arith.constant 0 : index
    %109 = vector.load %arg8[%c0_48, %c0_49] : memref<8x32xf32, #tpu.memory_space<vmem>>, vector<8x32xf32>
    %110 = arith.truncf %108 : vector<8x32xf32> to vector<8x32xbf16>
    %cst_50 = arith.constant dense<0.000000e+00> : vector<8x128xf32>
    %111 = tpu.matmul %110, %107, %cst_50 {dimension_numbers = #tpu.dot_dimension_numbers<[1], [0], [0], [1], [0, 0, 1, 1], [], []>} : vector<8x32xbf16>, vector<32x128xbf16>, vector<8x128xf32> -> vector<8x128xf32>
    %112 = arith.addf %106, %111 : vector<8x128xf32>
    %113 = vector.extract_strided_slice %112 {offsets = [0, 0], sizes = [8, 32], strides = [1, 1]} : vector<8x128xf32> to vector<8x32xf32>
    %114 = arith.negf %113 : vector<8x32xf32>
    %115 = math.exp %114 : vector<8x32xf32>
    %cst_51 = arith.constant 1.000000e+00 : f32
    %116 = vector.broadcast %cst_51 : f32 to vector<8x32xf32>
    %117 = arith.addf %116, %115 : vector<8x32xf32>
    %118 = arith.divf %116, %117 : vector<8x32xf32>
    %119 = vector.extract_strided_slice %112 {offsets = [0, 32], sizes = [8, 32], strides = [1, 1]} : vector<8x128xf32> to vector<8x32xf32>
    %120 = arith.negf %119 : vector<8x32xf32>
    %121 = math.exp %120 : vector<8x32xf32>
    %cst_52 = arith.constant 1.000000e+00 : f32
    %122 = vector.broadcast %cst_52 : f32 to vector<8x32xf32>
    %123 = arith.addf %122, %121 : vector<8x32xf32>
    %124 = arith.divf %122, %123 : vector<8x32xf32>
    %125 = vector.extract_strided_slice %112 {offsets = [0, 64], sizes = [8, 32], strides = [1, 1]} : vector<8x128xf32> to vector<8x32xf32>
    %126 = math.tanh %125 : vector<8x32xf32>
    %127 = vector.extract_strided_slice %112 {offsets = [0, 96], sizes = [8, 32], strides = [1, 1]} : vector<8x128xf32> to vector<8x32xf32>
    %128 = arith.negf %127 : vector<8x32xf32>
    %129 = math.exp %128 : vector<8x32xf32>
    %cst_53 = arith.constant 1.000000e+00 : f32
    %130 = vector.broadcast %cst_53 : f32 to vector<8x32xf32>
    %131 = arith.addf %130, %129 : vector<8x32xf32>
    %132 = arith.divf %130, %131 : vector<8x32xf32>
    %133 = arith.mulf %124, %109 : vector<8x32xf32>
    %134 = arith.mulf %118, %126 : vector<8x32xf32>
    %135 = arith.addf %133, %134 : vector<8x32xf32>
    %136 = vector.broadcast %103 : f32 to vector<8x32xf32>
    %137 = arith.mulf %135, %136 : vector<8x32xf32>
    %138 = math.tanh %137 : vector<8x32xf32>
    %139 = arith.mulf %132, %138 : vector<8x32xf32>
    %c0_54 = arith.constant 0 : index
    %c0_55 = arith.constant 0 : index
    %140 = vector.load %arg7[%c0_54, %c0_55] : memref<8x32xf32, #tpu.memory_space<vmem>>, vector<8x32xf32>
    tpu.vector_store %arg7[%c0_54, %c0_55], %139 {strides = array<i32>} : memref<8x32xf32, #tpu.memory_space<vmem>>, vector<8x32xf32>,
    %c0_56 = arith.constant 0 : index
    %c0_57 = arith.constant 0 : index
    %141 = vector.load %arg8[%c0_56, %c0_57] : memref<8x32xf32, #tpu.memory_space<vmem>>, vector<8x32xf32>
    tpu.vector_store %arg8[%c0_56, %c0_57], %137 {strides = array<i32>} : memref<8x32xf32, #tpu.memory_space<vmem>>, vector<8x32xf32>,
    %142 = vector.shape_cast %139 : vector<8x32xf32> to vector<1x8x32xf32>
    %143 = arith.truncf %142 : vector<1x8x32xf32> to vector<1x8x32xbf16>
    %144 = arith.index_cast %c1_i32 : i32 to index
    %c0_58 = arith.constant 0 : index
    %c0_59 = arith.constant 0 : index
    %145 = vector.load %arg5[%144, %c0_58, %c0_59] : memref<4x8x32xbf16, #tpu.memory_space<vmem>>, vector<1x8x32xbf16>
    tpu.vector_store %arg5[%144, %c0_58, %c0_59], %143 {strides = array<i32>} : memref<4x8x32xbf16, #tpu.memory_space<vmem>>, vector<1x8x32xbf16>,
    %c3_i32_60 = arith.constant 3 : i32
    %146 = arith.subi %c3_i32_60, %c1_i32 : i32
    %c4_i32_61 = arith.constant 4 : i32
    %147 = arith.muli %arg0, %c4_i32_61 : i32
    %148 = arith.addi %147, %c1_i32 : i32
    %c3_i32_62 = arith.constant 3 : i32
    %149 = arith.subi %c3_i32_62, %148 : i32
    %c4_i32_63 = arith.constant 4 : i32
    %150 = arith.cmpi slt, %149, %c4_i32_63 : i32
    %151 = arith.extui %150 : i1 to i32
    %152 = arith.sitofp %151 : i32 to f32
    %153 = arith.index_cast %146 : i32 to index
    %c0_64 = arith.constant 0 : index
    %c0_65 = arith.constant 0 : index
    %154 = vector.load %arg2[%153, %c0_64, %c0_65] : memref<4x8x128xf32, #tpu.memory_space<vmem>>, vector<1x8x128xf32>
    %155 = vector.shape_cast %154 : vector<1x8x128xf32> to vector<8x128xf32>
    %c0_66 = arith.constant 0 : index
    %c0_67 = arith.constant 0 : index
    %156 = vector.load %arg4[%c0_66, %c0_67] : memref<32x128xbf16, #tpu.memory_space<vmem>>, vector<32x128xbf16>
    %c0_68 = arith.constant 0 : index
    %c0_69 = arith.constant 0 : index
    %157 = vector.load %arg9[%c0_68, %c0_69] : memref<8x32xf32, #tpu.memory_space<vmem>>, vector<8x32xf32>
    %c0_70 = arith.constant 0 : index
    %c0_71 = arith.constant 0 : index
    %158 = vector.load %arg10[%c0_70, %c0_71] : memref<8x32xf32, #tpu.memory_space<vmem>>, vector<8x32xf32>
    %159 = arith.truncf %157 : vector<8x32xf32> to vector<8x32xbf16>
    %cst_72 = arith.constant dense<0.000000e+00> : vector<8x128xf32>
    %160 = tpu.matmul %159, %156, %cst_72 {dimension_numbers = #tpu.dot_dimension_numbers<[1], [0], [0], [1], [0, 0, 1, 1], [], []>} : vector<8x32xbf16>, vector<32x128xbf16>, vector<8x128xf32> -> vector<8x128xf32>
    %161 = arith.addf %155, %160 : vector<8x128xf32>
    %162 = vector.extract_strided_slice %161 {offsets = [0, 0], sizes = [8, 32], strides = [1, 1]} : vector<8x128xf32> to vector<8x32xf32>
    %163 = arith.negf %162 : vector<8x32xf32>
    %164 = math.exp %163 : vector<8x32xf32>
    %cst_73 = arith.constant 1.000000e+00 : f32
    %165 = vector.broadcast %cst_73 : f32 to vector<8x32xf32>
    %166 = arith.addf %165, %164 : vector<8x32xf32>
    %167 = arith.divf %165, %166 : vector<8x32xf32>
    %168 = vector.extract_strided_slice %161 {offsets = [0, 32], sizes = [8, 32], strides = [1, 1]} : vector<8x128xf32> to vector<8x32xf32>
    %169 = arith.negf %168 : vector<8x32xf32>
    %170 = math.exp %169 : vector<8x32xf32>
    %cst_74 = arith.constant 1.000000e+00 : f32
    %171 = vector.broadcast %cst_74 : f32 to vector<8x32xf32>
    %172 = arith.addf %171, %170 : vector<8x32xf32>
    %173 = arith.divf %171, %172 : vector<8x32xf32>
    %174 = vector.extract_strided_slice %161 {offsets = [0, 64], sizes = [8, 32], strides = [1, 1]} : vector<8x128xf32> to vector<8x32xf32>
    %175 = math.tanh %174 : vector<8x32xf32>
    %176 = vector.extract_strided_slice %161 {offsets = [0, 96], sizes = [8, 32], strides = [1, 1]} : vector<8x128xf32> to vector<8x32xf32>
    %177 = arith.negf %176 : vector<8x32xf32>
    %178 = math.exp %177 : vector<8x32xf32>
    %cst_75 = arith.constant 1.000000e+00 : f32
    %179 = vector.broadcast %cst_75 : f32 to vector<8x32xf32>
    %180 = arith.addf %179, %178 : vector<8x32xf32>
    %181 = arith.divf %179, %180 : vector<8x32xf32>
    %182 = arith.mulf %173, %158 : vector<8x32xf32>
    %183 = arith.mulf %167, %175 : vector<8x32xf32>
    %184 = arith.addf %182, %183 : vector<8x32xf32>
    %185 = vector.broadcast %152 : f32 to vector<8x32xf32>
    %186 = arith.mulf %184, %185 : vector<8x32xf32>
    %187 = math.tanh %186 : vector<8x32xf32>
    %188 = arith.mulf %181, %187 : vector<8x32xf32>
    %c0_76 = arith.constant 0 : index
    %c0_77 = arith.constant 0 : index
    %189 = vector.load %arg9[%c0_76, %c0_77] : memref<8x32xf32, #tpu.memory_space<vmem>>, vector<8x32xf32>
    tpu.vector_store %arg9[%c0_76, %c0_77], %188 {strides = array<i32>} : memref<8x32xf32, #tpu.memory_space<vmem>>, vector<8x32xf32>,
    %c0_78 = arith.constant 0 : index
    %c0_79 = arith.constant 0 : index
    %190 = vector.load %arg10[%c0_78, %c0_79] : memref<8x32xf32, #tpu.memory_space<vmem>>, vector<8x32xf32>
    tpu.vector_store %arg10[%c0_78, %c0_79], %186 {strides = array<i32>} : memref<8x32xf32, #tpu.memory_space<vmem>>, vector<8x32xf32>,
    %191 = vector.shape_cast %188 : vector<8x32xf32> to vector<1x8x32xf32>
    %192 = arith.truncf %191 : vector<1x8x32xf32> to vector<1x8x32xbf16>
    %193 = arith.index_cast %146 : i32 to index
    %c0_80 = arith.constant 0 : index
    %c0_81 = arith.constant 0 : index
    %194 = vector.load %arg6[%193, %c0_80, %c0_81] : memref<4x8x32xbf16, #tpu.memory_space<vmem>>, vector<1x8x32xbf16>
    tpu.vector_store %arg6[%193, %c0_80, %c0_81], %192 {strides = array<i32>} : memref<4x8x32xbf16, #tpu.memory_space<vmem>>, vector<1x8x32xbf16>,
    %c2_i32 = arith.constant 2 : i32
    %c4_i32_82 = arith.constant 4 : i32
    %195 = arith.muli %arg0, %c4_i32_82 : i32
    %196 = arith.addi %195, %c2_i32 : i32
    %c4_i32_83 = arith.constant 4 : i32
    %197 = arith.cmpi slt, %196, %c4_i32_83 : i32
    %198 = arith.extui %197 : i1 to i32
    %199 = arith.sitofp %198 : i32 to f32
    %200 = arith.index_cast %c2_i32 : i32 to index
    %c0_84 = arith.constant 0 : index
    %c0_85 = arith.constant 0 : index
    %201 = vector.load %arg1[%200, %c0_84, %c0_85] : memref<4x8x128xf32, #tpu.memory_space<vmem>>, vector<1x8x128xf32>
    %202 = vector.shape_cast %201 : vector<1x8x128xf32> to vector<8x128xf32>
    %c0_86 = arith.constant 0 : index
    %c0_87 = arith.constant 0 : index
    %203 = vector.load %arg3[%c0_86, %c0_87] : memref<32x128xbf16, #tpu.memory_space<vmem>>, vector<32x128xbf16>
    %c0_88 = arith.constant 0 : index
    %c0_89 = arith.constant 0 : index
    %204 = vector.load %arg7[%c0_88, %c0_89] : memref<8x32xf32, #tpu.memory_space<vmem>>, vector<8x32xf32>
    %c0_90 = arith.constant 0 : index
    %c0_91 = arith.constant 0 : index
    %205 = vector.load %arg8[%c0_90, %c0_91] : memref<8x32xf32, #tpu.memory_space<vmem>>, vector<8x32xf32>
    %206 = arith.truncf %204 : vector<8x32xf32> to vector<8x32xbf16>
    %cst_92 = arith.constant dense<0.000000e+00> : vector<8x128xf32>
    %207 = tpu.matmul %206, %203, %cst_92 {dimension_numbers = #tpu.dot_dimension_numbers<[1], [0], [0], [1], [0, 0, 1, 1], [], []>} : vector<8x32xbf16>, vector<32x128xbf16>, vector<8x128xf32> -> vector<8x128xf32>
    %208 = arith.addf %202, %207 : vector<8x128xf32>
    %209 = vector.extract_strided_slice %208 {offsets = [0, 0], sizes = [8, 32], strides = [1, 1]} : vector<8x128xf32> to vector<8x32xf32>
    %210 = arith.negf %209 : vector<8x32xf32>
    %211 = math.exp %210 : vector<8x32xf32>
    %cst_93 = arith.constant 1.000000e+00 : f32
    %212 = vector.broadcast %cst_93 : f32 to vector<8x32xf32>
    %213 = arith.addf %212, %211 : vector<8x32xf32>
    %214 = arith.divf %212, %213 : vector<8x32xf32>
    %215 = vector.extract_strided_slice %208 {offsets = [0, 32], sizes = [8, 32], strides = [1, 1]} : vector<8x128xf32> to vector<8x32xf32>
    %216 = arith.negf %215 : vector<8x32xf32>
    %217 = math.exp %216 : vector<8x32xf32>
    %cst_94 = arith.constant 1.000000e+00 : f32
    %218 = vector.broadcast %cst_94 : f32 to vector<8x32xf32>
    %219 = arith.addf %218, %217 : vector<8x32xf32>
    %220 = arith.divf %218, %219 : vector<8x32xf32>
    %221 = vector.extract_strided_slice %208 {offsets = [0, 64], sizes = [8, 32], strides = [1, 1]} : vector<8x128xf32> to vector<8x32xf32>
    %222 = math.tanh %221 : vector<8x32xf32>
    %223 = vector.extract_strided_slice %208 {offsets = [0, 96], sizes = [8, 32], strides = [1, 1]} : vector<8x128xf32> to vector<8x32xf32>
    %224 = arith.negf %223 : vector<8x32xf32>
    %225 = math.exp %224 : vector<8x32xf32>
    %cst_95 = arith.constant 1.000000e+00 : f32
    %226 = vector.broadcast %cst_95 : f32 to vector<8x32xf32>
    %227 = arith.addf %226, %225 : vector<8x32xf32>
    %228 = arith.divf %226, %227 : vector<8x32xf32>
    %229 = arith.mulf %220, %205 : vector<8x32xf32>
    %230 = arith.mulf %214, %222 : vector<8x32xf32>
    %231 = arith.addf %229, %230 : vector<8x32xf32>
    %232 = vector.broadcast %199 : f32 to vector<8x32xf32>
    %233 = arith.mulf %231, %232 : vector<8x32xf32>
    %234 = math.tanh %233 : vector<8x32xf32>
    %235 = arith.mulf %228, %234 : vector<8x32xf32>
    %c0_96 = arith.constant 0 : index
    %c0_97 = arith.constant 0 : index
    %236 = vector.load %arg7[%c0_96, %c0_97] : memref<8x32xf32, #tpu.memory_space<vmem>>, vector<8x32xf32>
    tpu.vector_store %arg7[%c0_96, %c0_97], %235 {strides = array<i32>} : memref<8x32xf32, #tpu.memory_space<vmem>>, vector<8x32xf32>,
    %c0_98 = arith.constant 0 : index
    %c0_99 = arith.constant 0 : index
    %237 = vector.load %arg8[%c0_98, %c0_99] : memref<8x32xf32, #tpu.memory_space<vmem>>, vector<8x32xf32>
    tpu.vector_store %arg8[%c0_98, %c0_99], %233 {strides = array<i32>} : memref<8x32xf32, #tpu.memory_space<vmem>>, vector<8x32xf32>,
    %238 = vector.shape_cast %235 : vector<8x32xf32> to vector<1x8x32xf32>
    %239 = arith.truncf %238 : vector<1x8x32xf32> to vector<1x8x32xbf16>
    %240 = arith.index_cast %c2_i32 : i32 to index
    %c0_100 = arith.constant 0 : index
    %c0_101 = arith.constant 0 : index
    %241 = vector.load %arg5[%240, %c0_100, %c0_101] : memref<4x8x32xbf16, #tpu.memory_space<vmem>>, vector<1x8x32xbf16>
    tpu.vector_store %arg5[%240, %c0_100, %c0_101], %239 {strides = array<i32>} : memref<4x8x32xbf16, #tpu.memory_space<vmem>>, vector<1x8x32xbf16>,
    %c3_i32_102 = arith.constant 3 : i32
    %242 = arith.subi %c3_i32_102, %c2_i32 : i32
    %c4_i32_103 = arith.constant 4 : i32
    %243 = arith.muli %arg0, %c4_i32_103 : i32
    %244 = arith.addi %243, %c2_i32 : i32
    %c3_i32_104 = arith.constant 3 : i32
    %245 = arith.subi %c3_i32_104, %244 : i32
    %c4_i32_105 = arith.constant 4 : i32
    %246 = arith.cmpi slt, %245, %c4_i32_105 : i32
    %247 = arith.extui %246 : i1 to i32
    %248 = arith.sitofp %247 : i32 to f32
    %249 = arith.index_cast %242 : i32 to index
    %c0_106 = arith.constant 0 : index
    %c0_107 = arith.constant 0 : index
    %250 = vector.load %arg2[%249, %c0_106, %c0_107] : memref<4x8x128xf32, #tpu.memory_space<vmem>>, vector<1x8x128xf32>
    %251 = vector.shape_cast %250 : vector<1x8x128xf32> to vector<8x128xf32>
    %c0_108 = arith.constant 0 : index
    %c0_109 = arith.constant 0 : index
    %252 = vector.load %arg4[%c0_108, %c0_109] : memref<32x128xbf16, #tpu.memory_space<vmem>>, vector<32x128xbf16>
    %c0_110 = arith.constant 0 : index
    %c0_111 = arith.constant 0 : index
    %253 = vector.load %arg9[%c0_110, %c0_111] : memref<8x32xf32, #tpu.memory_space<vmem>>, vector<8x32xf32>
    %c0_112 = arith.constant 0 : index
    %c0_113 = arith.constant 0 : index
    %254 = vector.load %arg10[%c0_112, %c0_113] : memref<8x32xf32, #tpu.memory_space<vmem>>, vector<8x32xf32>
    %255 = arith.truncf %253 : vector<8x32xf32> to vector<8x32xbf16>
    %cst_114 = arith.constant dense<0.000000e+00> : vector<8x128xf32>
    %256 = tpu.matmul %255, %252, %cst_114 {dimension_numbers = #tpu.dot_dimension_numbers<[1], [0], [0], [1], [0, 0, 1, 1], [], []>} : vector<8x32xbf16>, vector<32x128xbf16>, vector<8x128xf32> -> vector<8x128xf32>
    %257 = arith.addf %251, %256 : vector<8x128xf32>
    %258 = vector.extract_strided_slice %257 {offsets = [0, 0], sizes = [8, 32], strides = [1, 1]} : vector<8x128xf32> to vector<8x32xf32>
    %259 = arith.negf %258 : vector<8x32xf32>
    %260 = math.exp %259 : vector<8x32xf32>
    %cst_115 = arith.constant 1.000000e+00 : f32
    %261 = vector.broadcast %cst_115 : f32 to vector<8x32xf32>
    %262 = arith.addf %261, %260 : vector<8x32xf32>
    %263 = arith.divf %261, %262 : vector<8x32xf32>
    %264 = vector.extract_strided_slice %257 {offsets = [0, 32], sizes = [8, 32], strides = [1, 1]} : vector<8x128xf32> to vector<8x32xf32>
    %265 = arith.negf %264 : vector<8x32xf32>
    %266 = math.exp %265 : vector<8x32xf32>
    %cst_116 = arith.constant 1.000000e+00 : f32
    %267 = vector.broadcast %cst_116 : f32 to vector<8x32xf32>
    %268 = arith.addf %267, %266 : vector<8x32xf32>
    %269 = arith.divf %267, %268 : vector<8x32xf32>
    %270 = vector.extract_strided_slice %257 {offsets = [0, 64], sizes = [8, 32], strides = [1, 1]} : vector<8x128xf32> to vector<8x32xf32>
    %271 = math.tanh %270 : vector<8x32xf32>
    %272 = vector.extract_strided_slice %257 {offsets = [0, 96], sizes = [8, 32], strides = [1, 1]} : vector<8x128xf32> to vector<8x32xf32>
    %273 = arith.negf %272 : vector<8x32xf32>
    %274 = math.exp %273 : vector<8x32xf32>
    %cst_117 = arith.constant 1.000000e+00 : f32
    %275 = vector.broadcast %cst_117 : f32 to vector<8x32xf32>
    %276 = arith.addf %275, %274 : vector<8x32xf32>
    %277 = arith.divf %275, %276 : vector<8x32xf32>
    %278 = arith.mulf %269, %254 : vector<8x32xf32>
    %279 = arith.mulf %263, %271 : vector<8x32xf32>
    %280 = arith.addf %278, %279 : vector<8x32xf32>
    %281 = vector.broadcast %248 : f32 to vector<8x32xf32>
    %282 = arith.mulf %280, %281 : vector<8x32xf32>
    %283 = math.tanh %282 : vector<8x32xf32>
    %284 = arith.mulf %277, %283 : vector<8x32xf32>
    %c0_118 = arith.constant 0 : index
    %c0_119 = arith.constant 0 : index
    %285 = vector.load %arg9[%c0_118, %c0_119] : memref<8x32xf32, #tpu.memory_space<vmem>>, vector<8x32xf32>
    tpu.vector_store %arg9[%c0_118, %c0_119], %284 {strides = array<i32>} : memref<8x32xf32, #tpu.memory_space<vmem>>, vector<8x32xf32>,
    %c0_120 = arith.constant 0 : index
    %c0_121 = arith.constant 0 : index
    %286 = vector.load %arg10[%c0_120, %c0_121] : memref<8x32xf32, #tpu.memory_space<vmem>>, vector<8x32xf32>
    tpu.vector_store %arg10[%c0_120, %c0_121], %282 {strides = array<i32>} : memref<8x32xf32, #tpu.memory_space<vmem>>, vector<8x32xf32>,
    %287 = vector.shape_cast %284 : vector<8x32xf32> to vector<1x8x32xf32>
    %288 = arith.truncf %287 : vector<1x8x32xf32> to vector<1x8x32xbf16>
    %289 = arith.index_cast %242 : i32 to index
    %c0_122 = arith.constant 0 : index
    %c0_123 = arith.constant 0 : index
    %290 = vector.load %arg6[%289, %c0_122, %c0_123] : memref<4x8x32xbf16, #tpu.memory_space<vmem>>, vector<1x8x32xbf16>
    tpu.vector_store %arg6[%289, %c0_122, %c0_123], %288 {strides = array<i32>} : memref<4x8x32xbf16, #tpu.memory_space<vmem>>, vector<1x8x32xbf16>,
    %c3_i32_124 = arith.constant 3 : i32
    %c4_i32_125 = arith.constant 4 : i32
    %291 = arith.muli %arg0, %c4_i32_125 : i32
    %292 = arith.addi %291, %c3_i32_124 : i32
    %c4_i32_126 = arith.constant 4 : i32
    %293 = arith.cmpi slt, %292, %c4_i32_126 : i32
    %294 = arith.extui %293 : i1 to i32
    %295 = arith.sitofp %294 : i32 to f32
    %296 = arith.index_cast %c3_i32_124 : i32 to index
    %c0_127 = arith.constant 0 : index
    %c0_128 = arith.constant 0 : index
    %297 = vector.load %arg1[%296, %c0_127, %c0_128] : memref<4x8x128xf32, #tpu.memory_space<vmem>>, vector<1x8x128xf32>
    %298 = vector.shape_cast %297 : vector<1x8x128xf32> to vector<8x128xf32>
    %c0_129 = arith.constant 0 : index
    %c0_130 = arith.constant 0 : index
    %299 = vector.load %arg3[%c0_129, %c0_130] : memref<32x128xbf16, #tpu.memory_space<vmem>>, vector<32x128xbf16>
    %c0_131 = arith.constant 0 : index
    %c0_132 = arith.constant 0 : index
    %300 = vector.load %arg7[%c0_131, %c0_132] : memref<8x32xf32, #tpu.memory_space<vmem>>, vector<8x32xf32>
    %c0_133 = arith.constant 0 : index
    %c0_134 = arith.constant 0 : index
    %301 = vector.load %arg8[%c0_133, %c0_134] : memref<8x32xf32, #tpu.memory_space<vmem>>, vector<8x32xf32>
    %302 = arith.truncf %300 : vector<8x32xf32> to vector<8x32xbf16>
    %cst_135 = arith.constant dense<0.000000e+00> : vector<8x128xf32>
    %303 = tpu.matmul %302, %299, %cst_135 {dimension_numbers = #tpu.dot_dimension_numbers<[1], [0], [0], [1], [0, 0, 1, 1], [], []>} : vector<8x32xbf16>, vector<32x128xbf16>, vector<8x128xf32> -> vector<8x128xf32>
    %304 = arith.addf %298, %303 : vector<8x128xf32>
    %305 = vector.extract_strided_slice %304 {offsets = [0, 0], sizes = [8, 32], strides = [1, 1]} : vector<8x128xf32> to vector<8x32xf32>
    %306 = arith.negf %305 : vector<8x32xf32>
    %307 = math.exp %306 : vector<8x32xf32>
    %cst_136 = arith.constant 1.000000e+00 : f32
    %308 = vector.broadcast %cst_136 : f32 to vector<8x32xf32>
    %309 = arith.addf %308, %307 : vector<8x32xf32>
    %310 = arith.divf %308, %309 : vector<8x32xf32>
    %311 = vector.extract_strided_slice %304 {offsets = [0, 32], sizes = [8, 32], strides = [1, 1]} : vector<8x128xf32> to vector<8x32xf32>
    %312 = arith.negf %311 : vector<8x32xf32>
    %313 = math.exp %312 : vector<8x32xf32>
    %cst_137 = arith.constant 1.000000e+00 : f32
    %314 = vector.broadcast %cst_137 : f32 to vector<8x32xf32>
    %315 = arith.addf %314, %313 : vector<8x32xf32>
    %316 = arith.divf %314, %315 : vector<8x32xf32>
    %317 = vector.extract_strided_slice %304 {offsets = [0, 64], sizes = [8, 32], strides = [1, 1]} : vector<8x128xf32> to vector<8x32xf32>
    %318 = math.tanh %317 : vector<8x32xf32>
    %319 = vector.extract_strided_slice %304 {offsets = [0, 96], sizes = [8, 32], strides = [1, 1]} : vector<8x128xf32> to vector<8x32xf32>
    %320 = arith.negf %319 : vector<8x32xf32>
    %321 = math.exp %320 : vector<8x32xf32>
    %cst_138 = arith.constant 1.000000e+00 : f32
    %322 = vector.broadcast %cst_138 : f32 to vector<8x32xf32>
    %323 = arith.addf %322, %321 : vector<8x32xf32>
    %324 = arith.divf %322, %323 : vector<8x32xf32>
    %325 = arith.mulf %316, %301 : vector<8x32xf32>
    %326 = arith.mulf %310, %318 : vector<8x32xf32>
    %327 = arith.addf %325, %326 : vector<8x32xf32>
    %328 = vector.broadcast %295 : f32 to vector<8x32xf32>
    %329 = arith.mulf %327, %328 : vector<8x32xf32>
    %330 = math.tanh %329 : vector<8x32xf32>
    %331 = arith.mulf %324, %330 : vector<8x32xf32>
    %c0_139 = arith.constant 0 : index
    %c0_140 = arith.constant 0 : index
    %332 = vector.load %arg7[%c0_139, %c0_140] : memref<8x32xf32, #tpu.memory_space<vmem>>, vector<8x32xf32>
    tpu.vector_store %arg7[%c0_139, %c0_140], %331 {strides = array<i32>} : memref<8x32xf32, #tpu.memory_space<vmem>>, vector<8x32xf32>,
    %c0_141 = arith.constant 0 : index
    %c0_142 = arith.constant 0 : index
    %333 = vector.load %arg8[%c0_141, %c0_142] : memref<8x32xf32, #tpu.memory_space<vmem>>, vector<8x32xf32>
    tpu.vector_store %arg8[%c0_141, %c0_142], %329 {strides = array<i32>} : memref<8x32xf32, #tpu.memory_space<vmem>>, vector<8x32xf32>,
    %334 = vector.shape_cast %331 : vector<8x32xf32> to vector<1x8x32xf32>
    %335 = arith.truncf %334 : vector<1x8x32xf32> to vector<1x8x32xbf16>
    %336 = arith.index_cast %c3_i32_124 : i32 to index
    %c0_143 = arith.constant 0 : index
    %c0_144 = arith.constant 0 : index
    %337 = vector.load %arg5[%336, %c0_143, %c0_144] : memref<4x8x32xbf16, #tpu.memory_space<vmem>>, vector<1x8x32xbf16>
    tpu.vector_store %arg5[%336, %c0_143, %c0_144], %335 {strides = array<i32>} : memref<4x8x32xbf16, #tpu.memory_space<vmem>>, vector<1x8x32xbf16>,
    %c3_i32_145 = arith.constant 3 : i32
    %338 = arith.subi %c3_i32_145, %c3_i32_124 : i32
    %c4_i32_146 = arith.constant 4 : i32
    %339 = arith.muli %arg0, %c4_i32_146 : i32
    %340 = arith.addi %339, %c3_i32_124 : i32
    %c3_i32_147 = arith.constant 3 : i32
    %341 = arith.subi %c3_i32_147, %340 : i32
    %c4_i32_148 = arith.constant 4 : i32
    %342 = arith.cmpi slt, %341, %c4_i32_148 : i32
    %343 = arith.extui %342 : i1 to i32
    %344 = arith.sitofp %343 : i32 to f32
    %345 = arith.index_cast %338 : i32 to index
    %c0_149 = arith.constant 0 : index
    %c0_150 = arith.constant 0 : index
    %346 = vector.load %arg2[%345, %c0_149, %c0_150] : memref<4x8x128xf32, #tpu.memory_space<vmem>>, vector<1x8x128xf32>
    %347 = vector.shape_cast %346 : vector<1x8x128xf32> to vector<8x128xf32>
    %c0_151 = arith.constant 0 : index
    %c0_152 = arith.constant 0 : index
    %348 = vector.load %arg4[%c0_151, %c0_152] : memref<32x128xbf16, #tpu.memory_space<vmem>>, vector<32x128xbf16>
    %c0_153 = arith.constant 0 : index
    %c0_154 = arith.constant 0 : index
    %349 = vector.load %arg9[%c0_153, %c0_154] : memref<8x32xf32, #tpu.memory_space<vmem>>, vector<8x32xf32>
    %c0_155 = arith.constant 0 : index
    %c0_156 = arith.constant 0 : index
    %350 = vector.load %arg10[%c0_155, %c0_156] : memref<8x32xf32, #tpu.memory_space<vmem>>, vector<8x32xf32>
    %351 = arith.truncf %349 : vector<8x32xf32> to vector<8x32xbf16>
    %cst_157 = arith.constant dense<0.000000e+00> : vector<8x128xf32>
    %352 = tpu.matmul %351, %348, %cst_157 {dimension_numbers = #tpu.dot_dimension_numbers<[1], [0], [0], [1], [0, 0, 1, 1], [], []>} : vector<8x32xbf16>, vector<32x128xbf16>, vector<8x128xf32> -> vector<8x128xf32>
    %353 = arith.addf %347, %352 : vector<8x128xf32>
    %354 = vector.extract_strided_slice %353 {offsets = [0, 0], sizes = [8, 32], strides = [1, 1]} : vector<8x128xf32> to vector<8x32xf32>
    %355 = arith.negf %354 : vector<8x32xf32>
    %356 = math.exp %355 : vector<8x32xf32>
    %cst_158 = arith.constant 1.000000e+00 : f32
    %357 = vector.broadcast %cst_158 : f32 to vector<8x32xf32>
    %358 = arith.addf %357, %356 : vector<8x32xf32>
    %359 = arith.divf %357, %358 : vector<8x32xf32>
    %360 = vector.extract_strided_slice %353 {offsets = [0, 32], sizes = [8, 32], strides = [1, 1]} : vector<8x128xf32> to vector<8x32xf32>
    %361 = arith.negf %360 : vector<8x32xf32>
    %362 = math.exp %361 : vector<8x32xf32>
    %cst_159 = arith.constant 1.000000e+00 : f32
    %363 = vector.broadcast %cst_159 : f32 to vector<8x32xf32>
    %364 = arith.addf %363, %362 : vector<8x32xf32>
    %365 = arith.divf %363, %364 : vector<8x32xf32>
    %366 = vector.extract_strided_slice %353 {offsets = [0, 64], sizes = [8, 32], strides = [1, 1]} : vector<8x128xf32> to vector<8x32xf32>
    %367 = math.tanh %366 : vector<8x32xf32>
    %368 = vector.extract_strided_slice %353 {offsets = [0, 96], sizes = [8, 32], strides = [1, 1]} : vector<8x128xf32> to vector<8x32xf32>
    %369 = arith.negf %368 : vector<8x32xf32>
    %370 = math.exp %369 : vector<8x32xf32>
    %cst_160 = arith.constant 1.000000e+00 : f32
    %371 = vector.broadcast %cst_160 : f32 to vector<8x32xf32>
    %372 = arith.addf %371, %370 : vector<8x32xf32>
    %373 = arith.divf %371, %372 : vector<8x32xf32>
    %374 = arith.mulf %365, %350 : vector<8x32xf32>
    %375 = arith.mulf %359, %367 : vector<8x32xf32>
    %376 = arith.addf %374, %375 : vector<8x32xf32>
    %377 = vector.broadcast %344 : f32 to vector<8x32xf32>
    %378 = arith.mulf %376, %377 : vector<8x32xf32>
    %379 = math.tanh %378 : vector<8x32xf32>
    %380 = arith.mulf %373, %379 : vector<8x32xf32>
    %c0_161 = arith.constant 0 : index
    %c0_162 = arith.constant 0 : index
    %381 = vector.load %arg9[%c0_161, %c0_162] : memref<8x32xf32, #tpu.memory_space<vmem>>, vector<8x32xf32>
    tpu.vector_store %arg9[%c0_161, %c0_162], %380 {strides = array<i32>} : memref<8x32xf32, #tpu.memory_space<vmem>>, vector<8x32xf32>,
    %c0_163 = arith.constant 0 : index
    %c0_164 = arith.constant 0 : index
    %382 = vector.load %arg10[%c0_163, %c0_164] : memref<8x32xf32, #tpu.memory_space<vmem>>, vector<8x32xf32>
    tpu.vector_store %arg10[%c0_163, %c0_164], %378 {strides = array<i32>} : memref<8x32xf32, #tpu.memory_space<vmem>>, vector<8x32xf32>,
    %383 = vector.shape_cast %380 : vector<8x32xf32> to vector<1x8x32xf32>
    %384 = arith.truncf %383 : vector<1x8x32xf32> to vector<1x8x32xbf16>
    %385 = arith.index_cast %338 : i32 to index
    %c0_165 = arith.constant 0 : index
    %c0_166 = arith.constant 0 : index
    %386 = vector.load %arg6[%385, %c0_165, %c0_166] : memref<4x8x32xbf16, #tpu.memory_space<vmem>>, vector<1x8x32xbf16>
    tpu.vector_store %arg6[%385, %c0_165, %c0_166], %384 {strides = array<i32>} : memref<4x8x32xbf16, #tpu.memory_space<vmem>>, vector<1x8x32xbf16>,
    %c4_i32_167 = arith.constant 4 : i32
    return
  }
  func.func @transform_0(%arg0: i32) -> (i32, i32, i32) {
    %c0_i32 = arith.constant 0 : i32
    %c0_i32_0 = arith.constant 0 : i32
    %c0_i32_1 = arith.constant 0 : i32
    return %arg0, %c0_i32, %c0_i32_0 : i32, i32, i32
  }
  func.func @transform_1(%arg0: i32) -> (i32, i32, i32) {
    %c0_i32 = arith.constant 0 : i32
    %0 = arith.subi %c0_i32, %arg0 : i32
    %c0_i32_0 = arith.constant 0 : i32
    %c1_i32 = arith.constant 1 : i32
    %c0_i32_1 = arith.constant 0 : i32
    return %0, %c0_i32_0, %c1_i32 : i32, i32, i32
  }
  func.func @transform_2(%arg0: i32) -> (i32, i32) {
    %c0_i32 = arith.constant 0 : i32
    %c0_i32_0 = arith.constant 0 : i32
    %c0_i32_1 = arith.constant 0 : i32
    return %c0_i32, %c0_i32_0 : i32, i32
  }
  func.func @transform_3(%arg0: i32) -> (i32, i32) {
    %c0_i32 = arith.constant 0 : i32
    %c0_i32_0 = arith.constant 0 : i32
    %c0_i32_1 = arith.constant 0 : i32
    return %c0_i32, %c0_i32_0 : i32, i32
  }
  func.func @transform_4(%arg0: i32) -> (i32, i32, i32) {
    %c0_i32 = arith.constant 0 : i32
    %c0_i32_0 = arith.constant 0 : i32
    %c0_i32_1 = arith.constant 0 : i32
    return %arg0, %c0_i32, %c0_i32_0 : i32, i32, i32
  }
  func.func @transform_5(%arg0: i32) -> (i32, i32, i32) {
    %c0_i32 = arith.constant 0 : i32
    %0 = arith.subi %c0_i32, %arg0 : i32
    %c0_i32_0 = arith.constant 0 : i32
    %c0_i32_1 = arith.constant 0 : i32
    %c0_i32_2 = arith.constant 0 : i32
    return %0, %c0_i32_0, %c0_i32_1 : i32, i32, i32
  }
}

module attributes {stable_mosaic.version = 11 : i64} {
  func.func @kernel(%arg0: i32, %arg1: i32, %arg2: i32, %arg3: memref<1x32x32xbf16, #tpu.memory_space<vmem>>, %arg4: memref<1x32x128xbf16, #tpu.memory_space<vmem>>, %arg5: memref<1x128xf32, #tpu.memory_space<vmem>>, %arg6: memref<32x128xf32, #tpu.memory_space<vmem>>, %arg7: memref<32x128xf32, #tpu.memory_space<vmem>>) attributes {dimension_semantics = [#tpu.dimension_semantics<parallel>, #tpu.dimension_semantics<parallel>, #tpu.dimension_semantics<arbitrary>], iteration_bounds = array<i64: 1, 1, 2>, scalar_prefetch = 0 : i64, scratch_operands = 1 : i64, tpu.core_type = #tpu.core_type<tc>, window_params = [{transform_indices = @transform_0, window_bounds = array<i64: 1, 32, 32>}, {transform_indices = @transform_1, window_bounds = array<i64: 1, 32, 128>}, {transform_indices = @transform_2, window_bounds = array<i64: 1, 128>}, {transform_indices = @transform_3, window_bounds = array<i64: 32, 128>}]} {
    %c0_i32 = arith.constant 0 : i32
    %0 = arith.cmpi eq, %arg2, %c0_i32 : i32
    %1 = arith.extui %0 : i1 to i32
    %c0_i32_0 = arith.constant 0 : i32
    %2 = arith.cmpi ne, %1, %c0_i32_0 : i32
    scf.if %2 {
      %cst_11 = arith.constant 0.000000e+00 : f32
      %14 = vector.broadcast %cst_11 : f32 to vector<32x128xf32>
      %c0_12 = arith.constant 0 : index
      %c0_13 = arith.constant 0 : index
      %15 = vector.load %arg7[%c0_12, %c0_13] : memref<32x128xf32, #tpu.memory_space<vmem>>, vector<32x128xf32>
      tpu.vector_store %arg7[%c0_12, %c0_13], %14 {strides = array<i32>} : memref<32x128xf32, #tpu.memory_space<vmem>>, vector<32x128xf32>,
    } else {
    }
    %c0 = arith.constant 0 : index
    %c0_1 = arith.constant 0 : index
    %3 = vector.load %arg7[%c0, %c0_1] : memref<32x128xf32, #tpu.memory_space<vmem>>, vector<32x128xf32>
    %c0_2 = arith.constant 0 : index
    %c0_3 = arith.constant 0 : index
    %c0_4 = arith.constant 0 : index
    %4 = vector.load %arg3[%c0_2, %c0_3, %c0_4] : memref<1x32x32xbf16, #tpu.memory_space<vmem>>, vector<1x32x32xbf16>
    %5 = vector.shape_cast %4 : vector<1x32x32xbf16> to vector<32x32xbf16>
    %c0_5 = arith.constant 0 : index
    %c0_6 = arith.constant 0 : index
    %c0_7 = arith.constant 0 : index
    %6 = vector.load %arg4[%c0_5, %c0_6, %c0_7] : memref<1x32x128xbf16, #tpu.memory_space<vmem>>, vector<1x32x128xbf16>
    %7 = vector.shape_cast %6 : vector<1x32x128xbf16> to vector<32x128xbf16>
    %cst = arith.constant dense<0.000000e+00> : vector<32x128xf32>
    %8 = tpu.matmul %5, %7, %cst {dimension_numbers = #tpu.dot_dimension_numbers<[1], [0], [0], [1], [0, 0, 1, 1], [], []>} : vector<32x32xbf16>, vector<32x128xbf16>, vector<32x128xf32> -> vector<32x128xf32>
    %9 = arith.addf %3, %8 : vector<32x128xf32>
    %c0_8 = arith.constant 0 : index
    %c0_9 = arith.constant 0 : index
    %10 = vector.load %arg7[%c0_8, %c0_9] : memref<32x128xf32, #tpu.memory_space<vmem>>, vector<32x128xf32>
    tpu.vector_store %arg7[%c0_8, %c0_9], %9 {strides = array<i32>} : memref<32x128xf32, #tpu.memory_space<vmem>>, vector<32x128xf32>,
    %c1_i32 = arith.constant 1 : i32
    %11 = arith.cmpi eq, %arg2, %c1_i32 : i32
    %12 = arith.extui %11 : i1 to i32
    %c0_i32_10 = arith.constant 0 : i32
    %13 = arith.cmpi ne, %12, %c0_i32_10 : i32
    scf.if %13 {
      %c0_11 = arith.constant 0 : index
      %c0_12 = arith.constant 0 : index
      %14 = vector.load %arg7[%c0_11, %c0_12] : memref<32x128xf32, #tpu.memory_space<vmem>>, vector<32x128xf32>
      %c0_13 = arith.constant 0 : index
      %c0_14 = arith.constant 0 : index
      %15 = vector.load %arg5[%c0_13, %c0_14] : memref<1x128xf32, #tpu.memory_space<vmem>>, vector<1x128xf32>
      %16 = vector.broadcast %15 : vector<1x128xf32> to vector<32x128xf32>
      %17 = arith.addf %14, %16 : vector<32x128xf32>
      %18 = tpu.iota {dimensions = array<i32: 1>} : vector<32x128xi32>
      %c16_i32 = arith.constant 16 : i32
      %19 = vector.broadcast %c16_i32 : i32 to vector<32x128xi32>
      %20 = arith.cmpi slt, %18, %19 : vector<32x128xi32>
      %cst_15 = arith.constant -1.000000e+30 : f32
      %21 = vector.broadcast %cst_15 : f32 to vector<32x128xf32>
      %22 = arith.select %20, %17, %21 : vector<32x128xi1>, vector<32x128xf32>
      %cst_16 = arith.constant dense<0xFF800000> : vector<32xf32>
      %23 = vector.multi_reduction <maximumf>, %22, %cst_16 [1] : vector<32x128xf32> to vector<32xf32>
      %24 = vector.shape_cast %23 : vector<32xf32> to vector<32x1xf32>
      %25 = vector.broadcast %24 : vector<32x1xf32> to vector<32x128xf32>
      %26 = arith.subf %22, %25 : vector<32x128xf32>
      %27 = math.exp %26 : vector<32x128xf32>
      %cst_17 = arith.constant dense<0.000000e+00> : vector<32xf32>
      %28 = vector.multi_reduction <add>, %27, %cst_17 [1] : vector<32x128xf32> to vector<32xf32>
      %29 = vector.shape_cast %28 : vector<32xf32> to vector<32x1xf32>
      %30 = math.log %29 : vector<32x1xf32>
      %31 = vector.broadcast %30 : vector<32x1xf32> to vector<32x128xf32>
      %32 = arith.subf %26, %31 : vector<32x128xf32>
      %c0_18 = arith.constant 0 : index
      %c0_19 = arith.constant 0 : index
      %33 = vector.load %arg6[%c0_18, %c0_19] : memref<32x128xf32, #tpu.memory_space<vmem>>, vector<32x128xf32>
      tpu.vector_store %arg6[%c0_18, %c0_19], %32 {strides = array<i32>} : memref<32x128xf32, #tpu.memory_space<vmem>>, vector<32x128xf32>,
    } else {
    }
    return
  }
  func.func @transform_0(%arg0: i32, %arg1: i32, %arg2: i32) -> (i32, i32, i32) {
    %c0_i32 = arith.constant 0 : i32
    %c0_i32_0 = arith.constant 0 : i32
    return %arg2, %arg0, %c0_i32 : i32, i32, i32
  }
  func.func @transform_1(%arg0: i32, %arg1: i32, %arg2: i32) -> (i32, i32, i32) {
    %c0_i32 = arith.constant 0 : i32
    %c0_i32_0 = arith.constant 0 : i32
    return %arg2, %c0_i32, %arg1 : i32, i32, i32
  }
  func.func @transform_2(%arg0: i32, %arg1: i32, %arg2: i32) -> (i32, i32) {
    %c0_i32 = arith.constant 0 : i32
    %c0_i32_0 = arith.constant 0 : i32
    return %c0_i32, %arg1 : i32, i32
  }
  func.func @transform_3(%arg0: i32, %arg1: i32, %arg2: i32) -> (i32, i32) {
    %c0_i32 = arith.constant 0 : i32
    return %arg0, %arg1 : i32, i32
  }
}

module attributes {stable_mosaic.version = 11 : i64} {
  func.func @kernel(%arg0: i32, %arg1: i32, %arg2: i32, %arg3: memref<1x32x32xbf16, #tpu.memory_space<vmem>>, %arg4: memref<1x32x256xbf16, #tpu.memory_space<vmem>>, %arg5: memref<1x256xf32, #tpu.memory_space<vmem>>, %arg6: memref<32x256xf32, #tpu.memory_space<vmem>>, %arg7: memref<32x256xf32, #tpu.memory_space<vmem>>) attributes {dimension_semantics = [#tpu.dimension_semantics<parallel>, #tpu.dimension_semantics<parallel>, #tpu.dimension_semantics<arbitrary>], iteration_bounds = array<i64: 1, 1, 2>, scalar_prefetch = 0 : i64, scratch_operands = 1 : i64, tpu.core_type = #tpu.core_type<tc>, window_params = [{transform_indices = @transform_0, window_bounds = array<i64: 1, 32, 32>}, {transform_indices = @transform_1, window_bounds = array<i64: 1, 32, 256>}, {transform_indices = @transform_2, window_bounds = array<i64: 1, 256>}, {transform_indices = @transform_3, window_bounds = array<i64: 32, 256>}]} {
    %c0_i32 = arith.constant 0 : i32
    %0 = arith.cmpi eq, %arg2, %c0_i32 : i32
    %1 = arith.extui %0 : i1 to i32
    %c0_i32_0 = arith.constant 0 : i32
    %2 = arith.cmpi ne, %1, %c0_i32_0 : i32
    scf.if %2 {
      %cst_11 = arith.constant 0.000000e+00 : f32
      %14 = vector.broadcast %cst_11 : f32 to vector<32x256xf32>
      %c0_12 = arith.constant 0 : index
      %c0_13 = arith.constant 0 : index
      %15 = vector.load %arg7[%c0_12, %c0_13] : memref<32x256xf32, #tpu.memory_space<vmem>>, vector<32x256xf32>
      tpu.vector_store %arg7[%c0_12, %c0_13], %14 {strides = array<i32>} : memref<32x256xf32, #tpu.memory_space<vmem>>, vector<32x256xf32>,
    } else {
    }
    %c0 = arith.constant 0 : index
    %c0_1 = arith.constant 0 : index
    %3 = vector.load %arg7[%c0, %c0_1] : memref<32x256xf32, #tpu.memory_space<vmem>>, vector<32x256xf32>
    %c0_2 = arith.constant 0 : index
    %c0_3 = arith.constant 0 : index
    %c0_4 = arith.constant 0 : index
    %4 = vector.load %arg3[%c0_2, %c0_3, %c0_4] : memref<1x32x32xbf16, #tpu.memory_space<vmem>>, vector<1x32x32xbf16>
    %5 = vector.shape_cast %4 : vector<1x32x32xbf16> to vector<32x32xbf16>
    %c0_5 = arith.constant 0 : index
    %c0_6 = arith.constant 0 : index
    %c0_7 = arith.constant 0 : index
    %6 = vector.load %arg4[%c0_5, %c0_6, %c0_7] : memref<1x32x256xbf16, #tpu.memory_space<vmem>>, vector<1x32x256xbf16>
    %7 = vector.shape_cast %6 : vector<1x32x256xbf16> to vector<32x256xbf16>
    %cst = arith.constant dense<0.000000e+00> : vector<32x256xf32>
    %8 = tpu.matmul %5, %7, %cst {dimension_numbers = #tpu.dot_dimension_numbers<[1], [0], [0], [1], [0, 0, 1, 1], [], []>} : vector<32x32xbf16>, vector<32x256xbf16>, vector<32x256xf32> -> vector<32x256xf32>
    %9 = arith.addf %3, %8 : vector<32x256xf32>
    %c0_8 = arith.constant 0 : index
    %c0_9 = arith.constant 0 : index
    %10 = vector.load %arg7[%c0_8, %c0_9] : memref<32x256xf32, #tpu.memory_space<vmem>>, vector<32x256xf32>
    tpu.vector_store %arg7[%c0_8, %c0_9], %9 {strides = array<i32>} : memref<32x256xf32, #tpu.memory_space<vmem>>, vector<32x256xf32>,
    %c1_i32 = arith.constant 1 : i32
    %11 = arith.cmpi eq, %arg2, %c1_i32 : i32
    %12 = arith.extui %11 : i1 to i32
    %c0_i32_10 = arith.constant 0 : i32
    %13 = arith.cmpi ne, %12, %c0_i32_10 : i32
    scf.if %13 {
      %c0_11 = arith.constant 0 : index
      %c0_12 = arith.constant 0 : index
      %14 = vector.load %arg7[%c0_11, %c0_12] : memref<32x256xf32, #tpu.memory_space<vmem>>, vector<32x256xf32>
      %c0_13 = arith.constant 0 : index
      %c0_14 = arith.constant 0 : index
      %15 = vector.load %arg5[%c0_13, %c0_14] : memref<1x256xf32, #tpu.memory_space<vmem>>, vector<1x256xf32>
      %16 = vector.broadcast %15 : vector<1x256xf32> to vector<32x256xf32>
      %17 = arith.addf %14, %16 : vector<32x256xf32>
      %c0_15 = arith.constant 0 : index
      %c0_16 = arith.constant 0 : index
      %18 = vector.load %arg6[%c0_15, %c0_16] : memref<32x256xf32, #tpu.memory_space<vmem>>, vector<32x256xf32>
      tpu.vector_store %arg6[%c0_15, %c0_16], %17 {strides = array<i32>} : memref<32x256xf32, #tpu.memory_space<vmem>>, vector<32x256xf32>,
    } else {
    }
    return
  }
  func.func @transform_0(%arg0: i32, %arg1: i32, %arg2: i32) -> (i32, i32, i32) {
    %c0_i32 = arith.constant 0 : i32
    %c0_i32_0 = arith.constant 0 : i32
    return %arg2, %arg0, %c0_i32 : i32, i32, i32
  }
  func.func @transform_1(%arg0: i32, %arg1: i32, %arg2: i32) -> (i32, i32, i32) {
    %c0_i32 = arith.constant 0 : i32
    %c0_i32_0 = arith.constant 0 : i32
    return %arg2, %c0_i32, %arg1 : i32, i32, i32
  }
  func.func @transform_2(%arg0: i32, %arg1: i32, %arg2: i32) -> (i32, i32) {
    %c0_i32 = arith.constant 0 : i32
    %c0_i32_0 = arith.constant 0 : i32
    return %c0_i32, %arg1 : i32, i32
  }
  func.func @transform_3(%arg0: i32, %arg1: i32, %arg2: i32) -> (i32, i32) {
    %c0_i32 = arith.constant 0 : i32
    return %arg0, %arg1 : i32, i32
  }
}

</mosaic_0001>

<llo_original>
// kernel: _lambda_.9
$region0: #{_lambda_.9}
  #allocation0 [shape = 'u32[]', space=smem, size = 0x4, offset = 0x4, fixed_abs, tag = 'smem constant byte address 0x4 - core index']
  #allocation1 [shape = 'u32[144,128]{1,0:T(1,128)}', space=vmem, size = 0x12000, scoped, tag = 'internal scratch']
  #allocation2 [shape = 'f32[128,128]{1,0:T(8,128)}', space=vmem, size = 0x10000, scoped, tag = 'scratch operand']
  %s0 = inlined_call_operand.vmem [shape: bf16[1,128,9], index: 0, kind: input, shape index: {}]
  %s1 = inlined_call_operand.vmem [shape: bf16[1,9,128], index: 1, kind: input, shape index: {}]
  %s2 = inlined_call_operand.vmem [shape: f32[1,128], index: 2, kind: input, shape index: {}]
  %s3 = inlined_call_operand.vmem [shape: f32[1,128], index: 3, kind: input, shape index: {}]
  %s4 = inlined_call_operand.vmem [shape: f32[1,128], index: 4, kind: input, shape index: {}]
  %s5 = inlined_call_operand.vmem [shape: bf16[128,128], index: 5, kind: output, shape index: {}]
  %s6 = sld [smem:[#allocation0]]
  $region38: #{_lambda_.9} parent=0
    _
  %s8 = ssub.s32 1, %s6
  %s9 = scalar_select 0, %s8, %s6
  // Predicated region
  $region2: #{_lambda_.9} parent=0 // pred_check
    _
  $region3: #{_lambda_.9} parent=0 // pred_check_branch
    %11 = sbr.rel (0) target = $region5
  $region4: #{_lambda_.9} parent=0 // pred_region
    _
  $region5: #{_lambda_.9} parent=0 // pred_fallthru
    _
  // Predicated region
  $region6: #{_lambda_.9} parent=0 // pred_check
    _
  $region7: #{_lambda_.9} parent=0 // pred_check_branch
    %13 = sbr.rel (0) target = $region9
  $region8: #{_lambda_.9} parent=0 // pred_region
    _
  $region9: #{_lambda_.9} parent=0 // pred_fallthru
    _
  // Predicated region
  $region10: #{_lambda_.9} parent=0 // pred_check
    _
  $region11: #{_lambda_.9} parent=0 // pred_check_branch
    %15 = sbr.rel (0) target = $region13
  $region12: #{_lambda_.9} parent=0 // pred_region
    _
  $region13: #{_lambda_.9} parent=0 // pred_fallthru
    _
  // Predicated region
  $region14: #{_lambda_.9} parent=0 // pred_check
    _
  $region15: #{_lambda_.9} parent=0 // pred_check_branch
    %17 = sbr.rel (0) target = $region17
  $region16: #{_lambda_.9} parent=0 // pred_region
    _
  $region17: #{_lambda_.9} parent=0 // pred_fallthru
    _
  // Predicated region
  $region18: #{_lambda_.9} parent=0 // pred_check
    _
  $region19: #{_lambda_.9} parent=0 // pred_check_branch
    %19 = sbr.rel (0) target = $region21
  $region20: #{_lambda_.9} parent=0 // pred_region
    _
  $region21: #{_lambda_.9} parent=0 // pred_fallthru
    _
  %p21 = scmp.eq.s32.totalorder 0, 0
  // Predicated region
  $region22: #{_lambda_.9} parent=0 // pred_check
    %p22 = pneg %p21
  $region23: #{_lambda_.9} parent=0 // pred_check_branch
    %24 = sbr.rel (%p22) target = $region25
  $region24: #{_lambda_.9} parent=0 // pred_region
    %25 = vst [vmem:[#allocation2] sm:$0xff] 0.0
    %26 = vst [vmem:[#allocation2 + $0x8] sm:$0xff] 0.0
    %27 = vst [vmem:[#allocation2 + $0x10] sm:$0xff] 0.0
    %28 = vst [vmem:[#allocation2 + $0x18] sm:$0xff] 0.0
    %29 = vst [vmem:[#allocation2 + $0x20] sm:$0xff] 0.0
    %30 = vst [vmem:[#allocation2 + $0x28] sm:$0xff] 0.0
    %31 = vst [vmem:[#allocation2 + $0x30] sm:$0xff] 0.0
    %32 = vst [vmem:[#allocation2 + $0x38] sm:$0xff] 0.0
    %33 = vst [vmem:[#allocation2 + $0x40] sm:$0xff] 0.0
    %34 = vst [vmem:[#allocation2 + $0x48] sm:$0xff] 0.0
    %35 = vst [vmem:[#allocation2 + $0x50] sm:$0xff] 0.0
    %36 = vst [vmem:[#allocation2 + $0x58] sm:$0xff] 0.0
    %37 = vst [vmem:[#allocation2 + $0x60] sm:$0xff] 0.0
    %38 = vst [vmem:[#allocation2 + $0x68] sm:$0xff] 0.0
    %39 = vst [vmem:[#allocation2 + $0x70] sm:$0xff] 0.0
    %40 = vst [vmem:[#allocation2 + $0x78] sm:$0xff] 0.0
  $region25: #{_lambda_.9} parent=0 // pred_fallthru
    _
  %v41 = vld [vmem:[#allocation2] sm:$0xff]
  %v42 = vld [vmem:[#allocation2 + $0x8] sm:$0xff]
  %v43 = vld [vmem:[#allocation2 + $0x10] sm:$0xff]
  %v44 = vld [vmem:[#allocation2 + $0x18] sm:$0xff]
  %v45 = vld [vmem:[#allocation2 + $0x20] sm:$0xff]
  %v46 = vld [vmem:[#allocation2 + $0x28] sm:$0xff]
  %v47 = vld [vmem:[#allocation2 + $0x30] sm:$0xff]
  %v48 = vld [vmem:[#allocation2 + $0x38] sm:$0xff]
  %v49 = vld [vmem:[#allocation2 + $0x40] sm:$0xff]
  %v50 = vld [vmem:[#allocation2 + $0x48] sm:$0xff]
  %v51 = vld [vmem:[#allocation2 + $0x50] sm:$0xff]
  %v52 = vld [vmem:[#allocation2 + $0x58] sm:$0xff]
  %v53 = vld [vmem:[#allocation2 + $0x60] sm:$0xff]
  %v54 = vld [vmem:[#allocation2 + $0x68] sm:$0xff]
  %v55 = vld [vmem:[#allocation2 + $0x70] sm:$0xff]
  %v56 = vld [vmem:[#allocation2 + $0x78] sm:$0xff]
  %v57 = vld [vmem:[%s0] sm:$0xf]
  %v58 = vld [vmem:[%s0 + $0x4] sm:$0xf]
  %v59 = vld [vmem:[%s0 + $0x8] sm:$0xf]
  %v60 = vld [vmem:[%s0 + $0xc] sm:$0xf]
  %v61 = vld [vmem:[%s0 + $0x10] sm:$0xf]
  %v62 = vld [vmem:[%s0 + $0x14] sm:$0xf]
  %v63 = vld [vmem:[%s0 + $0x18] sm:$0xf]
  %v64 = vld [vmem:[%s0 + $0x1c] sm:$0xf]
  %v65 = vld [vmem:[%s0 + $0x20] sm:$0xf]
  %v66 = vld [vmem:[%s0 + $0x24] sm:$0xf]
  %v67 = vld [vmem:[%s0 + $0x28] sm:$0xf]
  %v68 = vld [vmem:[%s0 + $0x2c] sm:$0xf]
  %v69 = vld [vmem:[%s0 + $0x30] sm:$0xf]
  %v70 = vld [vmem:[%s0 + $0x34] sm:$0xf]
  %v71 = vld [vmem:[%s0 + $0x38] sm:$0xf]
  %v72 = vld [vmem:[%s0 + $0x3c] sm:$0xf]
  %v73 = vld [vmem:[%s1] sm:$0xf]
  %v74 = vld [vmem:[%s1 + $0x4] sm:$0x1]
  %v91 = vunpack.c.l.b16 %v57
  %v92 = vunpack.c.l.b16 %v58
  %v93 = vunpack.c.l.b16 %v59
  %v94 = vunpack.c.l.b16 %v60
  %v95 = vunpack.c.l.b16 %v61
  %v96 = vunpack.c.l.b16 %v62
  %v97 = vunpack.c.l.b16 %v63
  %v98 = vunpack.c.l.b16 %v64
  %v99 = vunpack.c.l.b16 %v65
  %v100 = vunpack.c.l.b16 %v66
  %v101 = vunpack.c.l.b16 %v67
  %v102 = vunpack.c.l.b16 %v68
  %v103 = vunpack.c.l.b16 %v69
  %v104 = vunpack.c.l.b16 %v70
  %v105 = vunpack.c.l.b16 %v71
  %v106 = vunpack.c.l.b16 %v72
  %v107 = vpack.c.b16 %v92, %v91
  %v108 = vpack.c.b16 %v94, %v93
  %v109 = vpack.c.b16 %v96, %v95
  %v110 = vpack.c.b16 %v98, %v97
  %v111 = vpack.c.b16 %v100, %v99
  %v112 = vpack.c.b16 %v102, %v101
  %v113 = vpack.c.b16 %v104, %v103
  %v114 = vpack.c.b16 %v106, %v105
  %v117 = vunpack.c.l.b16 %v73
  %v118 = vunpack.c.l.b16 %v74
  %v119 = vpack.c.b16 %v118, %v117
  %vm120 = vcmask 72704
  %v122 = vsel %vm120, %v107, 0
  %v125 = vsel %vm120, %v108, 0
  %v128 = vsel %vm120, %v109, 0
  %v131 = vsel %vm120, %v110, 0
  %v134 = vsel %vm120, %v111, 0
  %v137 = vsel %vm120, %v112, 0
  %v140 = vsel %vm120, %v113, 0
  %v143 = vsel %vm120, %v114, 0
  %vm145 = vcmask 1043456
  %vm146 = vcmask 1044480
  %v147 = vsel %vm145, 4294967295, 65535
  %v148 = vsel %vm146, %v147, 0
  %v150 = vand.u32 %v119, %v148
  %152 = vmatprep.subr.bf16.mxu0 0
  %153 = vmatpush1.bf16.msra.mxu0 %v150
  %154 = vmatprep.subr.bf16.mxu0 0
  %155 = vmatpush1.bf16.msra.mxu0 0
  %156 = vmatprep.subr.bf16.mxu0 0
  %157 = vmatpush1.bf16.msra.mxu0 0
  %158 = vmatprep.subr.bf16.mxu0 0
  %159 = vmatpush1.bf16.msra.mxu0 0
  %160 = vmatprep.subr.bf16.mxu0 0
  %161 = vmatpush1.bf16.msra.mxu0 0
  %162 = vmatprep.subr.bf16.mxu0 0
  %163 = vmatpush1.bf16.msra.mxu0 0
  %164 = vmatprep.subr.bf16.mxu0 0
  %165 = vmatpush1.bf16.msra.mxu0 0
  %166 = vmatprep.subr.bf16.mxu0 0
  %167 = vmatpush1.bf16.msra.mxu0 0
  %168 = vmatprep.subr.bf16.mxu0 0
  %169 = vmatpush1.bf16.msra.mxu0 0
  %170 = vmatprep.subr.bf16.mxu0 0
  %171 = vmatpush1.bf16.msra.mxu0 0
  %172 = vmatprep.subr.bf16.mxu0 0
  %173 = vmatpush1.bf16.msra.mxu0 0
  %174 = vmatprep.subr.bf16.mxu0 0
  %175 = vmatpush1.bf16.msra.mxu0 0
  %176 = vmatprep.subr.bf16.mxu0 0
  %177 = vmatpush1.bf16.msra.mxu0 0
  %178 = vmatprep.subr.bf16.mxu0 0
  %179 = vmatpush1.bf16.msra.mxu0 0
  %180 = vmatprep.subr.bf16.mxu0 0
  %181 = vmatpush1.bf16.msra.mxu0 0
  %182 = vmatprep.subr.bf16.mxu0 0
  %183 = vmatpush1.bf16.msra.mxu0 0
  %184 = vmatprep.mubr.bf16.mxu0 0
  %185 = vmatmul.mubr.bf16.gmra.mrb[0].mxu0 %v122
  %v186 = vpop.f32.mrb[0].mxu0
  %v187 = vadd.f32 0.0, %v186
  %v188 = vpop.f32.mrb[0].mxu0
  %v189 = vpop.f32.mrb[0].mxu0
  %v190 = vadd.f32 0.0, %v189
  %v191 = vpop.f32.mrb[0].mxu0
  %192 = vmatprep.mubr.bf16.mxu0 0
  %193 = vmatmul.mubr.bf16.gmra.mrb[0].mxu0 %v125
  %v194 = vpop.f32.mrb[0].mxu0
  %v195 = vadd.f32 0.0, %v194
  %v196 = vpop.f32.mrb[0].mxu0
  %v197 = vpop.f32.mrb[0].mxu0
  %v198 = vadd.f32 0.0, %v197
  %v199 = vpop.f32.mrb[0].mxu0
  %200 = vmatprep.mubr.bf16.mxu0 0
  %201 = vmatmul.mubr.bf16.gmra.mrb[0].mxu0 %v128
  %v202 = vpop.f32.mrb[0].mxu0
  %v203 = vadd.f32 0.0, %v202
  %v204 = vpop.f32.mrb[0].mxu0
  %v205 = vpop.f32.mrb[0].mxu0
  %v206 = vadd.f32 0.0, %v205
  %v207 = vpop.f32.mrb[0].mxu0
  %208 = vmatprep.mubr.bf16.mxu0 0
  %209 = vmatmul.mubr.bf16.gmra.mrb[0].mxu0 %v131
  %v210 = vpop.f32.mrb[0].mxu0
  %v211 = vadd.f32 0.0, %v210
  %v212 = vpop.f32.mrb[0].mxu0
  %v213 = vpop.f32.mrb[0].mxu0
  %v214 = vadd.f32 0.0, %v213
  %v215 = vpop.f32.mrb[0].mxu0
  %216 = vmatprep.mubr.bf16.mxu0 0
  %217 = vmatmul.mubr.bf16.gmra.mrb[0].mxu0 %v134
  %v218 = vpop.f32.mrb[0].mxu0
  %v219 = vadd.f32 0.0, %v218
  %v220 = vpop.f32.mrb[0].mxu0
  %v221 = vpop.f32.mrb[0].mxu0
  %v222 = vadd.f32 0.0, %v221
  %v223 = vpop.f32.mrb[0].mxu0
  %224 = vmatprep.mubr.bf16.mxu0 0
  %225 = vmatmul.mubr.bf16.gmra.mrb[0].mxu0 %v137
  %v226 = vpop.f32.mrb[0].mxu0
  %v227 = vadd.f32 0.0, %v226
  %v228 = vpop.f32.mrb[0].mxu0
  %v229 = vpop.f32.mrb[0].mxu0
  %v230 = vadd.f32 0.0, %v229
  %v231 = vpop.f32.mrb[0].mxu0
  %232 = vmatprep.mubr.bf16.mxu0 0
  %233 = vmatmul.mubr.bf16.gmra.mrb[0].mxu0 %v140
  %v234 = vpop.f32.mrb[0].mxu0
  %v235 = vadd.f32 0.0, %v234
  %v236 = vpop.f32.mrb[0].mxu0
  %v237 = vpop.f32.mrb[0].mxu0
  %v238 = vadd.f32 0.0, %v237
  %v239 = vpop.f32.mrb[0].mxu0
  %240 = vmatprep.mubr.bf16.mxu0 0
  %241 = vmatmul.mubr.bf16.gmra.mrb[0].mxu0 %v143
  %v242 = vpop.f32.mrb[0].mxu0
  %v243 = vadd.f32 0.0, %v242
  %v244 = vpop.f32.mrb[0].mxu0
  %v245 = vpop.f32.mrb[0].mxu0
  %v246 = vadd.f32 0.0, %v245
  %v247 = vpop.f32.mrb[0].mxu0
  %248 = vdwg.mxu0
  %v249 = vadd.f32 %v41, %v187
  %v250 = vadd.f32 %v42, %v190
  %v251 = vadd.f32 %v43, %v195
  %v252 = vadd.f32 %v44, %v198
  %v253 = vadd.f32 %v45, %v203
  %v254 = vadd.f32 %v46, %v206
  %v255 = vadd.f32 %v47, %v211
  %v256 = vadd.f32 %v48, %v214
  %v257 = vadd.f32 %v49, %v219
  %v258 = vadd.f32 %v50, %v222
  %v259 = vadd.f32 %v51, %v227
  %v260 = vadd.f32 %v52, %v230
  %v261 = vadd.f32 %v53, %v235
  %v262 = vadd.f32 %v54, %v238
  %v263 = vadd.f32 %v55, %v243
  %v264 = vadd.f32 %v56, %v246
  %265 = vst [vmem:[#allocation2] sm:$0xff] %v249
  %266 = vst [vmem:[#allocation2 + $0x8] sm:$0xff] %v250
  %267 = vst [vmem:[#allocation2 + $0x10] sm:$0xff] %v251
  %268 = vst [vmem:[#allocation2 + $0x18] sm:$0xff] %v252
  %269 = vst [vmem:[#allocation2 + $0x20] sm:$0xff] %v253
  %270 = vst [vmem:[#allocation2 + $0x28] sm:$0xff] %v254
  %271 = vst [vmem:[#allocation2 + $0x30] sm:$0xff] %v255
  %272 = vst [vmem:[#allocation2 + $0x38] sm:$0xff] %v256
  %273 = vst [vmem:[#allocation2 + $0x40] sm:$0xff] %v257
  %274 = vst [vmem:[#allocation2 + $0x48] sm:$0xff] %v258
  %275 = vst [vmem:[#allocation2 + $0x50] sm:$0xff] %v259
  %276 = vst [vmem:[#allocation2 + $0x58] sm:$0xff] %v260
  %277 = vst [vmem:[#allocation2 + $0x60] sm:$0xff] %v261
  %278 = vst [vmem:[#allocation2 + $0x68] sm:$0xff] %v262
  %279 = vst [vmem:[#allocation2 + $0x70] sm:$0xff] %v263
  %280 = vst [vmem:[#allocation2 + $0x78] sm:$0xff] %v264
  // Predicated region
  $region26: #{_lambda_.9} parent=0 // pred_check
    %p281 = pneg %p21
  $region27: #{_lambda_.9} parent=0 // pred_check_branch
    %283 = sbr.rel (%p281) target = $region29
  $region28: #{_lambda_.9} parent=0 // pred_region
    %v284 = vld [vmem:[#allocation2] sm:$0xff]
    %v285 = vld [vmem:[#allocation2 + $0x8] sm:$0xff]
    %v286 = vld [vmem:[#allocation2 + $0x10] sm:$0xff]
    %v287 = vld [vmem:[#allocation2 + $0x18] sm:$0xff]
    %v288 = vld [vmem:[#allocation2 + $0x20] sm:$0xff]
    %v289 = vld [vmem:[#allocation2 + $0x28] sm:$0xff]
    %v290 = vld [vmem:[#allocation2 + $0x30] sm:$0xff]
    %v291 = vld [vmem:[#allocation2 + $0x38] sm:$0xff]
    %v292 = vld [vmem:[#allocation2 + $0x40] sm:$0xff]
    %v293 = vld [vmem:[#allocation2 + $0x48] sm:$0xff]
    %v294 = vld [vmem:[#allocation2 + $0x50] sm:$0xff]
    %v295 = vld [vmem:[#allocation2 + $0x58] sm:$0xff]
    %v296 = vld [vmem:[#allocation2 + $0x60] sm:$0xff]
    %v297 = vld [vmem:[#allocation2 + $0x68] sm:$0xff]
    %v298 = vld [vmem:[#allocation2 + $0x70] sm:$0xff]
    %v299 = vld [vmem:[#allocation2 + $0x78] sm:$0xff]
    %v300 = vld [vmem:[%s2] sm:$0x1]
    %v301 = vld [vmem:[%s3] sm:$0x1]
    %v302 = vld [vmem:[%s4] sm:$0x1]
    %v304 = vlaneseq
    %v305 = vshrl.u32 %v304, 7
    %v306 = vsub.s32 0, %v305
    %v307 = vrot.slane %v300, %v306
    %v309 = vadd.f32 %v284, %v307
    %v310 = vadd.f32 %v285, %v307
    %v311 = vadd.f32 %v286, %v307
    %v312 = vadd.f32 %v287, %v307
    %v313 = vadd.f32 %v288, %v307
    %v314 = vadd.f32 %v289, %v307
    %v315 = vadd.f32 %v290, %v307
    %v316 = vadd.f32 %v291, %v307
    %v317 = vadd.f32 %v292, %v307
    %v318 = vadd.f32 %v293, %v307
    %v319 = vadd.f32 %v294, %v307
    %v320 = vadd.f32 %v295, %v307
    %v321 = vadd.f32 %v296, %v307
    %v322 = vadd.f32 %v297, %v307
    %v323 = vadd.f32 %v298, %v307
    %v324 = vadd.f32 %v299, %v307
    %v325 = vmax.f32 %v309, 0.0
    %v326 = vmax.f32 %v310, 0.0
    %v327 = vmax.f32 %v311, 0.0
    %v328 = vmax.f32 %v312, 0.0
    %v329 = vmax.f32 %v313, 0.0
    %v330 = vmax.f32 %v314, 0.0
    %v331 = vmax.f32 %v315, 0.0
    %v332 = vmax.f32 %v316, 0.0
    %v333 = vmax.f32 %v317, 0.0
    %v334 = vmax.f32 %v318, 0.0
    %v335 = vmax.f32 %v319, 0.0
    %v336 = vmax.f32 %v320, 0.0
    %v337 = vmax.f32 %v321, 0.0
    %v338 = vmax.f32 %v322, 0.0
    %v339 = vmax.f32 %v323, 0.0
    %v340 = vmax.f32 %v324, 0.0
    %v342 = vlaneseq
    %v343 = vshrl.u32 %v342, 7
    %v344 = vsub.s32 0, %v343
    %v345 = vrot.slane %v301, %v344
    %v347 = vmul.f32 %v325, %v345
    %v348 = vmul.f32 %v326, %v345
    %v349 = vmul.f32 %v327, %v345
    %v350 = vmul.f32 %v328, %v345
    %v351 = vmul.f32 %v329, %v345
    %v352 = vmul.f32 %v330, %v345
    %v353 = vmul.f32 %v331, %v345
    %v354 = vmul.f32 %v332, %v345
    %v355 = vmul.f32 %v333, %v345
    %v356 = vmul.f32 %v334, %v345
    %v357 = vmul.f32 %v335, %v345
    %v358 = vmul.f32 %v336, %v345
    %v359 = vmul.f32 %v337, %v345
    %v360 = vmul.f32 %v338, %v345
    %v361 = vmul.f32 %v339, %v345
    %v362 = vmul.f32 %v340, %v345
    %v364 = vlaneseq
    %v365 = vshrl.u32 %v364, 7
    %v366 = vsub.s32 0, %v365
    %v367 = vrot.slane %v302, %v366
    %v369 = vadd.f32 %v347, %v367
    %v370 = vadd.f32 %v348, %v367
    %v371 = vadd.f32 %v349, %v367
    %v372 = vadd.f32 %v350, %v367
    %v373 = vadd.f32 %v351, %v367
    %v374 = vadd.f32 %v352, %v367
    %v375 = vadd.f32 %v353, %v367
    %v376 = vadd.f32 %v354, %v367
    %v377 = vadd.f32 %v355, %v367
    %v378 = vadd.f32 %v356, %v367
    %v379 = vadd.f32 %v357, %v367
    %v380 = vadd.f32 %v358, %v367
    %v381 = vadd.f32 %v359, %v367
    %v382 = vadd.f32 %v360, %v367
    %v383 = vadd.f32 %v361, %v367
    %v384 = vadd.f32 %v362, %v367
    %v385 = vpack.c.bf16 %v370, %v369
    %v386 = vpack.c.bf16 %v372, %v371
    %v387 = vpack.c.bf16 %v374, %v373
    %v388 = vpack.c.bf16 %v376, %v375
    %v389 = vpack.c.bf16 %v378, %v377
    %v390 = vpack.c.bf16 %v380, %v379
    %v391 = vpack.c.bf16 %v382, %v381
    %v392 = vpack.c.bf16 %v384, %v383
    %v401 = vunpack.c.l.b16 %v385
    %v402 = vunpack.c.h.b16 %v385
    %v403 = vunpack.c.l.b16 %v386
    %v404 = vunpack.c.h.b16 %v386
    %v405 = vunpack.c.l.b16 %v387
    %v406 = vunpack.c.h.b16 %v387
    %v407 = vunpack.c.l.b16 %v388
    %v408 = vunpack.c.h.b16 %v388
    %v409 = vunpack.c.l.b16 %v389
    %v410 = vunpack.c.h.b16 %v389
    %v411 = vunpack.c.l.b16 %v390
    %v412 = vunpack.c.h.b16 %v390
    %v413 = vunpack.c.l.b16 %v391
    %v414 = vunpack.c.h.b16 %v391
    %v415 = vunpack.c.l.b16 %v392
    %v416 = vunpack.c.h.b16 %v392
    %v417 = vpack.c.b16 %v401, %v401
    %v418 = vpack.c.b16 %v402, %v402
    %v419 = vpack.c.b16 %v403, %v403
    %v420 = vpack.c.b16 %v404, %v404
    %v421 = vpack.c.b16 %v405, %v405
    %v422 = vpack.c.b16 %v406, %v406
    %v423 = vpack.c.b16 %v407, %v407
    %v424 = vpack.c.b16 %v408, %v408
    %v425 = vpack.c.b16 %v409, %v409
    %v426 = vpack.c.b16 %v410, %v410
    %v427 = vpack.c.b16 %v411, %v411
    %v428 = vpack.c.b16 %v412, %v412
    %v429 = vpack.c.b16 %v413, %v413
    %v430 = vpack.c.b16 %v414, %v414
    %v431 = vpack.c.b16 %v415, %v415
    %v432 = vpack.c.b16 %v416, %v416
    %449 = vst [vmem:[%s5] sm:$0xf] %v417
    %450 = vst [vmem:[%s5 + $0x4] sm:$0xf] %v418
    %451 = vst [vmem:[%s5 + $0x8] sm:$0xf] %v419
    %452 = vst [vmem:[%s5 + $0xc] sm:$0xf] %v420
    %453 = vst [vmem:[%s5 + $0x10] sm:$0xf] %v421
    %454 = vst [vmem:[%s5 + $0x14] sm:$0xf] %v422
    %455 = vst [vmem:[%s5 + $0x18] sm:$0xf] %v423
    %456 = vst [vmem:[%s5 + $0x1c] sm:$0xf] %v424
    %457 = vst [vmem:[%s5 + $0x20] sm:$0xf] %v425
    %458 = vst [vmem:[%s5 + $0x24] sm:$0xf] %v426
    %459 = vst [vmem:[%s5 + $0x28] sm:$0xf] %v427
    %460 = vst [vmem:[%s5 + $0x2c] sm:$0xf] %v428
    %461 = vst [vmem:[%s5 + $0x30] sm:$0xf] %v429
    %462 = vst [vmem:[%s5 + $0x34] sm:$0xf] %v430
    %463 = vst [vmem:[%s5 + $0x38] sm:$0xf] %v431
    %464 = vst [vmem:[%s5 + $0x3c] sm:$0xf] %v432
  $region29: #{_lambda_.9} parent=0 // pred_fallthru
    _
  // Predicated region
  $region30: #{_lambda_.9} parent=0 // pred_check
    _
  $region31: #{_lambda_.9} parent=0 // pred_check_branch
    %466 = sbr.rel (0) target = $region33
  $region32: #{_lambda_.9} parent=0 // pred_region
    _
  $region33: #{_lambda_.9} parent=0 // pred_fallthru
    _
  // Predicated region
  $region34: #{_lambda_.9} parent=0 // pred_check
    _
  $region35: #{_lambda_.9} parent=0 // pred_check_branch
    %468 = sbr.rel (0) target = $region37
  $region36: #{_lambda_.9} parent=0 // pred_region
    _
  $region37: #{_lambda_.9} parent=0 // pred_fallthru
    _

// kernel: _lambda_.10
$region0: #{_lambda_.10}
  #allocation0 [shape = 'u32[]', space=smem, size = 0x4, offset = 0x4, fixed_abs, tag = 'smem constant byte address 0x4 - core index']
  #allocation1 [shape = 'u32[144,128]{1,0:T(1,128)}', space=vmem, size = 0x12000, scoped, tag = 'internal scratch']
  #allocation2 [shape = 'f32[32,128]{1,0:T(8,128)}', space=vmem, size = 0x4000, scoped, tag = 'scratch operand']
  %s0 = inlined_call_operand.vmem [shape: bf16[1,32,288], index: 0, kind: input, shape index: {}]
  %s1 = inlined_call_operand.vmem [shape: bf16[1,288,128], index: 1, kind: input, shape index: {}]
  %s2 = inlined_call_operand.vmem [shape: f32[1,128], index: 2, kind: input, shape index: {}]
  %s3 = inlined_call_operand.vmem [shape: f32[1,128], index: 3, kind: input, shape index: {}]
  %s4 = inlined_call_operand.vmem [shape: f32[1,128], index: 4, kind: input, shape index: {}]
  %s5 = inlined_call_operand.vmem [shape: bf16[32,128], index: 5, kind: output, shape index: {}]
  %s6 = sld [smem:[#allocation0]]
  $region38: #{_lambda_.10} parent=0
    _
  %s8 = ssub.s32 1, %s6
  %s9 = scalar_select 0, %s8, %s6
  // Predicated region
  $region2: #{_lambda_.10} parent=0 // pred_check
    _
  $region3: #{_lambda_.10} parent=0 // pred_check_branch
    %11 = sbr.rel (0) target = $region5
  $region4: #{_lambda_.10} parent=0 // pred_region
    _
  $region5: #{_lambda_.10} parent=0 // pred_fallthru
    _
  // Predicated region
  $region6: #{_lambda_.10} parent=0 // pred_check
    _
  $region7: #{_lambda_.10} parent=0 // pred_check_branch
    %13 = sbr.rel (0) target = $region9
  $region8: #{_lambda_.10} parent=0 // pred_region
    _
  $region9: #{_lambda_.10} parent=0 // pred_fallthru
    _
  // Predicated region
  $region10: #{_lambda_.10} parent=0 // pred_check
    _
  $region11: #{_lambda_.10} parent=0 // pred_check_branch
    %15 = sbr.rel (0) target = $region13
  $region12: #{_lambda_.10} parent=0 // pred_region
    _
  $region13: #{_lambda_.10} parent=0 // pred_fallthru
    _
  // Predicated region
  $region14: #{_lambda_.10} parent=0 // pred_check
    _
  $region15: #{_lambda_.10} parent=0 // pred_check_branch
    %17 = sbr.rel (0) target = $region17
  $region16: #{_lambda_.10} parent=0 // pred_region
    _
  $region17: #{_lambda_.10} parent=0 // pred_fallthru
    _
  // Predicated region
  $region18: #{_lambda_.10} parent=0 // pred_check
    _
  $region19: #{_lambda_.10} parent=0 // pred_check_branch
    %19 = sbr.rel (0) target = $region21
  $region20: #{_lambda_.10} parent=0 // pred_region
    _
  $region21: #{_lambda_.10} parent=0 // pred_fallthru
    _
  %p21 = scmp.eq.s32.totalorder 0, 0
  // Predicated region
  $region22: #{_lambda_.10} parent=0 // pred_check
    %p22 = pneg %p21
  $region23: #{_lambda_.10} parent=0 // pred_check_branch
    %24 = sbr.rel (%p22) target = $region25
  $region24: #{_lambda_.10} parent=0 // pred_region
    %25 = vst [vmem:[#allocation2] sm:$0xff] 0.0
    %26 = vst [vmem:[#allocation2 + $0x8] sm:$0xff] 0.0
    %27 = vst [vmem:[#allocation2 + $0x10] sm:$0xff] 0.0
    %28 = vst [vmem:[#allocation2 + $0x18] sm:$0xff] 0.0
  $region25: #{_lambda_.10} parent=0 // pred_fallthru
    _
  %v29 = vld [vmem:[#allocation2] sm:$0xff]
  %v30 = vld [vmem:[#allocation2 + $0x8] sm:$0xff]
  %v31 = vld [vmem:[#allocation2 + $0x10] sm:$0xff]
  %v32 = vld [vmem:[#allocation2 + $0x18] sm:$0xff]
  %v33 = vld [vmem:[%s0] sm:$0xff]
  %v34 = vld [vmem:[%s0 + $0x8] sm:$0xf]
  %v35 = vld [vmem:[%s0 + $0xc] sm:$0xff]
  %v36 = vld [vmem:[%s0 + $0x14] sm:$0xf]
  %v37 = vld [vmem:[%s0 + $0x18] sm:$0xff]
  %v38 = vld [vmem:[%s0 + $0x20] sm:$0xf]
  %v39 = vld [vmem:[%s0 + $0x24] sm:$0xff]
  %v40 = vld [vmem:[%s0 + $0x2c] sm:$0xf]
  %v41 = vld [vmem:[%s1] sm:$0xf]
  %v42 = vld [vmem:[%s1 + $0x4] sm:$0xf]
  %v43 = vld [vmem:[%s1 + $0x8] sm:$0xf]
  %v44 = vld [vmem:[%s1 + $0xc] sm:$0xf]
  %v45 = vld [vmem:[%s1 + $0x10] sm:$0xf]
  %v46 = vld [vmem:[%s1 + $0x14] sm:$0xf]
  %v47 = vld [vmem:[%s1 + $0x18] sm:$0xf]
  %v48 = vld [vmem:[%s1 + $0x1c] sm:$0xf]
  %v49 = vld [vmem:[%s1 + $0x20] sm:$0xf]
  %v50 = vld [vmem:[%s1 + $0x24] sm:$0xf]
  %v51 = vld [vmem:[%s1 + $0x28] sm:$0xf]
  %v52 = vld [vmem:[%s1 + $0x2c] sm:$0xf]
  %v53 = vld [vmem:[%s1 + $0x30] sm:$0xf]
  %v54 = vld [vmem:[%s1 + $0x34] sm:$0xf]
  %v55 = vld [vmem:[%s1 + $0x38] sm:$0xf]
  %v56 = vld [vmem:[%s1 + $0x3c] sm:$0xf]
  %v57 = vld [vmem:[%s1 + $0x40] sm:$0xf]
  %v58 = vld [vmem:[%s1 + $0x44] sm:$0xf]
  %v59 = vld [vmem:[%s1 + $0x48] sm:$0xf]
  %v60 = vld [vmem:[%s1 + $0x4c] sm:$0xf]
  %v61 = vld [vmem:[%s1 + $0x50] sm:$0xf]
  %v62 = vld [vmem:[%s1 + $0x54] sm:$0xf]
  %v63 = vld [vmem:[%s1 + $0x58] sm:$0xf]
  %v64 = vld [vmem:[%s1 + $0x5c] sm:$0xf]
  %v65 = vld [vmem:[%s1 + $0x60] sm:$0xf]
  %v66 = vld [vmem:[%s1 + $0x64] sm:$0xf]
  %v67 = vld [vmem:[%s1 + $0x68] sm:$0xf]
  %v68 = vld [vmem:[%s1 + $0x6c] sm:$0xf]
  %v69 = vld [vmem:[%s1 + $0x70] sm:$0xf]
  %v70 = vld [vmem:[%s1 + $0x74] sm:$0xf]
  %v71 = vld [vmem:[%s1 + $0x78] sm:$0xf]
  %v72 = vld [vmem:[%s1 + $0x7c] sm:$0xf]
  %v73 = vld [vmem:[%s1 + $0x80] sm:$0xf]
  %v74 = vld [vmem:[%s1 + $0x84] sm:$0xf]
  %v75 = vld [vmem:[%s1 + $0x88] sm:$0xf]
  %v76 = vld [vmem:[%s1 + $0x8c] sm:$0xf]
  %v85 = vunpack.c.l.b16 %v33
  %v86 = vunpack.c.h.b16 %v33
  %v87 = vunpack.c.l.b16 %v34
  %v88 = vunpack.c.l.b16 %v35
  %v89 = vunpack.c.h.b16 %v35
  %v90 = vunpack.c.l.b16 %v36
  %v91 = vunpack.c.l.b16 %v37
  %v92 = vunpack.c.h.b16 %v37
  %v93 = vunpack.c.l.b16 %v38
  %v94 = vunpack.c.l.b16 %v39
  %v95 = vunpack.c.h.b16 %v39
  %v96 = vunpack.c.l.b16 %v40
  %v97 = vpack.c.b16 %v88, %v85
  %v98 = vpack.c.b16 %v89, %v86
  %v99 = vpack.c.b16 %v90, %v87
  %v100 = vpack.c.b16 %v94, %v91
  %v101 = vpack.c.b16 %v95, %v92
  %v102 = vpack.c.b16 %v96, %v93
  %v143 = vunpack.c.l.b16 %v41
  %v144 = vunpack.c.l.b16 %v42
  %v145 = vunpack.c.l.b16 %v43
  %v146 = vunpack.c.l.b16 %v44
  %v147 = vunpack.c.l.b16 %v45
  %v148 = vunpack.c.l.b16 %v46
  %v149 = vunpack.c.l.b16 %v47
  %v150 = vunpack.c.l.b16 %v48
  %v151 = vunpack.c.l.b16 %v49
  %v152 = vunpack.c.l.b16 %v50
  %v153 = vunpack.c.l.b16 %v51
  %v154 = vunpack.c.l.b16 %v52
  %v155 = vunpack.c.l.b16 %v53
  %v156 = vunpack.c.l.b16 %v54
  %v157 = vunpack.c.l.b16 %v55
  %v158 = vunpack.c.l.b16 %v56
  %v159 = vunpack.c.l.b16 %v57
  %v160 = vunpack.c.l.b16 %v58
  %v161 = vunpack.c.l.b16 %v59
  %v162 = vunpack.c.l.b16 %v60
  %v163 = vunpack.c.l.b16 %v61
  %v164 = vunpack.c.l.b16 %v62
  %v165 = vunpack.c.l.b16 %v63
  %v166 = vunpack.c.l.b16 %v64
  %v167 = vunpack.c.l.b16 %v65
  %v168 = vunpack.c.l.b16 %v66
  %v169 = vunpack.c.l.b16 %v67
  %v170 = vunpack.c.l.b16 %v68
  %v171 = vunpack.c.l.b16 %v69
  %v172 = vunpack.c.l.b16 %v70
  %v173 = vunpack.c.l.b16 %v71
  %v174 = vunpack.c.l.b16 %v72
  %v175 = vunpack.c.l.b16 %v73
  %v176 = vunpack.c.l.b16 %v74
  %v177 = vunpack.c.l.b16 %v75
  %v178 = vunpack.c.l.b16 %v76
  %v179 = vpack.c.b16 %v144, %v143
  %v180 = vpack.c.b16 %v146, %v145
  %v181 = vpack.c.b16 %v148, %v147
  %v182 = vpack.c.b16 %v150, %v149
  %v183 = vpack.c.b16 %v152, %v151
  %v184 = vpack.c.b16 %v154, %v153
  %v185 = vpack.c.b16 %v156, %v155
  %v186 = vpack.c.b16 %v158, %v157
  %v187 = vpack.c.b16 %v160, %v159
  %v188 = vpack.c.b16 %v162, %v161
  %v189 = vpack.c.b16 %v164, %v163
  %v190 = vpack.c.b16 %v166, %v165
  %v191 = vpack.c.b16 %v168, %v167
  %v192 = vpack.c.b16 %v170, %v169
  %v193 = vpack.c.b16 %v172, %v171
  %v194 = vpack.c.b16 %v174, %v173
  %v195 = vpack.c.b16 %v176, %v175
  %v196 = vpack.c.b16 %v178, %v177
  %vm215 = vcmask 261120
  %v217 = vsel %vm215, %v99, 0
  %v220 = vsel %vm215, %v102, 0
  %222 = vmatprep.subr.bf16.mxu0 0
  %223 = vmatpush1.bf16.msra.mxu0 %v179
  %224 = vmatprep.subr.bf16.mxu0 0
  %225 = vmatpush1.bf16.msra.mxu0 %v180
  %226 = vmatprep.subr.bf16.mxu0 0
  %227 = vmatpush1.bf16.msra.mxu0 %v181
  %228 = vmatprep.subr.bf16.mxu0 0
  %229 = vmatpush1.bf16.msra.mxu0 %v182
  %230 = vmatprep.subr.bf16.mxu0 0
  %231 = vmatpush1.bf16.msra.mxu0 %v183
  %232 = vmatprep.subr.bf16.mxu0 0
  %233 = vmatpush1.bf16.msra.mxu0 %v184
  %234 = vmatprep.subr.bf16.mxu0 0
  %235 = vmatpush1.bf16.msra.mxu0 %v185
  %236 = vmatprep.subr.bf16.mxu0 0
  %237 = vmatpush1.bf16.msra.mxu0 %v186
  %238 = vmatprep.subr.bf16.mxu0 0
  %239 = vmatpush1.bf16.msra.mxu0 %v187
  %240 = vmatprep.subr.bf16.mxu0 0
  %241 = vmatpush1.bf16.msra.mxu0 %v188
  %242 = vmatprep.subr.bf16.mxu0 0
  %243 = vmatpush1.bf16.msra.mxu0 %v189
  %244 = vmatprep.subr.bf16.mxu0 0
  %245 = vmatpush1.bf16.msra.mxu0 %v190
  %246 = vmatprep.subr.bf16.mxu0 0
  %247 = vmatpush1.bf16.msra.mxu0 %v191
  %248 = vmatprep.subr.bf16.mxu0 0
  %249 = vmatpush1.bf16.msra.mxu0 %v192
  %250 = vmatprep.subr.bf16.mxu0 0
  %251 = vmatpush1.bf16.msra.mxu0 %v193
  %252 = vmatprep.subr.bf16.mxu0 0
  %253 = vmatpush1.bf16.msra.mxu0 %v194
  %254 = vmatprep.mubr.bf16.mxu0 %v98
  %255 = vmatmul.mubr.bf16.gmra.mrb[0].mxu0 %v97
  %v256 = vpop.f32.mrb[0].mxu0
  %v257 = vadd.f32 0.0, %v256
  %v258 = vpop.f32.mrb[0].mxu0
  %v259 = vpop.f32.mrb[0].mxu0
  %v260 = vadd.f32 0.0, %v259
  %v261 = vpop.f32.mrb[0].mxu0
  %262 = vmatprep.mubr.bf16.mxu0 %v101
  %263 = vmatmul.mubr.bf16.gmra.mrb[0].mxu0 %v100
  %v264 = vpop.f32.mrb[0].mxu0
  %v265 = vadd.f32 0.0, %v264
  %v266 = vpop.f32.mrb[0].mxu0
  %v267 = vpop.f32.mrb[0].mxu0
  %v268 = vadd.f32 0.0, %v267
  %v269 = vpop.f32.mrb[0].mxu0
  %270 = vdwg.mxu0
  %271 = vmatprep.subr.bf16.mxu0 0
  %272 = vmatpush1.bf16.msra.mxu0 %v195
  %273 = vmatprep.subr.bf16.mxu0 0
  %274 = vmatpush1.bf16.msra.mxu0 %v196
  %275 = vmatprep.subr.bf16.mxu0 0
  %276 = vmatpush1.bf16.msra.mxu0 0
  %277 = vmatprep.subr.bf16.mxu0 0
  %278 = vmatpush1.bf16.msra.mxu0 0
  %279 = vmatprep.subr.bf16.mxu0 0
  %280 = vmatpush1.bf16.msra.mxu0 0
  %281 = vmatprep.subr.bf16.mxu0 0
  %282 = vmatpush1.bf16.msra.mxu0 0
  %283 = vmatprep.subr.bf16.mxu0 0
  %284 = vmatpush1.bf16.msra.mxu0 0
  %285 = vmatprep.subr.bf16.mxu0 0
  %286 = vmatpush1.bf16.msra.mxu0 0
  %287 = vmatprep.subr.bf16.mxu0 0
  %288 = vmatpush1.bf16.msra.mxu0 0
  %289 = vmatprep.subr.bf16.mxu0 0
  %290 = vmatpush1.bf16.msra.mxu0 0
  %291 = vmatprep.subr.bf16.mxu0 0
  %292 = vmatpush1.bf16.msra.mxu0 0
  %293 = vmatprep.subr.bf16.mxu0 0
  %294 = vmatpush1.bf16.msra.mxu0 0
  %295 = vmatprep.subr.bf16.mxu0 0
  %296 = vmatpush1.bf16.msra.mxu0 0
  %297 = vmatprep.subr.bf16.mxu0 0
  %298 = vmatpush1.bf16.msra.mxu0 0
  %299 = vmatprep.subr.bf16.mxu0 0
  %300 = vmatpush1.bf16.msra.mxu0 0
  %301 = vmatprep.subr.bf16.mxu0 0
  %302 = vmatpush1.bf16.msra.mxu0 0
  %303 = vmatprep.mubr.bf16.mxu0 0
  %304 = vmatmul.mubr.bf16.gmra.mrb[0].mxu0 %v217
  %v305 = vpop.f32.mrb[0].mxu0
  %v306 = vadd.f32 %v257, %v305
  %v307 = vpop.f32.mrb[0].mxu0
  %v308 = vpop.f32.mrb[0].mxu0
  %v309 = vadd.f32 %v260, %v308
  %v310 = vpop.f32.mrb[0].mxu0
  %311 = vmatprep.mubr.bf16.mxu0 0
  %312 = vmatmul.mubr.bf16.gmra.mrb[0].mxu0 %v220
  %v313 = vpop.f32.mrb[0].mxu0
  %v314 = vadd.f32 %v265, %v313
  %v315 = vpop.f32.mrb[0].mxu0
  %v316 = vpop.f32.mrb[0].mxu0
  %v317 = vadd.f32 %v268, %v316
  %v318 = vpop.f32.mrb[0].mxu0
  %319 = vdwg.mxu0
  %v320 = vadd.f32 %v29, %v306
  %v321 = vadd.f32 %v30, %v309
  %v322 = vadd.f32 %v31, %v314
  %v323 = vadd.f32 %v32, %v317
  %324 = vst [vmem:[#allocation2] sm:$0xff] %v320
  %325 = vst [vmem:[#allocation2 + $0x8] sm:$0xff] %v321
  %326 = vst [vmem:[#allocation2 + $0x10] sm:$0xff] %v322
  %327 = vst [vmem:[#allocation2 + $0x18] sm:$0xff] %v323
  // Predicated region
  $region26: #{_lambda_.10} parent=0 // pred_check
    %p328 = pneg %p21
  $region27: #{_lambda_.10} parent=0 // pred_check_branch
    %330 = sbr.rel (%p328) target = $region29
  $region28: #{_lambda_.10} parent=0 // pred_region
    %v331 = vld [vmem:[#allocation2] sm:$0xff]
    %v332 = vld [vmem:[#allocation2 + $0x8] sm:$0xff]
    %v333 = vld [vmem:[#allocation2 + $0x10] sm:$0xff]
    %v334 = vld [vmem:[#allocation2 + $0x18] sm:$0xff]
    %v335 = vld [vmem:[%s2] sm:$0x1]
    %v336 = vld [vmem:[%s3] sm:$0x1]
    %v337 = vld [vmem:[%s4] sm:$0x1]
    %v339 = vlaneseq
    %v340 = vshrl.u32 %v339, 7
    %v341 = vsub.s32 0, %v340
    %v342 = vrot.slane %v335, %v341
    %v344 = vadd.f32 %v331, %v342
    %v345 = vadd.f32 %v332, %v342
    %v346 = vadd.f32 %v333, %v342
    %v347 = vadd.f32 %v334, %v342
    %v348 = vmax.f32 %v344, 0.0
    %v349 = vmax.f32 %v345, 0.0
    %v350 = vmax.f32 %v346, 0.0
    %v351 = vmax.f32 %v347, 0.0
    %v353 = vlaneseq
    %v354 = vshrl.u32 %v353, 7
    %v355 = vsub.s32 0, %v354
    %v356 = vrot.slane %v336, %v355
    %v358 = vmul.f32 %v348, %v356
    %v359 = vmul.f32 %v349, %v356
    %v360 = vmul.f32 %v350, %v356
    %v361 = vmul.f32 %v351, %v356
    %v363 = vlaneseq
    %v364 = vshrl.u32 %v363, 7
    %v365 = vsub.s32 0, %v364
    %v366 = vrot.slane %v337, %v365
    %v368 = vadd.f32 %v358, %v366
    %v369 = vadd.f32 %v359, %v366
    %v370 = vadd.f32 %v360, %v366
    %v371 = vadd.f32 %v361, %v366
    %v372 = vpack.c.bf16 %v369, %v368
    %v373 = vpack.c.bf16 %v371, %v370
    %v376 = vunpack.c.l.b16 %v372
    %v377 = vunpack.c.h.b16 %v372
    %v378 = vunpack.c.l.b16 %v373
    %v379 = vunpack.c.h.b16 %v373
    %v380 = vpack.c.b16 %v376, %v376
    %v381 = vpack.c.b16 %v377, %v377
    %v382 = vpack.c.b16 %v378, %v378
    %v383 = vpack.c.b16 %v379, %v379
    %388 = vst [vmem:[%s5] sm:$0xf] %v380
    %389 = vst [vmem:[%s5 + $0x4] sm:$0xf] %v381
    %390 = vst [vmem:[%s5 + $0x8] sm:$0xf] %v382
    %391 = vst [vmem:[%s5 + $0xc] sm:$0xf] %v383
  $region29: #{_lambda_.10} parent=0 // pred_fallthru
    _
  // Predicated region
  $region30: #{_lambda_.10} parent=0 // pred_check
    _
  $region31: #{_lambda_.10} parent=0 // pred_check_branch
    %393 = sbr.rel (0) target = $region33
  $region32: #{_lambda_.10} parent=0 // pred_region
    _
  $region33: #{_lambda_.10} parent=0 // pred_fallthru
    _
  // Predicated region
  $region34: #{_lambda_.10} parent=0 // pred_check
    _
  $region35: #{_lambda_.10} parent=0 // pred_check_branch
    %395 = sbr.rel (0) target = $region37
  $region36: #{_lambda_.10} parent=0 // pred_region
    _
  $region37: #{_lambda_.10} parent=0 // pred_fallthru
    _

// kernel: _lambda_.11
$region0: #{_lambda_.11}
  #allocation0 [shape = 'u32[]', space=smem, size = 0x4, offset = 0x4, fixed_abs, tag = 'smem constant byte address 0x4 - core index']
  #allocation1 [shape = 'u32[144,128]{1,0:T(1,128)}', space=vmem, size = 0x12000, scoped, tag = 'internal scratch']
  #allocation2 [shape = 'f32[32,256]{1,0:T(8,128)}', space=vmem, size = 0x8000, scoped, tag = 'scratch operand']
  %s0 = inlined_call_operand.vmem [shape: bf16[1,32,128], index: 0, kind: input, shape index: {}]
  %s1 = inlined_call_operand.vmem [shape: bf16[1,128,256], index: 1, kind: input, shape index: {}]
  %s2 = inlined_call_operand.vmem [shape: f32[1,256], index: 2, kind: input, shape index: {}]
  %s3 = inlined_call_operand.vmem [shape: f32[32,256], index: 3, kind: output, shape index: {}]
  %s4 = sld [smem:[#allocation0]]
  $region30: #{_lambda_.11} parent=0
    _
  %s6 = ssub.s32 1, %s4
  %s7 = scalar_select 0, %s6, %s4
  // Predicated region
  $region2: #{_lambda_.11} parent=0 // pred_check
    _
  $region3: #{_lambda_.11} parent=0 // pred_check_branch
    %9 = sbr.rel (0) target = $region5
  $region4: #{_lambda_.11} parent=0 // pred_region
    _
  $region5: #{_lambda_.11} parent=0 // pred_fallthru
    _
  // Predicated region
  $region6: #{_lambda_.11} parent=0 // pred_check
    _
  $region7: #{_lambda_.11} parent=0 // pred_check_branch
    %11 = sbr.rel (0) target = $region9
  $region8: #{_lambda_.11} parent=0 // pred_region
    _
  $region9: #{_lambda_.11} parent=0 // pred_fallthru
    _
  // Predicated region
  $region10: #{_lambda_.11} parent=0 // pred_check
    _
  $region11: #{_lambda_.11} parent=0 // pred_check_branch
    %13 = sbr.rel (0) target = $region13
  $region12: #{_lambda_.11} parent=0 // pred_region
    _
  $region13: #{_lambda_.11} parent=0 // pred_fallthru
    _
  %p15 = scmp.eq.s32.totalorder 0, 0
  // Predicated region
  $region14: #{_lambda_.11} parent=0 // pred_check
    %p16 = pneg %p15
  $region15: #{_lambda_.11} parent=0 // pred_check_branch
    %18 = sbr.rel (%p16) target = $region17
  $region16: #{_lambda_.11} parent=0 // pred_region
    %19 = vst [vmem:[#allocation2] sm:$0xff] 0.0
    %20 = vst [vmem:[#allocation2 + $0x8] sm:$0xff] 0.0
    %21 = vst [vmem:[#allocation2 + $0x10] sm:$0xff] 0.0
    %22 = vst [vmem:[#allocation2 + $0x18] sm:$0xff] 0.0
    %23 = vst [vmem:[#allocation2 + $0x20] sm:$0xff] 0.0
    %24 = vst [vmem:[#allocation2 + $0x28] sm:$0xff] 0.0
    %25 = vst [vmem:[#allocation2 + $0x30] sm:$0xff] 0.0
    %26 = vst [vmem:[#allocation2 + $0x38] sm:$0xff] 0.0
  $region17: #{_lambda_.11} parent=0 // pred_fallthru
    _
  %v27 = vld [vmem:[#allocation2] sm:$0xff]
  %v28 = vld [vmem:[#allocation2 + $0x8] sm:$0xff]
  %v29 = vld [vmem:[#allocation2 + $0x10] sm:$0xff]
  %v30 = vld [vmem:[#allocation2 + $0x18] sm:$0xff]
  %v31 = vld [vmem:[#allocation2 + $0x20] sm:$0xff]
  %v32 = vld [vmem:[#allocation2 + $0x28] sm:$0xff]
  %v33 = vld [vmem:[#allocation2 + $0x30] sm:$0xff]
  %v34 = vld [vmem:[#allocation2 + $0x38] sm:$0xff]
  %v35 = vld [vmem:[%s0] sm:$0xf]
  %v36 = vld [vmem:[%s0 + $0x4] sm:$0xf]
  %v37 = vld [vmem:[%s0 + $0x8] sm:$0xf]
  %v38 = vld [vmem:[%s0 + $0xc] sm:$0xf]
  %v39 = vld [vmem:[%s1] sm:$0xff]
  %v40 = vld [vmem:[%s1 + $0x8] sm:$0xff]
  %v41 = vld [vmem:[%s1 + $0x10] sm:$0xff]
  %v42 = vld [vmem:[%s1 + $0x18] sm:$0xff]
  %v43 = vld [vmem:[%s1 + $0x20] sm:$0xff]
  %v44 = vld [vmem:[%s1 + $0x28] sm:$0xff]
  %v45 = vld [vmem:[%s1 + $0x30] sm:$0xff]
  %v46 = vld [vmem:[%s1 + $0x38] sm:$0xff]
  %v47 = vld [vmem:[%s1 + $0x40] sm:$0xff]
  %v48 = vld [vmem:[%s1 + $0x48] sm:$0xff]
  %v49 = vld [vmem:[%s1 + $0x50] sm:$0xff]
  %v50 = vld [vmem:[%s1 + $0x58] sm:$0xff]
  %v51 = vld [vmem:[%s1 + $0x60] sm:$0xff]
  %v52 = vld [vmem:[%s1 + $0x68] sm:$0xff]
  %v53 = vld [vmem:[%s1 + $0x70] sm:$0xff]
  %v54 = vld [vmem:[%s1 + $0x78] sm:$0xff]
  %v59 = vunpack.c.l.b16 %v35
  %v60 = vunpack.c.l.b16 %v36
  %v61 = vunpack.c.l.b16 %v37
  %v62 = vunpack.c.l.b16 %v38
  %v63 = vpack.c.b16 %v60, %v59
  %v64 = vpack.c.b16 %v62, %v61
  %v83 = vunpack.c.l.b16 %v39
  %v84 = vunpack.c.h.b16 %v39
  %v85 = vunpack.c.l.b16 %v40
  %v86 = vunpack.c.h.b16 %v40
  %v87 = vunpack.c.l.b16 %v41
  %v88 = vunpack.c.h.b16 %v41
  %v89 = vunpack.c.l.b16 %v42
  %v90 = vunpack.c.h.b16 %v42
  %v91 = vunpack.c.l.b16 %v43
  %v92 = vunpack.c.h.b16 %v43
  %v93 = vunpack.c.l.b16 %v44
  %v94 = vunpack.c.h.b16 %v44
  %v95 = vunpack.c.l.b16 %v45
  %v96 = vunpack.c.h.b16 %v45
  %v97 = vunpack.c.l.b16 %v46
  %v98 = vunpack.c.h.b16 %v46
  %v99 = vunpack.c.l.b16 %v47
  %v100 = vunpack.c.h.b16 %v47
  %v101 = vunpack.c.l.b16 %v48
  %v102 = vunpack.c.h.b16 %v48
  %v103 = vunpack.c.l.b16 %v49
  %v104 = vunpack.c.h.b16 %v49
  %v105 = vunpack.c.l.b16 %v50
  %v106 = vunpack.c.h.b16 %v50
  %v107 = vunpack.c.l.b16 %v51
  %v108 = vunpack.c.h.b16 %v51
  %v109 = vunpack.c.l.b16 %v52
  %v110 = vunpack.c.h.b16 %v52
  %v111 = vunpack.c.l.b16 %v53
  %v112 = vunpack.c.h.b16 %v53
  %v113 = vunpack.c.l.b16 %v54
  %v114 = vunpack.c.h.b16 %v54
  %v115 = vpack.c.b16 %v85, %v83
  %v116 = vpack.c.b16 %v86, %v84
  %v117 = vpack.c.b16 %v89, %v87
  %v118 = vpack.c.b16 %v90, %v88
  %v119 = vpack.c.b16 %v93, %v91
  %v120 = vpack.c.b16 %v94, %v92
  %v121 = vpack.c.b16 %v97, %v95
  %v122 = vpack.c.b16 %v98, %v96
  %v123 = vpack.c.b16 %v101, %v99
  %v124 = vpack.c.b16 %v102, %v100
  %v125 = vpack.c.b16 %v105, %v103
  %v126 = vpack.c.b16 %v106, %v104
  %v127 = vpack.c.b16 %v109, %v107
  %v128 = vpack.c.b16 %v110, %v108
  %v129 = vpack.c.b16 %v113, %v111
  %v130 = vpack.c.b16 %v114, %v112
  %147 = vmatprep.subr.bf16.mxu0 %v116
  %148 = vmatpush1.bf16.msra.mxu0 %v115
  %149 = vmatprep.subr.bf16.mxu0 %v118
  %150 = vmatpush1.bf16.msra.mxu0 %v117
  %151 = vmatprep.subr.bf16.mxu0 %v120
  %152 = vmatpush1.bf16.msra.mxu0 %v119
  %153 = vmatprep.subr.bf16.mxu0 %v122
  %154 = vmatpush1.bf16.msra.mxu0 %v121
  %155 = vmatprep.subr.bf16.mxu0 %v124
  %156 = vmatpush1.bf16.msra.mxu0 %v123
  %157 = vmatprep.subr.bf16.mxu0 %v126
  %158 = vmatpush1.bf16.msra.mxu0 %v125
  %159 = vmatprep.subr.bf16.mxu0 %v128
  %160 = vmatpush1.bf16.msra.mxu0 %v127
  %161 = vmatprep.subr.bf16.mxu0 %v130
  %162 = vmatpush1.bf16.msra.mxu0 %v129
  %163 = vmatprep.subr.bf16.mxu0 0
  %164 = vmatpush1.bf16.msra.mxu0 0
  %165 = vmatprep.subr.bf16.mxu0 0
  %166 = vmatpush1.bf16.msra.mxu0 0
  %167 = vmatprep.subr.bf16.mxu0 0
  %168 = vmatpush1.bf16.msra.mxu0 0
  %169 = vmatprep.subr.bf16.mxu0 0
  %170 = vmatpush1.bf16.msra.mxu0 0
  %171 = vmatprep.subr.bf16.mxu0 0
  %172 = vmatpush1.bf16.msra.mxu0 0
  %173 = vmatprep.subr.bf16.mxu0 0
  %174 = vmatpush1.bf16.msra.mxu0 0
  %175 = vmatprep.subr.bf16.mxu0 0
  %176 = vmatpush1.bf16.msra.mxu0 0
  %177 = vmatprep.subr.bf16.mxu0 0
  %178 = vmatpush1.bf16.msra.mxu0 0
  %179 = vmatprep.mubr.bf16.mxu0 0
  %180 = vmatmul.mubr.bf16.gmra.mrb[0].mxu0 %v63
  %v181 = vpop.f32.mrb[0].mxu0
  %v182 = vadd.f32 0.0, %v181
  %v183 = vpop.f32.mrb[0].mxu0
  %v184 = vadd.f32 0.0, %v183
  %v185 = vpop.f32.mrb[0].mxu0
  %v186 = vadd.f32 0.0, %v185
  %v187 = vpop.f32.mrb[0].mxu0
  %v188 = vadd.f32 0.0, %v187
  %189 = vmatprep.mubr.bf16.mxu0 0
  %190 = vmatmul.mubr.bf16.gmra.mrb[0].mxu0 %v64
  %v191 = vpop.f32.mrb[0].mxu0
  %v192 = vadd.f32 0.0, %v191
  %v193 = vpop.f32.mrb[0].mxu0
  %v194 = vadd.f32 0.0, %v193
  %v195 = vpop.f32.mrb[0].mxu0
  %v196 = vadd.f32 0.0, %v195
  %v197 = vpop.f32.mrb[0].mxu0
  %v198 = vadd.f32 0.0, %v197
  %199 = vdwg.mxu0
  %v200 = vadd.f32 %v27, %v182
  %v201 = vadd.f32 %v28, %v184
  %v202 = vadd.f32 %v29, %v186
  %v203 = vadd.f32 %v30, %v188
  %v204 = vadd.f32 %v31, %v192
  %v205 = vadd.f32 %v32, %v194
  %v206 = vadd.f32 %v33, %v196
  %v207 = vadd.f32 %v34, %v198
  %208 = vst [vmem:[#allocation2] sm:$0xff] %v200
  %209 = vst [vmem:[#allocation2 + $0x8] sm:$0xff] %v201
  %210 = vst [vmem:[#allocation2 + $0x10] sm:$0xff] %v202
  %211 = vst [vmem:[#allocation2 + $0x18] sm:$0xff] %v203
  %212 = vst [vmem:[#allocation2 + $0x20] sm:$0xff] %v204
  %213 = vst [vmem:[#allocation2 + $0x28] sm:$0xff] %v205
  %214 = vst [vmem:[#allocation2 + $0x30] sm:$0xff] %v206
  %215 = vst [vmem:[#allocation2 + $0x38] sm:$0xff] %v207
  // Predicated region
  $region18: #{_lambda_.11} parent=0 // pred_check
    %p216 = pneg %p15
  $region19: #{_lambda_.11} parent=0 // pred_check_branch
    %218 = sbr.rel (%p216) target = $region21
  $region20: #{_lambda_.11} parent=0 // pred_region
    %v219 = vld [vmem:[#allocation2] sm:$0xff]
    %v220 = vld [vmem:[#allocation2 + $0x8] sm:$0xff]
    %v221 = vld [vmem:[#allocation2 + $0x10] sm:$0xff]
    %v222 = vld [vmem:[#allocation2 + $0x18] sm:$0xff]
    %v223 = vld [vmem:[#allocation2 + $0x20] sm:$0xff]
    %v224 = vld [vmem:[#allocation2 + $0x28] sm:$0xff]
    %v225 = vld [vmem:[#allocation2 + $0x30] sm:$0xff]
    %v226 = vld [vmem:[#allocation2 + $0x38] sm:$0xff]
    %v227 = vld [vmem:[%s2] sm:$0x3]
    %v229 = vlaneseq
    %v230 = vshrl.u32 %v229, 7
    %v231 = vsub.s32 0, %v230
    %v232 = vrot.slane %v227, %v231
    %v233 = vlaneseq
    %v234 = vshrl.u32 %v233, 7
    %v235 = vsub.s32 1, %v234
    %v236 = vrot.slane %v227, %v235
    %v239 = vadd.f32 %v219, %v232
    %v240 = vadd.f32 %v220, %v236
    %v241 = vadd.f32 %v221, %v232
    %v242 = vadd.f32 %v222, %v236
    %v243 = vadd.f32 %v223, %v232
    %v244 = vadd.f32 %v224, %v236
    %v245 = vadd.f32 %v225, %v232
    %v246 = vadd.f32 %v226, %v236
    %247 = vst [vmem:[%s3] sm:$0xff] %v239
    %248 = vst [vmem:[%s3 + $0x8] sm:$0xff] %v240
    %249 = vst [vmem:[%s3 + $0x10] sm:$0xff] %v241
    %250 = vst [vmem:[%s3 + $0x18] sm:$0xff] %v242
    %251 = vst [vmem:[%s3 + $0x20] sm:$0xff] %v243
    %252 = vst [vmem:[%s3 + $0x28] sm:$0xff] %v244
    %253 = vst [vmem:[%s3 + $0x30] sm:$0xff] %v245
    %254 = vst [vmem:[%s3 + $0x38] sm:$0xff] %v246
  $region21: #{_lambda_.11} parent=0 // pred_fallthru
    _
  // Predicated region
  $region22: #{_lambda_.11} parent=0 // pred_check
    _
  $region23: #{_lambda_.11} parent=0 // pred_check_branch
    %256 = sbr.rel (0) target = $region25
  $region24: #{_lambda_.11} parent=0 // pred_region
    _
  $region25: #{_lambda_.11} parent=0 // pred_fallthru
    _
  // Predicated region
  $region26: #{_lambda_.11} parent=0 // pred_check
    _
  $region27: #{_lambda_.11} parent=0 // pred_check_branch
    %258 = sbr.rel (0) target = $region29
  $region28: #{_lambda_.11} parent=0 // pred_region
    _
  $region29: #{_lambda_.11} parent=0 // pred_fallthru
    _

// kernel: _lambda_.17
$region0: #{_lambda_.17}
  #allocation0 [shape = 'u32[]', space=smem, size = 0x4, offset = 0x4, fixed_abs, tag = 'smem constant byte address 0x4 - core index']
  #allocation1 [shape = 'u32[144,128]{1,0:T(1,128)}', space=vmem, size = 0x12000, scoped, tag = 'internal scratch']
  #allocation2 [shape = 'f32[32,128]{1,0:T(8,128)}', space=vmem, size = 0x4000, scoped, tag = 'scratch operand']
  %s0 = inlined_call_operand.vmem [shape: bf16[2,32,32], index: 0, kind: input, shape index: {}]
  %s1 = inlined_call_operand.vmem [shape: bf16[2,32,128], index: 1, kind: input, shape index: {}]
  %s2 = inlined_call_operand.vmem [shape: f32[1,128], index: 2, kind: input, shape index: {}]
  %s3 = inlined_call_operand.vmem [shape: f32[32,128], index: 3, kind: output, shape index: {}]
  %s4 = sld [smem:[#allocation0]]
  $region53: #{_lambda_.17} parent=0
    _
  %s6 = ssub.s32 1, %s4
  %s7 = scalar_select 0, %s6, %s4
  loop: start=0, step=1, limit=4
  $region2: #{_lambda_.17} parent=0 // loop_pre_header
    _
  $region3: #{_lambda_.17} parent=0 // loop_header
    %s9 = sphi 0, %s13
    %p10 = scmp.ge.s32.totalorder %s9, 4
    %s16 = sphi 0, %s35
    %s17 = sphi 0, %s31
    %s18 = sphi 0, %s27
    %s19 = sphi 0, %s16
    %s20 = sphi 0, %s17
    %s21 = sphi 0, %s18
    %s22 = sphi 0, %s19
    %s23 = sphi 0, %s20
    %s24 = sphi 0, %s21
    %s40 = sphi 0, %s42
    %s43 = sphi 0, %s40
    %s44 = sphi 0, %s43
    %s60 = sphi 0, %s44
    %s68 = sphi 0, %s70
    %s71 = sphi 0, %s68
    %s72 = sphi 0, %s71
    %s88 = sphi 0, %s72
    %s94 = sphi 0, %s96
    %s97 = sphi 0, %s94
    %s98 = sphi 0, %s97
    %s114 = sphi 0, %s98
    %s122 = sphi 0, %s124
    %s125 = sphi 0, %s122
    %s126 = sphi 0, %s125
    %s142 = sphi 0, %s126
  $region4: #{_lambda_.17} parent=0 // loop_header_branch
    %12 = sbr.rel (%p10) target = $region8
  $region5: #{_lambda_.17} parent=0 // loop_body
    %s14 = ssub.s32 %s9, 1
    %s15 = ssub.s32 %s9, 2
    %s25 = sadd.s32 1, %s18
    %p26 = scmp.ge.s32.totalorder %s25, 2
    %s27 = scalar_select %p26, 0, %s25
    %s28 = sadd.s32 1, %s17
    %s29 = scalar_select %p26, %s28, %s17
    %p30 = scmp.ge.s32.totalorder %s29, 1
    %s31 = scalar_select %p30, 0, %s29
    %s32 = sadd.s32 1, %s16
    %s33 = scalar_select %p30, %s32, %s16
    %p34 = scmp.ge.s32.totalorder %s33, 1
    %s35 = scalar_select %p34, 0, %s33
    %s36 = ssub.s32 %s18, %s27
    %s37 = ssub.s32 %s16, %s35
    %s38 = sor.u32 %s36, %s37
    %p39 = scmp.eq.s32.totalorder %s38, 0
    %s41 = sadd.s32 %s40, 1
    %s42 = scalar_select %p39, %s40, %s41
    %p45 = pneg %p39
    %p46 = scmp.eq.s32.totalorder %s9, 1
    %p47 = por %p45, %p46
    %p48 = scmp.ne.s32.totalorder %s40, %s43
    %p49 = scmp.eq.s32.totalorder %s9, 0
    %p50 = por %p48, %p49
    %p51 = scmp.ne.s32.totalorder %s40, %s43
    %p52 = scmp.eq.s32.totalorder %s14, 1
    %p53 = por %p51, %p52
    %p54 = scmp.ne.s32.totalorder %s43, %s44
    %p55 = scmp.eq.s32.totalorder %s14, 0
    %p56 = por %p54, %p55
    %p57 = scmp.ne.s32.totalorder %s43, %s44
    %p58 = scmp.eq.s32.totalorder %s15, 1
    %p59 = por %p57, %p58
    %p61 = scmp.ne.s32.totalorder %s44, %s60
    %p62 = scmp.eq.s32.totalorder %s15, 0
    %p63 = por %p61, %p62
    %s64 = ssub.s32 %s18, %s27
    %s65 = ssub.s32 %s17, %s31
    %s66 = sor.u32 %s64, %s65
    %p67 = scmp.eq.s32.totalorder %s66, 0
    %s69 = sadd.s32 %s68, 1
    %s70 = scalar_select %p67, %s68, %s69
    %p73 = pneg %p67
    %p74 = scmp.eq.s32.totalorder %s9, 1
    %p75 = por %p73, %p74
    %p76 = scmp.ne.s32.totalorder %s68, %s71
    %p77 = scmp.eq.s32.totalorder %s9, 0
    %p78 = por %p76, %p77
    %p79 = scmp.ne.s32.totalorder %s68, %s71
    %p80 = scmp.eq.s32.totalorder %s14, 1
    %p81 = por %p79, %p80
    %p82 = scmp.ne.s32.totalorder %s71, %s72
    %p83 = scmp.eq.s32.totalorder %s14, 0
    %p84 = por %p82, %p83
    %p85 = scmp.ne.s32.totalorder %s71, %s72
    %p86 = scmp.eq.s32.totalorder %s15, 1
    %p87 = por %p85, %p86
    %p89 = scmp.ne.s32.totalorder %s72, %s88
    %p90 = scmp.eq.s32.totalorder %s15, 0
    %p91 = por %p89, %p90
    %s92 = ssub.s32 %s17, %s31
    %p93 = scmp.eq.s32.totalorder %s92, 0
    %s95 = sadd.s32 %s94, 1
    %s96 = scalar_select %p93, %s94, %s95
    %p99 = pneg %p93
    %p100 = scmp.eq.s32.totalorder %s9, 1
    %p101 = por %p99, %p100
    %p102 = scmp.ne.s32.totalorder %s94, %s97
    %p103 = scmp.eq.s32.totalorder %s9, 0
    %p104 = por %p102, %p103
    %p105 = scmp.ne.s32.totalorder %s94, %s97
    %p106 = scmp.eq.s32.totalorder %s14, 1
    %p107 = por %p105, %p106
    %p108 = scmp.ne.s32.totalorder %s97, %s98
    %p109 = scmp.eq.s32.totalorder %s14, 0
    %p110 = por %p108, %p109
    %p111 = scmp.ne.s32.totalorder %s97, %s98
    %p112 = scmp.eq.s32.totalorder %s15, 1
    %p113 = por %p111, %p112
    %p115 = scmp.ne.s32.totalorder %s98, %s114
    %p116 = scmp.eq.s32.totalorder %s15, 0
    %p117 = por %p115, %p116
    %s118 = ssub.s32 %s16, %s35
    %s119 = ssub.s32 %s17, %s31
    %s120 = sor.u32 %s118, %s119
    %p121 = scmp.eq.s32.totalorder %s120, 0
    %s123 = sadd.s32 %s122, 1
    %s124 = scalar_select %p121, %s122, %s123
    %p127 = pneg %p121
    %p128 = scmp.eq.s32.totalorder %s9, 1
    %p129 = por %p127, %p128
    %p130 = scmp.ne.s32.totalorder %s122, %s125
    %p131 = scmp.eq.s32.totalorder %s9, 0
    %p132 = por %p130, %p131
    %p133 = scmp.ne.s32.totalorder %s122, %s125
    %p134 = scmp.eq.s32.totalorder %s14, 1
    %p135 = por %p133, %p134
    %p136 = scmp.ne.s32.totalorder %s125, %s126
    %p137 = scmp.eq.s32.totalorder %s14, 0
    %p138 = por %p136, %p137
    %p139 = scmp.ne.s32.totalorder %s125, %s126
    %p140 = scmp.eq.s32.totalorder %s15, 1
    %p141 = por %p139, %p140
    %p143 = scmp.ne.s32.totalorder %s126, %s142
    %p144 = scmp.eq.s32.totalorder %s15, 0
    %p145 = por %p143, %p144
    %p146 = scmp.le.s32.totalorder 1, %s9
    %p147 = scmp.lt.s32.totalorder %s9, 3
    %p148 = pnand %p146, %p147
    %p149 = pneg %p148
    // Predicated region
    $region9: #{_lambda_.17} parent=5 // pred_check
      _
    $region10: #{_lambda_.17} parent=5 // pred_check_branch
      %151 = sbr.rel (%p148) target = $region12
    $region11: #{_lambda_.17} parent=5 // pred_region
      %s152 = ssub.s32 %s9, 1
      // Predicated region
      $region13: #{_lambda_.17} parent=11 // pred_check
        %p153 = pneg %p110
      $region14: #{_lambda_.17} parent=11 // pred_check_branch
        %155 = sbr.rel (%p153) target = $region16
      $region15: #{_lambda_.17} parent=11 // pred_region
        %p156 = scmp.lt.s32.totalorder %s20, 0
        %s157 = scalar_select %p156, %s20, 0
        %s158 = scalar_lea.vmem %s2, %s157
      $region16: #{_lambda_.17} parent=11 // pred_fallthru
        _
    $region12: #{_lambda_.17} parent=5 // pred_fallthru
      _
    %p159 = scmp.lt.s32.totalorder %s9, 2
    // Predicated region
    $region17: #{_lambda_.17} parent=5 // pred_check
      %p160 = pneg %p159
    $region18: #{_lambda_.17} parent=5 // pred_check_branch
      %162 = sbr.rel (%p160) target = $region20
    $region19: #{_lambda_.17} parent=5 // pred_region
      // Predicated region
      $region21: #{_lambda_.17} parent=19 // pred_check
        %p163 = pneg %p50
      $region22: #{_lambda_.17} parent=19 // pred_check_branch
        %165 = sbr.rel (%p163) target = $region24
      $region23: #{_lambda_.17} parent=19 // pred_region
        %s166 = smul.u32 4, %s16
        %p167 = scmp.lt.s32.totalorder %s18, 1
        %s168 = scalar_select %p167, %s18, 1
        %p169 = scmp.lt.s32.totalorder %s166, 3
        %s170 = scalar_select %p169, %s166, 3
        %s171 = smul.addr %s168, 4
        %s172 = sadd.s32 %s170, %s171
        %s173 = smul.addr %s172, 4
        %s174 = scalar_lea.vmem %s0, %s173
        %s175 = smul.u32 4, %s16
      $region24: #{_lambda_.17} parent=19 // pred_fallthru
        _
      // Predicated region
      $region25: #{_lambda_.17} parent=19 // pred_check
        %p176 = pneg %p78
      $region26: #{_lambda_.17} parent=19 // pred_check_branch
        %178 = sbr.rel (%p176) target = $region28
      $region27: #{_lambda_.17} parent=19 // pred_region
        %p179 = scmp.lt.s32.totalorder %s18, 1
        %s180 = scalar_select %p179, %s18, 1
        %p181 = scmp.lt.s32.totalorder %s17, 0
        %s182 = scalar_select %p181, %s17, 0
        %s183 = smul.addr %s180, 4
        %s184 = sadd.s32 %s182, %s183
        %s185 = smul.addr %s184, 4
        %s186 = scalar_lea.vmem %s1, %s185
      $region28: #{_lambda_.17} parent=19 // pred_fallthru
        _
    $region20: #{_lambda_.17} parent=5 // pred_fallthru
      _
    %p187 = scmp.le.s32.totalorder 1, %s9
    %p188 = scmp.lt.s32.totalorder %s9, 3
    %p189 = pnand %p187, %p188
    %p190 = pneg %p189
    // Predicated region
    $region29: #{_lambda_.17} parent=5 // pred_check
      _
    $region30: #{_lambda_.17} parent=5 // pred_check_branch
      %192 = sbr.rel (%p189) target = $region32
    $region31: #{_lambda_.17} parent=5 // pred_region
      %s193 = ssub.s32 %s9, 1
      %s194 = smul.u32 4, %s19
      %p195 = scmp.lt.s32.totalorder %s21, 1
      %s196 = scalar_select %p195, %s21, 1
      %p197 = scmp.lt.s32.totalorder %s194, 3
      %s198 = scalar_select %p197, %s194, 3
      %s199 = smul.addr %s196, 4
      %s200 = sadd.s32 %s198, %s199
      %s201 = smul.addr %s200, 4
      %s202 = scalar_lea.vmem %s0, %s201
      %p203 = pneg %p56
      %p204 = pneg %p53
      %p205 = scmp.lt.s32.totalorder %s21, 1
      %s206 = scalar_select %p205, %s21, 1
      %p207 = scmp.lt.s32.totalorder %s20, 0
      %s208 = scalar_select %p207, %s20, 0
      %s209 = smul.addr %s206, 4
      %s210 = sadd.s32 %s208, %s209
      %s211 = smul.addr %s210, 4
      %s212 = scalar_lea.vmem %s1, %s211
      %p213 = pneg %p84
      %p214 = pneg %p81
      %p215 = scmp.lt.s32.totalorder %s20, 0
      %s216 = scalar_select %p215, %s20, 0
      %s217 = scalar_lea.vmem %s2, %s216
      %p218 = pneg %p110
      %p219 = pneg %p107
      %p220 = pneg %p138
      %p221 = pneg %p135
      %s222 = smul.u32 4, %s19
      %p223 = scmp.lt.s32.totalorder %s222, 3
      %s224 = scalar_select %p223, %s222, 3
      %p225 = scmp.lt.s32.totalorder %s20, 0
      %s226 = scalar_select %p225, %s20, 0
      %s227 = sadd.s32 %s226, %s224
      %s228 = smul.addr %s227, 8
      %s229 = scalar_lea.vmem %s3, %s228
      %s230 = smul.u32 4, %s19
      %p231 = scmp.lt.s32.totalorder %s21, 1
      %s232 = scalar_select %p231, %s21, 1
      %p233 = scmp.lt.s32.totalorder %s230, 3
      %s234 = scalar_select %p233, %s230, 3
      %s235 = smul.addr %s232, 4
      %s236 = sadd.s32 %s234, %s235
      %s237 = smul.addr %s236, 4
      %s238 = scalar_lea.vmem %s0, %s237
      %s239 = smul.u32 4, %s19
      %p240 = scmp.lt.s32.totalorder %s21, 1
      %s241 = scalar_select %p240, %s21, 1
      %p242 = scmp.lt.s32.totalorder %s20, 0
      %s243 = scalar_select %p242, %s20, 0
      %s244 = smul.addr %s241, 4
      %s245 = sadd.s32 %s243, %s244
      %s246 = smul.addr %s245, 4
      %s247 = scalar_lea.vmem %s1, %s246
      %p248 = scmp.lt.s32.totalorder %s20, 0
      %s249 = scalar_select %p248, %s20, 0
      %s250 = scalar_lea.vmem %s2, %s249
      %s251 = smul.u32 4, %s19
      %p252 = scmp.lt.s32.totalorder %s251, 3
      %s253 = scalar_select %p252, %s251, 3
      %p254 = scmp.lt.s32.totalorder %s20, 0
      %s255 = scalar_select %p254, %s20, 0
      %s256 = sadd.s32 %s255, %s253
      %s257 = smul.addr %s256, 8
      %s258 = scalar_lea.vmem %s3, %s257
      %s259 = smul.u32 4, %s19
      %p261 = scmp.eq.s32.totalorder %s21, 0
      // Predicated region
      $region33: #{_lambda_.17} parent=31 // pred_check
        %p262 = pneg %p261
      $region34: #{_lambda_.17} parent=31 // pred_check_branch
        %264 = sbr.rel (%p262) target = $region36
      $region35: #{_lambda_.17} parent=31 // pred_region
        %265 = vst [vmem:[#allocation2] sm:$0xff] 0.0
        %266 = vst [vmem:[#allocation2 + $0x8] sm:$0xff] 0.0
        %267 = vst [vmem:[#allocation2 + $0x10] sm:$0xff] 0.0
        %268 = vst [vmem:[#allocation2 + $0x18] sm:$0xff] 0.0
      $region36: #{_lambda_.17} parent=31 // pred_fallthru
        _
      %v269 = vld [vmem:[#allocation2] sm:$0xff]
      %v270 = vld [vmem:[#allocation2 + $0x8] sm:$0xff]
      %v271 = vld [vmem:[#allocation2 + $0x10] sm:$0xff]
      %v272 = vld [vmem:[#allocation2 + $0x18] sm:$0xff]
      %v273 = vld [vmem:[%s238] sm:$0xf]
      %v274 = vld [vmem:[%s238 + $0x4] sm:$0xf]
      %v275 = vld [vmem:[%s238 + $0x8] sm:$0xf]
      %v276 = vld [vmem:[%s238 + $0xc] sm:$0xf]
      %v277 = vld [vmem:[%s247] sm:$0xf]
      %v278 = vld [vmem:[%s247 + $0x4] sm:$0xf]
      %v279 = vld [vmem:[%s247 + $0x8] sm:$0xf]
      %v280 = vld [vmem:[%s247 + $0xc] sm:$0xf]
      %v285 = vunpack.c.l.b16 %v273
      %v286 = vunpack.c.l.b16 %v274
      %v287 = vunpack.c.l.b16 %v275
      %v288 = vunpack.c.l.b16 %v276
      %v289 = vpack.c.b16 %v286, %v285
      %v290 = vpack.c.b16 %v288, %v287
      %v295 = vunpack.c.l.b16 %v277
      %v296 = vunpack.c.l.b16 %v278
      %v297 = vunpack.c.l.b16 %v279
      %v298 = vunpack.c.l.b16 %v280
      %v299 = vpack.c.b16 %v296, %v295
      %v300 = vpack.c.b16 %v298, %v297
      %vm303 = vcmask 261120
      %v305 = vsel %vm303, %v289, 0
      %v308 = vsel %vm303, %v290, 0
      %310 = vmatprep.subr.bf16.mxu0 0
      %311 = vmatpush1.bf16.msra.mxu0 %v299
      %312 = vmatprep.subr.bf16.mxu0 0
      %313 = vmatpush1.bf16.msra.mxu0 %v300
      %314 = vmatprep.subr.bf16.mxu0 0
      %315 = vmatpush1.bf16.msra.mxu0 0
      %316 = vmatprep.subr.bf16.mxu0 0
      %317 = vmatpush1.bf16.msra.mxu0 0
      %318 = vmatprep.subr.bf16.mxu0 0
      %319 = vmatpush1.bf16.msra.mxu0 0
      %320 = vmatprep.subr.bf16.mxu0 0
      %321 = vmatpush1.bf16.msra.mxu0 0
      %322 = vmatprep.subr.bf16.mxu0 0
      %323 = vmatpush1.bf16.msra.mxu0 0
      %324 = vmatprep.subr.bf16.mxu0 0
      %325 = vmatpush1.bf16.msra.mxu0 0
      %326 = vmatprep.subr.bf16.mxu0 0
      %327 = vmatpush1.bf16.msra.mxu0 0
      %328 = vmatprep.subr.bf16.mxu0 0
      %329 = vmatpush1.bf16.msra.mxu0 0
      %330 = vmatprep.subr.bf16.mxu0 0
      %331 = vmatpush1.bf16.msra.mxu0 0
      %332 = vmatprep.subr.bf16.mxu0 0
      %333 = vmatpush1.bf16.msra.mxu0 0
      %334 = vmatprep.subr.bf16.mxu0 0
      %335 = vmatpush1.bf16.msra.mxu0 0
      %336 = vmatprep.subr.bf16.mxu0 0
      %337 = vmatpush1.bf16.msra.mxu0 0
      %338 = vmatprep.subr.bf16.mxu0 0
      %339 = vmatpush1.bf16.msra.mxu0 0
      %340 = vmatprep.subr.bf16.mxu0 0
      %341 = vmatpush1.bf16.msra.mxu0 0
      %342 = vmatprep.mubr.bf16.mxu0 0
      %343 = vmatmul.mubr.bf16.gmra.mrb[0].mxu0 %v305
      %v344 = vpop.f32.mrb[0].mxu0
      %v345 = vadd.f32 0.0, %v344
      %v346 = vpop.f32.mrb[0].mxu0
      %v347 = vpop.f32.mrb[0].mxu0
      %v348 = vadd.f32 0.0, %v347
      %v349 = vpop.f32.mrb[0].mxu0
      %350 = vmatprep.mubr.bf16.mxu0 0
      %351 = vmatmul.mubr.bf16.gmra.mrb[0].mxu0 %v308
      %v352 = vpop.f32.mrb[0].mxu0
      %v353 = vadd.f32 0.0, %v352
      %v354 = vpop.f32.mrb[0].mxu0
      %v355 = vpop.f32.mrb[0].mxu0
      %v356 = vadd.f32 0.0, %v355
      %v357 = vpop.f32.mrb[0].mxu0
      %358 = vdwg.mxu0
      %v359 = vadd.f32 %v269, %v345
      %v360 = vadd.f32 %v270, %v348
      %v361 = vadd.f32 %v271, %v353
      %v362 = vadd.f32 %v272, %v356
      %363 = vst [vmem:[#allocation2] sm:$0xff] %v359
      %364 = vst [vmem:[#allocation2 + $0x8] sm:$0xff] %v360
      %365 = vst [vmem:[#allocation2 + $0x10] sm:$0xff] %v361
      %366 = vst [vmem:[#allocation2 + $0x18] sm:$0xff] %v362
      %p367 = scmp.eq.s32.totalorder %s21, 1
      // Predicated region
      $region37: #{_lambda_.17} parent=31 // pred_check
        %p368 = pneg %p367
      $region38: #{_lambda_.17} parent=31 // pred_check_branch
        %370 = sbr.rel (%p368) target = $region40
      $region39: #{_lambda_.17} parent=31 // pred_region
        %v371 = vld [vmem:[#allocation2] sm:$0xff]
        %v372 = vld [vmem:[#allocation2 + $0x8] sm:$0xff]
        %v373 = vld [vmem:[#allocation2 + $0x10] sm:$0xff]
        %v374 = vld [vmem:[#allocation2 + $0x18] sm:$0xff]
        %v375 = vld [vmem:[%s250] sm:$0x1]
        %v377 = vlaneseq
        %v378 = vshrl.u32 %v377, 7
        %v379 = vsub.s32 0, %v378
        %v380 = vrot.slane %v375, %v379
        %v382 = vadd.f32 %v371, %v380
        %v383 = vadd.f32 %v372, %v380
        %v384 = vadd.f32 %v373, %v380
        %v385 = vadd.f32 %v374, %v380
        %v386 = vlaneseq
        %v387 = vand.u32 %v386, 127
        %vm388 = vcmp.lt.s32.totalorder %v387, 16
        %v389 = vsel %vm388, %v382, -1e+30
        %v390 = vsel %vm388, %v383, -1e+30
        %v391 = vsel %vm388, %v384, -1e+30
        %v392 = vsel %vm388, %v385, -1e+30
        %393 = vmax.xlane.f32.xlu0 %v389
        %v394 = vpop.xlane.xlu0 %393
        %395 = vmax.xlane.f32.xlu0 %v390
        %v396 = vpop.xlane.xlu0 %395
        %397 = vmax.xlane.f32.xlu0 %v391
        %v398 = vpop.xlane.xlu0 %397
        %399 = vmax.xlane.f32.xlu0 %v392
        %v400 = vpop.xlane.xlu0 %399
        %v401 = vsub.f32 %v389, %v394
        %v402 = vsub.f32 %v390, %v396
        %v403 = vsub.f32 %v391, %v398
        %v404 = vsub.f32 %v392, %v400
        %v405 = vmul.f32 %v401, 1.442695
        %v406 = vpow.pop %v405
        %v407 = vmul.f32 %v402, 1.442695
        %v408 = vpow.pop %v407
        %v409 = vmul.f32 %v403, 1.442695
        %v410 = vpow.pop %v409
        %v411 = vmul.f32 %v404, 1.442695
        %v412 = vpow.pop %v411
        %413 = vadd.xlane.f32.xlu0 %v406
        %v414 = vpop.xlane.xlu0 %413
        %415 = vadd.xlane.f32.xlu0 %v408
        %v416 = vpop.xlane.xlu0 %415
        %417 = vadd.xlane.f32.xlu0 %v410
        %v418 = vpop.xlane.xlu0 %417
        %419 = vadd.xlane.f32.xlu0 %v412
        %v420 = vpop.xlane.xlu0 %419
        %v421 = vlog2.pop %v414
        %v422 = vmul.f32 %v421, 0.6931472
        %v423 = vlog2.pop %v416
        %v424 = vmul.f32 %v423, 0.6931472
        %v425 = vlog2.pop %v418
        %v426 = vmul.f32 %v425, 0.6931472
        %v427 = vlog2.pop %v420
        %v428 = vmul.f32 %v427, 0.6931472
        %v429 = vsub.f32 %v401, %v422
        %v430 = vsub.f32 %v402, %v424
        %v431 = vsub.f32 %v403, %v426
        %v432 = vsub.f32 %v404, %v428
        %433 = vst [vmem:[%s258] sm:$0xff] %v429
        %434 = vst [vmem:[%s258 + $0x8] sm:$0xff] %v430
        %435 = vst [vmem:[%s258 + $0x10] sm:$0xff] %v431
        %436 = vst [vmem:[%s258 + $0x18] sm:$0xff] %v432
      $region40: #{_lambda_.17} parent=31 // pred_fallthru
        _
      %s437 = smul.u32 4, %s19
      %p438 = scmp.lt.s32.totalorder %s437, 3
      %s439 = scalar_select %p438, %s437, 3
      %p440 = scmp.lt.s32.totalorder %s20, 0
      %s441 = scalar_select %p440, %s20, 0
      %s442 = sadd.s32 %s441, %s439
      %s443 = smul.addr %s442, 8
      %s444 = scalar_lea.vmem %s3, %s443
      // Predicated region
      $region41: #{_lambda_.17} parent=31 // pred_check
        %p445 = pneg %p135
      $region42: #{_lambda_.17} parent=31 // pred_check_branch
        %447 = sbr.rel (%p445) target = $region44
      $region43: #{_lambda_.17} parent=31 // pred_region
        %s448 = smul.u32 4, %s19
      $region44: #{_lambda_.17} parent=31 // pred_fallthru
        _
      // Predicated region
      $region45: #{_lambda_.17} parent=31 // pred_check
        %p449 = pneg %p135
      $region46: #{_lambda_.17} parent=31 // pred_check_branch
        %451 = sbr.rel (%p449) target = $region48
      $region47: #{_lambda_.17} parent=31 // pred_region
        %s452 = smul.u32 4, %s19
        %p453 = scmp.lt.s32.totalorder %s452, 3
        %s454 = scalar_select %p453, %s452, 3
        %p455 = scmp.lt.s32.totalorder %s20, 0
        %s456 = scalar_select %p455, %s20, 0
        %s457 = sadd.s32 %s456, %s454
        %s458 = smul.addr %s457, 8
        %s459 = scalar_lea.vmem %s3, %s458
      $region48: #{_lambda_.17} parent=31 // pred_fallthru
        _
    $region32: #{_lambda_.17} parent=5 // pred_fallthru
      _
    %p460 = scmp.le.s32.totalorder 2, %s9
    // Predicated region
    $region49: #{_lambda_.17} parent=5 // pred_check
      %p461 = pneg %p460
    $region50: #{_lambda_.17} parent=5 // pred_check_branch
      %463 = sbr.rel (%p461) target = $region52
    $region51: #{_lambda_.17} parent=5 // pred_region
      %s464 = ssub.s32 %s9, 2
    $region52: #{_lambda_.17} parent=5 // pred_fallthru
      _
  $region6: #{_lambda_.17} parent=0 // loop_footer
    %s13 = sadd.s32 1, %s9
  $region7: #{_lambda_.17} parent=0 // loop_footer_branch
    %8 = sbr.rel target = $region3
  $region8: #{_lambda_.17} parent=0 // loop_exit
    _

// kernel: _lambda_.13
$region0: #{_lambda_.13}
  #allocation0 [shape = 'u32[]', space=smem, size = 0x4, offset = 0x4, fixed_abs, tag = 'smem constant byte address 0x4 - core index']
  #allocation1 [shape = 'u32[144,128]{1,0:T(1,128)}', space=vmem, size = 0x12000, scoped, tag = 'internal scratch']
  #allocation2 [shape = 'f32[32,256]{1,0:T(8,128)}', space=vmem, size = 0x8000, scoped, tag = 'scratch operand']
  %s0 = inlined_call_operand.vmem [shape: bf16[2,32,32], index: 0, kind: input, shape index: {}]
  %s1 = inlined_call_operand.vmem [shape: bf16[2,32,256], index: 1, kind: input, shape index: {}]
  %s2 = inlined_call_operand.vmem [shape: f32[1,256], index: 2, kind: input, shape index: {}]
  %s3 = inlined_call_operand.vmem [shape: f32[32,256], index: 3, kind: output, shape index: {}]
  %s4 = sld [smem:[#allocation0]]
  $region53: #{_lambda_.13} parent=0
    _
  %s6 = ssub.s32 1, %s4
  %s7 = scalar_select 0, %s6, %s4
  loop: start=0, step=1, limit=4
  $region2: #{_lambda_.13} parent=0 // loop_pre_header
    _
  $region3: #{_lambda_.13} parent=0 // loop_header
    %s9 = sphi 0, %s13
    %p10 = scmp.ge.s32.totalorder %s9, 4
    %s16 = sphi 0, %s35
    %s17 = sphi 0, %s31
    %s18 = sphi 0, %s27
    %s19 = sphi 0, %s16
    %s20 = sphi 0, %s17
    %s21 = sphi 0, %s18
    %s22 = sphi 0, %s19
    %s23 = sphi 0, %s20
    %s24 = sphi 0, %s21
    %s40 = sphi 0, %s42
    %s43 = sphi 0, %s40
    %s44 = sphi 0, %s43
    %s60 = sphi 0, %s44
    %s68 = sphi 0, %s70
    %s71 = sphi 0, %s68
    %s72 = sphi 0, %s71
    %s88 = sphi 0, %s72
    %s94 = sphi 0, %s96
    %s97 = sphi 0, %s94
    %s98 = sphi 0, %s97
    %s114 = sphi 0, %s98
    %s122 = sphi 0, %s124
    %s125 = sphi 0, %s122
    %s126 = sphi 0, %s125
    %s142 = sphi 0, %s126
  $region4: #{_lambda_.13} parent=0 // loop_header_branch
    %12 = sbr.rel (%p10) target = $region8
  $region5: #{_lambda_.13} parent=0 // loop_body
    %s14 = ssub.s32 %s9, 1
    %s15 = ssub.s32 %s9, 2
    %s25 = sadd.s32 1, %s18
    %p26 = scmp.ge.s32.totalorder %s25, 2
    %s27 = scalar_select %p26, 0, %s25
    %s28 = sadd.s32 1, %s17
    %s29 = scalar_select %p26, %s28, %s17
    %p30 = scmp.ge.s32.totalorder %s29, 1
    %s31 = scalar_select %p30, 0, %s29
    %s32 = sadd.s32 1, %s16
    %s33 = scalar_select %p30, %s32, %s16
    %p34 = scmp.ge.s32.totalorder %s33, 1
    %s35 = scalar_select %p34, 0, %s33
    %s36 = ssub.s32 %s18, %s27
    %s37 = ssub.s32 %s16, %s35
    %s38 = sor.u32 %s36, %s37
    %p39 = scmp.eq.s32.totalorder %s38, 0
    %s41 = sadd.s32 %s40, 1
    %s42 = scalar_select %p39, %s40, %s41
    %p45 = pneg %p39
    %p46 = scmp.eq.s32.totalorder %s9, 1
    %p47 = por %p45, %p46
    %p48 = scmp.ne.s32.totalorder %s40, %s43
    %p49 = scmp.eq.s32.totalorder %s9, 0
    %p50 = por %p48, %p49
    %p51 = scmp.ne.s32.totalorder %s40, %s43
    %p52 = scmp.eq.s32.totalorder %s14, 1
    %p53 = por %p51, %p52
    %p54 = scmp.ne.s32.totalorder %s43, %s44
    %p55 = scmp.eq.s32.totalorder %s14, 0
    %p56 = por %p54, %p55
    %p57 = scmp.ne.s32.totalorder %s43, %s44
    %p58 = scmp.eq.s32.totalorder %s15, 1
    %p59 = por %p57, %p58
    %p61 = scmp.ne.s32.totalorder %s44, %s60
    %p62 = scmp.eq.s32.totalorder %s15, 0
    %p63 = por %p61, %p62
    %s64 = ssub.s32 %s18, %s27
    %s65 = ssub.s32 %s17, %s31
    %s66 = sor.u32 %s64, %s65
    %p67 = scmp.eq.s32.totalorder %s66, 0
    %s69 = sadd.s32 %s68, 1
    %s70 = scalar_select %p67, %s68, %s69
    %p73 = pneg %p67
    %p74 = scmp.eq.s32.totalorder %s9, 1
    %p75 = por %p73, %p74
    %p76 = scmp.ne.s32.totalorder %s68, %s71
    %p77 = scmp.eq.s32.totalorder %s9, 0
    %p78 = por %p76, %p77
    %p79 = scmp.ne.s32.totalorder %s68, %s71
    %p80 = scmp.eq.s32.totalorder %s14, 1
    %p81 = por %p79, %p80
    %p82 = scmp.ne.s32.totalorder %s71, %s72
    %p83 = scmp.eq.s32.totalorder %s14, 0
    %p84 = por %p82, %p83
    %p85 = scmp.ne.s32.totalorder %s71, %s72
    %p86 = scmp.eq.s32.totalorder %s15, 1
    %p87 = por %p85, %p86
    %p89 = scmp.ne.s32.totalorder %s72, %s88
    %p90 = scmp.eq.s32.totalorder %s15, 0
    %p91 = por %p89, %p90
    %s92 = ssub.s32 %s17, %s31
    %p93 = scmp.eq.s32.totalorder %s92, 0
    %s95 = sadd.s32 %s94, 1
    %s96 = scalar_select %p93, %s94, %s95
    %p99 = pneg %p93
    %p100 = scmp.eq.s32.totalorder %s9, 1
    %p101 = por %p99, %p100
    %p102 = scmp.ne.s32.totalorder %s94, %s97
    %p103 = scmp.eq.s32.totalorder %s9, 0
    %p104 = por %p102, %p103
    %p105 = scmp.ne.s32.totalorder %s94, %s97
    %p106 = scmp.eq.s32.totalorder %s14, 1
    %p107 = por %p105, %p106
    %p108 = scmp.ne.s32.totalorder %s97, %s98
    %p109 = scmp.eq.s32.totalorder %s14, 0
    %p110 = por %p108, %p109
    %p111 = scmp.ne.s32.totalorder %s97, %s98
    %p112 = scmp.eq.s32.totalorder %s15, 1
    %p113 = por %p111, %p112
    %p115 = scmp.ne.s32.totalorder %s98, %s114
    %p116 = scmp.eq.s32.totalorder %s15, 0
    %p117 = por %p115, %p116
    %s118 = ssub.s32 %s16, %s35
    %s119 = ssub.s32 %s17, %s31
    %s120 = sor.u32 %s118, %s119
    %p121 = scmp.eq.s32.totalorder %s120, 0
    %s123 = sadd.s32 %s122, 1
    %s124 = scalar_select %p121, %s122, %s123
    %p127 = pneg %p121
    %p128 = scmp.eq.s32.totalorder %s9, 1
    %p129 = por %p127, %p128
    %p130 = scmp.ne.s32.totalorder %s122, %s125
    %p131 = scmp.eq.s32.totalorder %s9, 0
    %p132 = por %p130, %p131
    %p133 = scmp.ne.s32.totalorder %s122, %s125
    %p134 = scmp.eq.s32.totalorder %s14, 1
    %p135 = por %p133, %p134
    %p136 = scmp.ne.s32.totalorder %s125, %s126
    %p137 = scmp.eq.s32.totalorder %s14, 0
    %p138 = por %p136, %p137
    %p139 = scmp.ne.s32.totalorder %s125, %s126
    %p140 = scmp.eq.s32.totalorder %s15, 1
    %p141 = por %p139, %p140
    %p143 = scmp.ne.s32.totalorder %s126, %s142
    %p144 = scmp.eq.s32.totalorder %s15, 0
    %p145 = por %p143, %p144
    %p146 = scmp.le.s32.totalorder 1, %s9
    %p147 = scmp.lt.s32.totalorder %s9, 3
    %p148 = pnand %p146, %p147
    %p149 = pneg %p148
    // Predicated region
    $region9: #{_lambda_.13} parent=5 // pred_check
      _
    $region10: #{_lambda_.13} parent=5 // pred_check_branch
      %151 = sbr.rel (%p148) target = $region12
    $region11: #{_lambda_.13} parent=5 // pred_region
      %s152 = ssub.s32 %s9, 1
      // Predicated region
      $region13: #{_lambda_.13} parent=11 // pred_check
        %p153 = pneg %p110
      $region14: #{_lambda_.13} parent=11 // pred_check_branch
        %155 = sbr.rel (%p153) target = $region16
      $region15: #{_lambda_.13} parent=11 // pred_region
        %s156 = smul.u32 2, %s20
        %p157 = scmp.lt.s32.totalorder %s156, 1
        %s158 = scalar_select %p157, %s156, 1
        %s159 = scalar_lea.vmem %s2, %s158
        %s160 = smul.u32 2, %s20
      $region16: #{_lambda_.13} parent=11 // pred_fallthru
        _
    $region12: #{_lambda_.13} parent=5 // pred_fallthru
      _
    %p161 = scmp.lt.s32.totalorder %s9, 2
    // Predicated region
    $region17: #{_lambda_.13} parent=5 // pred_check
      %p162 = pneg %p161
    $region18: #{_lambda_.13} parent=5 // pred_check_branch
      %164 = sbr.rel (%p162) target = $region20
    $region19: #{_lambda_.13} parent=5 // pred_region
      // Predicated region
      $region21: #{_lambda_.13} parent=19 // pred_check
        %p165 = pneg %p50
      $region22: #{_lambda_.13} parent=19 // pred_check_branch
        %167 = sbr.rel (%p165) target = $region24
      $region23: #{_lambda_.13} parent=19 // pred_region
        %s168 = smul.u32 4, %s16
        %p169 = scmp.lt.s32.totalorder %s18, 1
        %s170 = scalar_select %p169, %s18, 1
        %p171 = scmp.lt.s32.totalorder %s168, 3
        %s172 = scalar_select %p171, %s168, 3
        %s173 = smul.addr %s170, 4
        %s174 = sadd.s32 %s172, %s173
        %s175 = smul.addr %s174, 4
        %s176 = scalar_lea.vmem %s0, %s175
        %s177 = smul.u32 4, %s16
      $region24: #{_lambda_.13} parent=19 // pred_fallthru
        _
      // Predicated region
      $region25: #{_lambda_.13} parent=19 // pred_check
        %p178 = pneg %p78
      $region26: #{_lambda_.13} parent=19 // pred_check_branch
        %180 = sbr.rel (%p178) target = $region28
      $region27: #{_lambda_.13} parent=19 // pred_region
        %s181 = smul.u32 2, %s17
        %p182 = scmp.lt.s32.totalorder %s18, 1
        %s183 = scalar_select %p182, %s18, 1
        %p184 = scmp.lt.s32.totalorder %s181, 1
        %s185 = scalar_select %p184, %s181, 1
        %s186 = smul.addr %s183, 8
        %s187 = sadd.s32 %s185, %s186
        %s188 = smul.addr %s187, 4
        %s189 = scalar_lea.vmem %s1, %s188
        %s190 = smul.u32 2, %s17
      $region28: #{_lambda_.13} parent=19 // pred_fallthru
        _
    $region20: #{_lambda_.13} parent=5 // pred_fallthru
      _
    %p191 = scmp.le.s32.totalorder 1, %s9
    %p192 = scmp.lt.s32.totalorder %s9, 3
    %p193 = pnand %p191, %p192
    %p194 = pneg %p193
    // Predicated region
    $region29: #{_lambda_.13} parent=5 // pred_check
      _
    $region30: #{_lambda_.13} parent=5 // pred_check_branch
      %196 = sbr.rel (%p193) target = $region32
    $region31: #{_lambda_.13} parent=5 // pred_region
      %s197 = ssub.s32 %s9, 1
      %s198 = smul.u32 4, %s19
      %p199 = scmp.lt.s32.totalorder %s21, 1
      %s200 = scalar_select %p199, %s21, 1
      %p201 = scmp.lt.s32.totalorder %s198, 3
      %s202 = scalar_select %p201, %s198, 3
      %s203 = smul.addr %s200, 4
      %s204 = sadd.s32 %s202, %s203
      %s205 = smul.addr %s204, 4
      %s206 = scalar_lea.vmem %s0, %s205
      %p207 = pneg %p56
      %p208 = pneg %p53
      %s209 = smul.u32 2, %s20
      %p210 = scmp.lt.s32.totalorder %s21, 1
      %s211 = scalar_select %p210, %s21, 1
      %p212 = scmp.lt.s32.totalorder %s209, 1
      %s213 = scalar_select %p212, %s209, 1
      %s214 = smul.addr %s211, 8
      %s215 = sadd.s32 %s213, %s214
      %s216 = smul.addr %s215, 4
      %s217 = scalar_lea.vmem %s1, %s216
      %p218 = pneg %p84
      %p219 = pneg %p81
      %s220 = smul.u32 2, %s20
      %p221 = scmp.lt.s32.totalorder %s220, 1
      %s222 = scalar_select %p221, %s220, 1
      %s223 = scalar_lea.vmem %s2, %s222
      %p224 = pneg %p110
      %p225 = pneg %p107
      %p226 = pneg %p138
      %p227 = pneg %p135
      %s228 = smul.u32 4, %s19
      %s229 = smul.u32 2, %s20
      %p230 = scmp.lt.s32.totalorder %s228, 3
      %s231 = scalar_select %p230, %s228, 3
      %p232 = scmp.lt.s32.totalorder %s229, 1
      %s233 = scalar_select %p232, %s229, 1
      %s234 = smul.addr %s231, 2
      %s235 = sadd.s32 %s233, %s234
      %s236 = smul.addr %s235, 8
      %s237 = scalar_lea.vmem %s3, %s236
      %s238 = smul.u32 4, %s19
      %p239 = scmp.lt.s32.totalorder %s21, 1
      %s240 = scalar_select %p239, %s21, 1
      %p241 = scmp.lt.s32.totalorder %s238, 3
      %s242 = scalar_select %p241, %s238, 3
      %s243 = smul.addr %s240, 4
      %s244 = sadd.s32 %s242, %s243
      %s245 = smul.addr %s244, 4
      %s246 = scalar_lea.vmem %s0, %s245
      %s247 = smul.u32 4, %s19
      %s248 = smul.u32 2, %s20
      %p249 = scmp.lt.s32.totalorder %s21, 1
      %s250 = scalar_select %p249, %s21, 1
      %p251 = scmp.lt.s32.totalorder %s248, 1
      %s252 = scalar_select %p251, %s248, 1
      %s253 = smul.addr %s250, 8
      %s254 = sadd.s32 %s252, %s253
      %s255 = smul.addr %s254, 4
      %s256 = scalar_lea.vmem %s1, %s255
      %s257 = smul.u32 2, %s20
      %s258 = smul.u32 2, %s20
      %p259 = scmp.lt.s32.totalorder %s258, 1
      %s260 = scalar_select %p259, %s258, 1
      %s261 = scalar_lea.vmem %s2, %s260
      %s262 = smul.u32 2, %s20
      %s263 = smul.u32 4, %s19
      %s264 = smul.u32 2, %s20
      %p265 = scmp.lt.s32.totalorder %s263, 3
      %s266 = scalar_select %p265, %s263, 3
      %p267 = scmp.lt.s32.totalorder %s264, 1
      %s268 = scalar_select %p267, %s264, 1
      %s269 = smul.addr %s266, 2
      %s270 = sadd.s32 %s268, %s269
      %s271 = smul.addr %s270, 8
      %s272 = scalar_lea.vmem %s3, %s271
      %s273 = smul.u32 4, %s19
      %s274 = smul.u32 2, %s20
      %p276 = scmp.eq.s32.totalorder %s21, 0
      // Predicated region
      $region33: #{_lambda_.13} parent=31 // pred_check
        %p277 = pneg %p276
      $region34: #{_lambda_.13} parent=31 // pred_check_branch
        %279 = sbr.rel (%p277) target = $region36
      $region35: #{_lambda_.13} parent=31 // pred_region
        %280 = vst [vmem:[#allocation2] sm:$0xff] 0.0
        %281 = vst [vmem:[#allocation2 + $0x8] sm:$0xff] 0.0
        %282 = vst [vmem:[#allocation2 + $0x10] sm:$0xff] 0.0
        %283 = vst [vmem:[#allocation2 + $0x18] sm:$0xff] 0.0
        %284 = vst [vmem:[#allocation2 + $0x20] sm:$0xff] 0.0
        %285 = vst [vmem:[#allocation2 + $0x28] sm:$0xff] 0.0
        %286 = vst [vmem:[#allocation2 + $0x30] sm:$0xff] 0.0
        %287 = vst [vmem:[#allocation2 + $0x38] sm:$0xff] 0.0
      $region36: #{_lambda_.13} parent=31 // pred_fallthru
        _
      %v288 = vld [vmem:[#allocation2] sm:$0xff]
      %v289 = vld [vmem:[#allocation2 + $0x8] sm:$0xff]
      %v290 = vld [vmem:[#allocation2 + $0x10] sm:$0xff]
      %v291 = vld [vmem:[#allocation2 + $0x18] sm:$0xff]
      %v292 = vld [vmem:[#allocation2 + $0x20] sm:$0xff]
      %v293 = vld [vmem:[#allocation2 + $0x28] sm:$0xff]
      %v294 = vld [vmem:[#allocation2 + $0x30] sm:$0xff]
      %v295 = vld [vmem:[#allocation2 + $0x38] sm:$0xff]
      %v296 = vld [vmem:[%s246] sm:$0xf]
      %v297 = vld [vmem:[%s246 + $0x4] sm:$0xf]
      %v298 = vld [vmem:[%s246 + $0x8] sm:$0xf]
      %v299 = vld [vmem:[%s246 + $0xc] sm:$0xf]
      %v300 = vld [vmem:[%s256] sm:$0xff]
      %v301 = vld [vmem:[%s256 + $0x8] sm:$0xff]
      %v302 = vld [vmem:[%s256 + $0x10] sm:$0xff]
      %v303 = vld [vmem:[%s256 + $0x18] sm:$0xff]
      %v308 = vunpack.c.l.b16 %v296
      %v309 = vunpack.c.l.b16 %v297
      %v310 = vunpack.c.l.b16 %v298
      %v311 = vunpack.c.l.b16 %v299
      %v312 = vpack.c.b16 %v309, %v308
      %v313 = vpack.c.b16 %v311, %v310
      %v318 = vunpack.c.l.b16 %v300
      %v319 = vunpack.c.h.b16 %v300
      %v320 = vunpack.c.l.b16 %v301
      %v321 = vunpack.c.h.b16 %v301
      %v322 = vunpack.c.l.b16 %v302
      %v323 = vunpack.c.h.b16 %v302
      %v324 = vunpack.c.l.b16 %v303
      %v325 = vunpack.c.h.b16 %v303
      %v326 = vpack.c.b16 %v320, %v318
      %v327 = vpack.c.b16 %v321, %v319
      %v328 = vpack.c.b16 %v324, %v322
      %v329 = vpack.c.b16 %v325, %v323
      %vm334 = vcmask 261120
      %v336 = vsel %vm334, %v312, 0
      %v339 = vsel %vm334, %v313, 0
      %341 = vmatprep.subr.bf16.mxu0 %v327
      %342 = vmatpush1.bf16.msra.mxu0 %v326
      %343 = vmatprep.subr.bf16.mxu0 %v329
      %344 = vmatpush1.bf16.msra.mxu0 %v328
      %345 = vmatprep.subr.bf16.mxu0 0
      %346 = vmatpush1.bf16.msra.mxu0 0
      %347 = vmatprep.subr.bf16.mxu0 0
      %348 = vmatpush1.bf16.msra.mxu0 0
      %349 = vmatprep.subr.bf16.mxu0 0
      %350 = vmatpush1.bf16.msra.mxu0 0
      %351 = vmatprep.subr.bf16.mxu0 0
      %352 = vmatpush1.bf16.msra.mxu0 0
      %353 = vmatprep.subr.bf16.mxu0 0
      %354 = vmatpush1.bf16.msra.mxu0 0
      %355 = vmatprep.subr.bf16.mxu0 0
      %356 = vmatpush1.bf16.msra.mxu0 0
      %357 = vmatprep.subr.bf16.mxu0 0
      %358 = vmatpush1.bf16.msra.mxu0 0
      %359 = vmatprep.subr.bf16.mxu0 0
      %360 = vmatpush1.bf16.msra.mxu0 0
      %361 = vmatprep.subr.bf16.mxu0 0
      %362 = vmatpush1.bf16.msra.mxu0 0
      %363 = vmatprep.subr.bf16.mxu0 0
      %364 = vmatpush1.bf16.msra.mxu0 0
      %365 = vmatprep.subr.bf16.mxu0 0
      %366 = vmatpush1.bf16.msra.mxu0 0
      %367 = vmatprep.subr.bf16.mxu0 0
      %368 = vmatpush1.bf16.msra.mxu0 0
      %369 = vmatprep.subr.bf16.mxu0 0
      %370 = vmatpush1.bf16.msra.mxu0 0
      %371 = vmatprep.subr.bf16.mxu0 0
      %372 = vmatpush1.bf16.msra.mxu0 0
      %373 = vmatprep.mubr.bf16.mxu0 0
      %374 = vmatmul.mubr.bf16.gmra.mrb[0].mxu0 %v336
      %v375 = vpop.f32.mrb[0].mxu0
      %v376 = vadd.f32 0.0, %v375
      %v377 = vpop.f32.mrb[0].mxu0
      %v378 = vadd.f32 0.0, %v377
      %v379 = vpop.f32.mrb[0].mxu0
      %v380 = vadd.f32 0.0, %v379
      %v381 = vpop.f32.mrb[0].mxu0
      %v382 = vadd.f32 0.0, %v381
      %383 = vmatprep.mubr.bf16.mxu0 0
      %384 = vmatmul.mubr.bf16.gmra.mrb[0].mxu0 %v339
      %v385 = vpop.f32.mrb[0].mxu0
      %v386 = vadd.f32 0.0, %v385
      %v387 = vpop.f32.mrb[0].mxu0
      %v388 = vadd.f32 0.0, %v387
      %v389 = vpop.f32.mrb[0].mxu0
      %v390 = vadd.f32 0.0, %v389
      %v391 = vpop.f32.mrb[0].mxu0
      %v392 = vadd.f32 0.0, %v391
      %393 = vdwg.mxu0
      %v394 = vadd.f32 %v288, %v376
      %v395 = vadd.f32 %v289, %v378
      %v396 = vadd.f32 %v290, %v380
      %v397 = vadd.f32 %v291, %v382
      %v398 = vadd.f32 %v292, %v386
      %v399 = vadd.f32 %v293, %v388
      %v400 = vadd.f32 %v294, %v390
      %v401 = vadd.f32 %v295, %v392
      %402 = vst [vmem:[#allocation2] sm:$0xff] %v394
      %403 = vst [vmem:[#allocation2 + $0x8] sm:$0xff] %v395
      %404 = vst [vmem:[#allocation2 + $0x10] sm:$0xff] %v396
      %405 = vst [vmem:[#allocation2 + $0x18] sm:$0xff] %v397
      %406 = vst [vmem:[#allocation2 + $0x20] sm:$0xff] %v398
      %407 = vst [vmem:[#allocation2 + $0x28] sm:$0xff] %v399
      %408 = vst [vmem:[#allocation2 + $0x30] sm:$0xff] %v400
      %409 = vst [vmem:[#allocation2 + $0x38] sm:$0xff] %v401
      %p410 = scmp.eq.s32.totalorder %s21, 1
      // Predicated region
      $region37: #{_lambda_.13} parent=31 // pred_check
        %p411 = pneg %p410
      $region38: #{_lambda_.13} parent=31 // pred_check_branch
        %413 = sbr.rel (%p411) target = $region40
      $region39: #{_lambda_.13} parent=31 // pred_region
        %v414 = vld [vmem:[#allocation2] sm:$0xff]
        %v415 = vld [vmem:[#allocation2 + $0x8] sm:$0xff]
        %v416 = vld [vmem:[#allocation2 + $0x10] sm:$0xff]
        %v417 = vld [vmem:[#allocation2 + $0x18] sm:$0xff]
        %v418 = vld [vmem:[#allocation2 + $0x20] sm:$0xff]
        %v419 = vld [vmem:[#allocation2 + $0x28] sm:$0xff]
        %v420 = vld [vmem:[#allocation2 + $0x30] sm:$0xff]
        %v421 = vld [vmem:[#allocation2 + $0x38] sm:$0xff]
        %v422 = vld [vmem:[%s261] sm:$0x3]
        %v424 = vlaneseq
        %v425 = vshrl.u32 %v424, 7
        %v426 = vsub.s32 0, %v425
        %v427 = vrot.slane %v422, %v426
        %v428 = vlaneseq
        %v429 = vshrl.u32 %v428, 7
        %v430 = vsub.s32 1, %v429
        %v431 = vrot.slane %v422, %v430
        %v434 = vadd.f32 %v414, %v427
        %v435 = vadd.f32 %v415, %v431
        %v436 = vadd.f32 %v416, %v427
        %v437 = vadd.f32 %v417, %v431
        %v438 = vadd.f32 %v418, %v427
        %v439 = vadd.f32 %v419, %v431
        %v440 = vadd.f32 %v420, %v427
        %v441 = vadd.f32 %v421, %v431
        %442 = vst [vmem:[%s272] sm:$0xff] %v434
        %443 = vst [vmem:[%s272 + $0x8] sm:$0xff] %v435
        %444 = vst [vmem:[%s272 + $0x10] sm:$0xff] %v436
        %445 = vst [vmem:[%s272 + $0x18] sm:$0xff] %v437
        %446 = vst [vmem:[%s272 + $0x20] sm:$0xff] %v438
        %447 = vst [vmem:[%s272 + $0x28] sm:$0xff] %v439
        %448 = vst [vmem:[%s272 + $0x30] sm:$0xff] %v440
        %449 = vst [vmem:[%s272 + $0x38] sm:$0xff] %v441
      $region40: #{_lambda_.13} parent=31 // pred_fallthru
        _
      %s450 = smul.u32 4, %s19
      %s451 = smul.u32 2, %s20
      %p452 = scmp.lt.s32.totalorder %s450, 3
      %s453 = scalar_select %p452, %s450, 3
      %p454 = scmp.lt.s32.totalorder %s451, 1
      %s455 = scalar_select %p454, %s451, 1
      %s456 = smul.addr %s453, 2
      %s457 = sadd.s32 %s455, %s456
      %s458 = smul.addr %s457, 8
      %s459 = scalar_lea.vmem %s3, %s458
      // Predicated region
      $region41: #{_lambda_.13} parent=31 // pred_check
        %p460 = pneg %p135
      $region42: #{_lambda_.13} parent=31 // pred_check_branch
        %462 = sbr.rel (%p460) target = $region44
      $region43: #{_lambda_.13} parent=31 // pred_region
        %s463 = smul.u32 4, %s19
        %s464 = smul.u32 2, %s20
      $region44: #{_lambda_.13} parent=31 // pred_fallthru
        _
      // Predicated region
      $region45: #{_lambda_.13} parent=31 // pred_check
        %p465 = pneg %p135
      $region46: #{_lambda_.13} parent=31 // pred_check_branch
        %467 = sbr.rel (%p465) target = $region48
      $region47: #{_lambda_.13} parent=31 // pred_region
        %s468 = smul.u32 4, %s19
        %s469 = smul.u32 2, %s20
        %p470 = scmp.lt.s32.totalorder %s468, 3
        %s471 = scalar_select %p470, %s468, 3
        %p472 = scmp.lt.s32.totalorder %s469, 1
        %s473 = scalar_select %p472, %s469, 1
        %s474 = smul.addr %s471, 2
        %s475 = sadd.s32 %s473, %s474
        %s476 = smul.addr %s475, 8
        %s477 = scalar_lea.vmem %s3, %s476
      $region48: #{_lambda_.13} parent=31 // pred_fallthru
        _
    $region32: #{_lambda_.13} parent=5 // pred_fallthru
      _
    %p478 = scmp.le.s32.totalorder 2, %s9
    // Predicated region
    $region49: #{_lambda_.13} parent=5 // pred_check
      %p479 = pneg %p478
    $region50: #{_lambda_.13} parent=5 // pred_check_branch
      %481 = sbr.rel (%p479) target = $region52
    $region51: #{_lambda_.13} parent=5 // pred_region
      %s482 = ssub.s32 %s9, 2
    $region52: #{_lambda_.13} parent=5 // pred_fallthru
      _
  $region6: #{_lambda_.13} parent=0 // loop_footer
    %s13 = sadd.s32 1, %s9
  $region7: #{_lambda_.13} parent=0 // loop_footer_branch
    %8 = sbr.rel target = $region3
  $region8: #{_lambda_.13} parent=0 // loop_exit
    _

// kernel: _lambda_.12
$region0: #{_lambda_.12}
  #allocation0 [shape = 'u32[]', space=smem, size = 0x4, offset = 0x4, fixed_abs, tag = 'smem constant byte address 0x4 - core index']
  #allocation1 [shape = 'u32[144,128]{1,0:T(1,128)}', space=vmem, size = 0x12000, scoped, tag = 'internal scratch']
  #allocation2 [shape = 'f32[8,32]{1,0:T(8,128)}', space=vmem, size = 0x1000, scoped, tag = 'scratch operand']
  #allocation3 [shape = 'f32[8,32]{1,0:T(8,128)}', space=vmem, size = 0x1000, scoped, tag = 'scratch operand']
  #allocation4 [shape = 'f32[8,32]{1,0:T(8,128)}', space=vmem, size = 0x1000, scoped, tag = 'scratch operand']
  #allocation5 [shape = 'f32[8,32]{1,0:T(8,128)}', space=vmem, size = 0x1000, scoped, tag = 'scratch operand']
  %s0 = inlined_call_operand.vmem [shape: f32[4,8,256], index: 0, kind: input, shape index: {}, may-alias: {0,1}]
  %s1 = inlined_call_operand.vmem [shape: f32[4,8,256], index: 1, kind: input, shape index: {}, may-alias: {0,1}]
  %s2 = inlined_call_operand.vmem [shape: bf16[32,128], index: 2, kind: input, shape index: {}]
  %s3 = inlined_call_operand.vmem [shape: bf16[32,128], index: 3, kind: input, shape index: {}]
  %s4 = inlined_call_operand.vmem [shape: bf16[4,8,32], index: 4, kind: output, shape index: {0}]
  %s5 = inlined_call_operand.vmem [shape: bf16[4,8,32], index: 5, kind: output, shape index: {1}]
  %6 = xla_tuple %s4, %s5
  %s7 = sld [smem:[#allocation0]]
  $region114: #{_lambda_.12} parent=0
    _
  %s9 = ssub.s32 1, %s7
  %s10 = scalar_select 0, %s9, %s7
  $region1: #{_lambda_.12} parent=0
    #allocation6 [shape = 'u8[16384]{0}', space=vmem, size = 0x4000, scoped, tag = 'input window, operand 0, single buffered']
    #allocation7 [shape = 'u8[16384]{0}', space=vmem, size = 0x4000, scoped, tag = 'input window, operand 1, single buffered']
    // Predicated region
    $region2: #{_lambda_.12} parent=1 // pred_check
      _
    $region3: #{_lambda_.12} parent=1 // pred_check_branch
      %12 = sbr.rel (0) target = $region5
    $region4: #{_lambda_.12} parent=1 // pred_region
      // Predicated region
      $region6: #{_lambda_.12} parent=4 // pred_check
        _
      $region7: #{_lambda_.12} parent=4 // pred_check_branch
        %14 = sbr.rel (0) target = $region9
      $region8: #{_lambda_.12} parent=4 // pred_region
        // Predicated region
        $region10: #{_lambda_.12} parent=8 // pred_check
          _
        $region11: #{_lambda_.12} parent=8 // pred_check_branch
          %16 = sbr.rel (0) target = $region13
        $region12: #{_lambda_.12} parent=8 // pred_region
          // Predicated region
          $region25: #{_lambda_.12} parent=12 // pred_check
            _
          $region26: #{_lambda_.12} parent=12 // pred_check_branch
            %37 = sbr.rel (0) target = $region28
          $region27: #{_lambda_.12} parent=12 // pred_region
            loop: start=0, step=1, limit=1
            $region29: #{_lambda_.12} parent=27 // loop_pre_header
              _
            $region30: #{_lambda_.12} parent=27 // loop_header
              %s39 = sphi 0, %s43
              %p40 = scmp.ge.s32.totalorder %s39, 1
              %s44 = sphi %s0, %s0
              %s45 = sphi [#allocation6], [#allocation6]
            $region31: #{_lambda_.12} parent=27 // loop_header_branch
              %42 = sbr.rel (%p40) target = $region35
            $region32: #{_lambda_.12} parent=27 // loop_body
              %v46 = vld [vmem:[%s44] sm:$0xff]
              %47 = vst [vmem:[%s45] sm:$0xff] %v46
              %v48 = vld [vmem:[%s44 + $0x10] sm:$0xff]
              %49 = vst [vmem:[%s45 + $0x8] sm:$0xff] %v48
              %v50 = vld [vmem:[%s44 + $0x20] sm:$0xff]
              %51 = vst [vmem:[%s45 + $0x10] sm:$0xff] %v50
              %v52 = vld [vmem:[%s44 + $0x30] sm:$0xff]
              %53 = vst [vmem:[%s45 + $0x18] sm:$0xff] %v52
            $region33: #{_lambda_.12} parent=27 // loop_footer
              %s43 = sadd.s32 1, %s39
            $region34: #{_lambda_.12} parent=27 // loop_footer_branch
              %38 = sbr.rel target = $region30
            $region35: #{_lambda_.12} parent=27 // loop_exit
              _
          $region28: #{_lambda_.12} parent=12 // pred_fallthru
            _
          // Predicated region
          $region36: #{_lambda_.12} parent=12 // pred_check
            _
          $region37: #{_lambda_.12} parent=12 // pred_check_branch
            %55 = sbr.rel target = $region39
          $region38: #{_lambda_.12} parent=12 // pred_region
            _
          $region39: #{_lambda_.12} parent=12 // pred_fallthru
            _
        $region13: #{_lambda_.12} parent=8 // pred_fallthru
          _
        // Predicated region
        $region14: #{_lambda_.12} parent=8 // pred_check
          _
        $region15: #{_lambda_.12} parent=8 // pred_check_branch
          %18 = sbr.rel target = $region17
        $region16: #{_lambda_.12} parent=8 // pred_region
          loop: start=0, step=1, limit=1
          $region18: #{_lambda_.12} parent=16 // loop_pre_header
            _
          $region19: #{_lambda_.12} parent=16 // loop_header
            %s21 = sphi 0, %s25
            %p22 = scmp.ge.s32.totalorder %s21, 1
            %s26 = sphi %s0, %s0
            %s27 = sphi [#allocation6], [#allocation6]
          $region20: #{_lambda_.12} parent=16 // loop_header_branch
            %24 = sbr.rel (%p22) target = $region24
          $region21: #{_lambda_.12} parent=16 // loop_body
            %v28 = vld [vmem:[%s26] sm:$0xff]
            %29 = vst [vmem:[%s27] sm:$0xff] %v28
            %v30 = vld [vmem:[%s26 + $0x10] sm:$0xff]
            %31 = vst [vmem:[%s27 + $0x8] sm:$0xff] %v30
            %v32 = vld [vmem:[%s26 + $0x20] sm:$0xff]
            %33 = vst [vmem:[%s27 + $0x10] sm:$0xff] %v32
            %v34 = vld [vmem:[%s26 + $0x30] sm:$0xff]
            %35 = vst [vmem:[%s27 + $0x18] sm:$0xff] %v34
          $region22: #{_lambda_.12} parent=16 // loop_footer
            %s25 = sadd.s32 1, %s21
          $region23: #{_lambda_.12} parent=16 // loop_footer_branch
            %20 = sbr.rel target = $region19
          $region24: #{_lambda_.12} parent=16 // loop_exit
            _
        $region17: #{_lambda_.12} parent=8 // pred_fallthru
          _
      $region9: #{_lambda_.12} parent=4 // pred_fallthru
        _
      %56 = vnop
    $region5: #{_lambda_.12} parent=1 // pred_fallthru
      _
    // Predicated region
    $region40: #{_lambda_.12} parent=1 // pred_check
      _
    $region41: #{_lambda_.12} parent=1 // pred_check_branch
      %58 = sbr.rel (0) target = $region43
    $region42: #{_lambda_.12} parent=1 // pred_region
      %s59 = ssub.s32 0, 0
      %s60 = smul.u32 4, %s59
      %s61 = smul.addr %s60, 2
      %s62 = sadd.s32 1, %s61
      %s63 = smul.addr %s62, 8
      %s64 = scalar_lea.vmem %s1, %s63
      // Predicated region
      $region44: #{_lambda_.12} parent=42 // pred_check
        _
      $region45: #{_lambda_.12} parent=42 // pred_check_branch
        %66 = sbr.rel (0) target = $region47
      $region46: #{_lambda_.12} parent=42 // pred_region
        // Predicated region
        $region48: #{_lambda_.12} parent=46 // pred_check
          _
        $region49: #{_lambda_.12} parent=46 // pred_check_branch
          %68 = sbr.rel (0) target = $region51
        $region50: #{_lambda_.12} parent=46 // pred_region
          // Predicated region
          $region63: #{_lambda_.12} parent=50 // pred_check
            _
          $region64: #{_lambda_.12} parent=50 // pred_check_branch
            %89 = sbr.rel (0) target = $region66
          $region65: #{_lambda_.12} parent=50 // pred_region
            loop: start=0, step=1, limit=1
            $region67: #{_lambda_.12} parent=65 // loop_pre_header
              _
            $region68: #{_lambda_.12} parent=65 // loop_header
              %s91 = sphi 0, %s95
              %p92 = scmp.ge.s32.totalorder %s91, 1
              %s96 = sphi %s64, %s64
              %s97 = sphi [#allocation7], [#allocation7]
            $region69: #{_lambda_.12} parent=65 // loop_header_branch
              %94 = sbr.rel (%p92) target = $region73
            $region70: #{_lambda_.12} parent=65 // loop_body
              %v98 = vld [vmem:[%s96] sm:$0xff]
              %99 = vst [vmem:[%s97] sm:$0xff] %v98
              %v100 = vld [vmem:[%s96 + $0x10] sm:$0xff]
              %101 = vst [vmem:[%s97 + $0x8] sm:$0xff] %v100
              %v102 = vld [vmem:[%s96 + $0x20] sm:$0xff]
              %103 = vst [vmem:[%s97 + $0x10] sm:$0xff] %v102
              %v104 = vld [vmem:[%s96 + $0x30] sm:$0xff]
              %105 = vst [vmem:[%s97 + $0x18] sm:$0xff] %v104
            $region71: #{_lambda_.12} parent=65 // loop_footer
              %s95 = sadd.s32 1, %s91
            $region72: #{_lambda_.12} parent=65 // loop_footer_branch
              %90 = sbr.rel target = $region68
            $region73: #{_lambda_.12} parent=65 // loop_exit
              _
          $region66: #{_lambda_.12} parent=50 // pred_fallthru
            _
          // Predicated region
          $region74: #{_lambda_.12} parent=50 // pred_check
            _
          $region75: #{_lambda_.12} parent=50 // pred_check_branch
            %107 = sbr.rel target = $region77
          $region76: #{_lambda_.12} parent=50 // pred_region
            _
          $region77: #{_lambda_.12} parent=50 // pred_fallthru
            _
        $region51: #{_lambda_.12} parent=46 // pred_fallthru
          _
        // Predicated region
        $region52: #{_lambda_.12} parent=46 // pred_check
          _
        $region53: #{_lambda_.12} parent=46 // pred_check_branch
          %70 = sbr.rel target = $region55
        $region54: #{_lambda_.12} parent=46 // pred_region
          loop: start=0, step=1, limit=1
          $region56: #{_lambda_.12} parent=54 // loop_pre_header
            _
          $region57: #{_lambda_.12} parent=54 // loop_header
            %s73 = sphi 0, %s77
            %p74 = scmp.ge.s32.totalorder %s73, 1
            %s78 = sphi %s64, %s64
            %s79 = sphi [#allocation7], [#allocation7]
          $region58: #{_lambda_.12} parent=54 // loop_header_branch
            %76 = sbr.rel (%p74) target = $region62
          $region59: #{_lambda_.12} parent=54 // loop_body
            %v80 = vld [vmem:[%s78] sm:$0xff]
            %81 = vst [vmem:[%s79] sm:$0xff] %v80
            %v82 = vld [vmem:[%s78 + $0x10] sm:$0xff]
            %83 = vst [vmem:[%s79 + $0x8] sm:$0xff] %v82
            %v84 = vld [vmem:[%s78 + $0x20] sm:$0xff]
            %85 = vst [vmem:[%s79 + $0x10] sm:$0xff] %v84
            %v86 = vld [vmem:[%s78 + $0x30] sm:$0xff]
            %87 = vst [vmem:[%s79 + $0x18] sm:$0xff] %v86
          $region60: #{_lambda_.12} parent=54 // loop_footer
            %s77 = sadd.s32 1, %s73
          $region61: #{_lambda_.12} parent=54 // loop_footer_branch
            %72 = sbr.rel target = $region57
          $region62: #{_lambda_.12} parent=54 // loop_exit
            _
        $region55: #{_lambda_.12} parent=46 // pred_fallthru
          _
      $region47: #{_lambda_.12} parent=42 // pred_fallthru
        _
      %108 = vnop
    $region43: #{_lambda_.12} parent=1 // pred_fallthru
      _
    // Predicated region
    $region78: #{_lambda_.12} parent=1 // pred_check
      _
    $region79: #{_lambda_.12} parent=1 // pred_check_branch
      %110 = sbr.rel (0) target = $region81
    $region80: #{_lambda_.12} parent=1 // pred_region
      _
    $region81: #{_lambda_.12} parent=1 // pred_fallthru
      _
    // Predicated region
    $region82: #{_lambda_.12} parent=1 // pred_check
      _
    $region83: #{_lambda_.12} parent=1 // pred_check_branch
      %112 = sbr.rel (0) target = $region85
    $region84: #{_lambda_.12} parent=1 // pred_region
      _
    $region85: #{_lambda_.12} parent=1 // pred_fallthru
      _
    // Predicated region
    $region86: #{_lambda_.12} parent=1 // pred_check
      _
    $region87: #{_lambda_.12} parent=1 // pred_check_branch
      %114 = sbr.rel (0) target = $region89
    $region88: #{_lambda_.12} parent=1 // pred_region
      _
    $region89: #{_lambda_.12} parent=1 // pred_fallthru
      _
    // Predicated region
    $region90: #{_lambda_.12} parent=1 // pred_check
      _
    $region91: #{_lambda_.12} parent=1 // pred_check_branch
      %116 = sbr.rel (0) target = $region93
    $region92: #{_lambda_.12} parent=1 // pred_region
      _
    $region93: #{_lambda_.12} parent=1 // pred_fallthru
      _
    %s117 = ssub.s32 0, 0
    %s118 = smul.u32 4, %s117
    %p119 = scmp.lt.s32.totalorder %s118, 3
    %s120 = scalar_select %p119, %s118, 3
    %s121 = smul.addr %s120, 4
    %s122 = scalar_lea.vmem %s5, %s121
    %s123 = ssub.s32 0, 0
    %s124 = smul.u32 4, %s123
    %s125 = ssub.s32 0, 0
    %s126 = smul.u32 4, %s125
    %p127 = scmp.lt.s32.totalorder %s126, 3
    %s128 = scalar_select %p127, %s126, 3
    %s129 = smul.addr %s128, 4
    %s130 = scalar_lea.vmem %s5, %s129
    %s131 = ssub.s32 0, 0
    %s132 = smul.u32 4, %s131
    %p134 = scmp.eq.s32.totalorder 0, 0
    // Predicated region
    $region94: #{_lambda_.12} parent=1 // pred_check
      %p135 = pneg %p134
    $region95: #{_lambda_.12} parent=1 // pred_check_branch
      %137 = sbr.rel (%p135) target = $region97
    $region96: #{_lambda_.12} parent=1 // pred_region
      %vm138 = vcmask 261120
      %139 = vst.msk [vmem:[#allocation2] sm:$0xff] %vm138, 0.0
      %140 = vst.msk [vmem:[#allocation3] sm:$0xff] %vm138, 0.0
      %141 = vst.msk [vmem:[#allocation4] sm:$0xff] %vm138, 0.0
      %142 = vst.msk [vmem:[#allocation5] sm:$0xff] %vm138, 0.0
    $region97: #{_lambda_.12} parent=1 // pred_fallthru
      _
    %s143 = smul.u32 0, 4
    %p144 = scmp.lt.s32.totalorder %s143, 4
    %s145 = scalar_select %p144, 1, 0
    %s146 = scvt.s32.f32 %s145
    %v147 = vld [vmem:[#allocation6] sm:$0xff]
    %v148 = vld [vmem:[%s2] sm:$0xf]
    %v149 = vld [vmem:[%s2 + $0x4] sm:$0xf]
    %v150 = vld [vmem:[%s2 + $0x8] sm:$0xf]
    %v151 = vld [vmem:[%s2 + $0xc] sm:$0xf]
    %v152 = vld [vmem:[#allocation2] sm:$0xff]
    %v153 = vld [vmem:[#allocation3] sm:$0xff]
    %v154 = vpack.c.bf16 %v152, %v152
    %v159 = vunpack.c.l.b16 %v148
    %v160 = vunpack.c.l.b16 %v149
    %v161 = vunpack.c.l.b16 %v150
    %v162 = vunpack.c.l.b16 %v151
    %v163 = vpack.c.b16 %v160, %v159
    %v164 = vpack.c.b16 %v162, %v161
    %vm167 = vcmask 261120
    %v169 = vsel %vm167, %v154, 0
    %171 = vmatprep.subr.bf16.mxu0 0
    %172 = vmatpush1.bf16.msra.mxu0 %v163
    %173 = vmatprep.subr.bf16.mxu0 0
    %174 = vmatpush1.bf16.msra.mxu0 %v164
    %175 = vmatprep.subr.bf16.mxu0 0
    %176 = vmatpush1.bf16.msra.mxu0 0
    %177 = vmatprep.subr.bf16.mxu0 0
    %178 = vmatpush1.bf16.msra.mxu0 0
    %179 = vmatprep.subr.bf16.mxu0 0
    %180 = vmatpush1.bf16.msra.mxu0 0
    %181 = vmatprep.subr.bf16.mxu0 0
    %182 = vmatpush1.bf16.msra.mxu0 0
    %183 = vmatprep.subr.bf16.mxu0 0
    %184 = vmatpush1.bf16.msra.mxu0 0
    %185 = vmatprep.subr.bf16.mxu0 0
    %186 = vmatpush1.bf16.msra.mxu0 0
    %187 = vmatprep.subr.bf16.mxu0 0
    %188 = vmatpush1.bf16.msra.mxu0 0
    %189 = vmatprep.subr.bf16.mxu0 0
    %190 = vmatpush1.bf16.msra.mxu0 0
    %191 = vmatprep.subr.bf16.mxu0 0
    %192 = vmatpush1.bf16.msra.mxu0 0
    %193 = vmatprep.subr.bf16.mxu0 0
    %194 = vmatpush1.bf16.msra.mxu0 0
    %195 = vmatprep.subr.bf16.mxu0 0
    %196 = vmatpush1.bf16.msra.mxu0 0
    %197 = vmatprep.subr.bf16.mxu0 0
    %198 = vmatpush1.bf16.msra.mxu0 0
    %199 = vmatprep.subr.bf16.mxu0 0
    %200 = vmatpush1.bf16.msra.mxu0 0
    %201 = vmatprep.subr.bf16.mxu0 0
    %202 = vmatpush1.bf16.msra.mxu0 0
    %203 = vmatprep.mubr.bf16.mxu0 0
    %204 = vmatmul.mubr.bf16.gmra.mrb[0].mxu0 %v169
    %v205 = vpop.f32.mrb[0].mxu0
    %v206 = vadd.f32 0.0, %v205
    %v207 = vpop.f32.mrb[0].mxu0
    %v208 = vpop.f32.mrb[0].mxu0
    %v209 = vpop.f32.mrb[0].mxu0
    %210 = vdwg.mxu0
    %v211 = vadd.f32 %v147, %v206
    %v212 = vxor.u32 %v211, 2147483648
    %v213 = vmul.f32 %v212, 1.442695
    %v214 = vpow.pop %v213
    %v215 = vadd.f32 %v214, 1.0
    %v216 = vrcp.pop %v215
    %v217 = vmul.f32 1.0, %v216
    %v218 = vtanh.pop %v211
    %220 = vrot.lane.b32.xlu0 %v153, 32
    %v221 = vpop.permute.xlu0 %220
    %v223 = vmul.f32 %v217, %v221
    %225 = vrot.lane.b32.xlu0 %v218, 64
    %v226 = vpop.permute.xlu0 %225
    %v228 = vmul.f32 %v217, %v226
    %230 = vrot.lane.b32.xlu0 %v228, 32
    %v231 = vpop.permute.xlu0 %230
    %v233 = vadd.f32 %v223, %v231
    %v234 = vstv %s146
    %v235 = vmul.f32 %v233, %v234
    %v236 = vtanh.pop %v235
    %238 = vrot.lane.b32.xlu0 %v236, 64
    %v239 = vpop.permute.xlu0 %238
    %v241 = vmul.f32 %v217, %v239
    %243 = vrot.lane.b32.xlu0 %v241, 32
    %v244 = vpop.permute.xlu0 %243
    %246 = vst.msk [vmem:[#allocation2] sm:$0xff] %vm167, %v244
    %248 = vrot.lane.b32.xlu0 %v235, 96
    %v249 = vpop.permute.xlu0 %248
    %251 = vst.msk [vmem:[#allocation3] sm:$0xff] %vm167, %v249
    %v252 = vpack.c.bf16 %v241, %v241
    %v254 = vunpack.c.l.b16 %v252
    %v255 = vpack.c.b16 %v254, %v254
    %256 = vrot.lane.b32.xlu0 %v255, 32
    %v257 = vpop.permute.xlu0 %256
    %vm259 = vcmask 257024
    %260 = vst.msk [vmem:[%s4] sm:$0xf] %vm259, %v257
    %s261 = ssub.s32 3, %s143
    %p262 = scmp.lt.s32.totalorder %s261, 4
    %s263 = scalar_select %p262, 1, 0
    %s264 = scvt.s32.f32 %s263
    %s265 = scalar_lea.vmem [#allocation7], 24
    %v266 = vld [vmem:[%s265] sm:$0xff]
    %v267 = vld [vmem:[%s3] sm:$0xf]
    %v268 = vld [vmem:[%s3 + $0x4] sm:$0xf]
    %v269 = vld [vmem:[%s3 + $0x8] sm:$0xf]
    %v270 = vld [vmem:[%s3 + $0xc] sm:$0xf]
    %v271 = vld [vmem:[#allocation4] sm:$0xff]
    %v272 = vld [vmem:[#allocation5] sm:$0xff]
    %v273 = vpack.c.bf16 %v271, %v271
    %v278 = vunpack.c.l.b16 %v267
    %v279 = vunpack.c.l.b16 %v268
    %v280 = vunpack.c.l.b16 %v269
    %v281 = vunpack.c.l.b16 %v270
    %v282 = vpack.c.b16 %v279, %v278
    %v283 = vpack.c.b16 %v281, %v280
    %v287 = vsel %vm167, %v273, 0
    %289 = vmatprep.subr.bf16.mxu0 0
    %290 = vmatpush1.bf16.msra.mxu0 %v282
    %291 = vmatprep.subr.bf16.mxu0 0
    %292 = vmatpush1.bf16.msra.mxu0 %v283
    %293 = vmatprep.subr.bf16.mxu0 0
    %294 = vmatpush1.bf16.msra.mxu0 0
    %295 = vmatprep.subr.bf16.mxu0 0
    %296 = vmatpush1.bf16.msra.mxu0 0
    %297 = vmatprep.subr.bf16.mxu0 0
    %298 = vmatpush1.bf16.msra.mxu0 0
    %299 = vmatprep.subr.bf16.mxu0 0
    %300 = vmatpush1.bf16.msra.mxu0 0
    %301 = vmatprep.subr.bf16.mxu0 0
    %302 = vmatpush1.bf16.msra.mxu0 0
    %303 = vmatprep.subr.bf16.mxu0 0
    %304 = vmatpush1.bf16.msra.mxu0 0
    %305 = vmatprep.subr.bf16.mxu0 0
    %306 = vmatpush1.bf16.msra.mxu0 0
    %307 = vmatprep.subr.bf16.mxu0 0
    %308 = vmatpush1.bf16.msra.mxu0 0
    %309 = vmatprep.subr.bf16.mxu0 0
    %310 = vmatpush1.bf16.msra.mxu0 0
    %311 = vmatprep.subr.bf16.mxu0 0
    %312 = vmatpush1.bf16.msra.mxu0 0
    %313 = vmatprep.subr.bf16.mxu0 0
    %314 = vmatpush1.bf16.msra.mxu0 0
    %315 = vmatprep.subr.bf16.mxu0 0
    %316 = vmatpush1.bf16.msra.mxu0 0
    %317 = vmatprep.subr.bf16.mxu0 0
    %318 = vmatpush1.bf16.msra.mxu0 0
    %319 = vmatprep.subr.bf16.mxu0 0
    %320 = vmatpush1.bf16.msra.mxu0 0
    %321 = vmatprep.mubr.bf16.mxu0 0
    %322 = vmatmul.mubr.bf16.gmra.mrb[0].mxu0 %v287
    %v323 = vpop.f32.mrb[0].mxu0
    %v324 = vadd.f32 0.0, %v323
    %v325 = vpop.f32.mrb[0].mxu0
    %v326 = vpop.f32.mrb[0].mxu0
    %v327 = vpop.f32.mrb[0].mxu0
    %328 = vdwg.mxu0
    %v329 = vadd.f32 %v266, %v324
    %v330 = vxor.u32 %v329, 2147483648
    %v331 = vmul.f32 %v330, 1.442695
    %v332 = vpow.pop %v331
    %v333 = vadd.f32 %v332, 1.0
    %v334 = vrcp.pop %v333
    %v335 = vmul.f32 1.0, %v334
    %v336 = vtanh.pop %v329
    %338 = vrot.lane.b32.xlu0 %v272, 32
    %v339 = vpop.permute.xlu0 %338
    %v341 = vmul.f32 %v335, %v339
    %343 = vrot.lane.b32.xlu0 %v336, 64
    %v344 = vpop.permute.xlu0 %343
    %v346 = vmul.f32 %v335, %v344
    %348 = vrot.lane.b32.xlu0 %v346, 32
    %v349 = vpop.permute.xlu0 %348
    %v351 = vadd.f32 %v341, %v349
    %v352 = vstv %s264
    %v353 = vmul.f32 %v351, %v352
    %v354 = vtanh.pop %v353
    %356 = vrot.lane.b32.xlu0 %v354, 64
    %v357 = vpop.permute.xlu0 %356
    %v359 = vmul.f32 %v335, %v357
    %361 = vrot.lane.b32.xlu0 %v359, 32
    %v362 = vpop.permute.xlu0 %361
    %364 = vst.msk [vmem:[#allocation4] sm:$0xff] %vm167, %v362
    %366 = vrot.lane.b32.xlu0 %v353, 96
    %v367 = vpop.permute.xlu0 %366
    %369 = vst.msk [vmem:[#allocation5] sm:$0xff] %vm167, %v367
    %v370 = vpack.c.bf16 %v359, %v359
    %v372 = vunpack.c.l.b16 %v370
    %v373 = vpack.c.b16 %v372, %v372
    %374 = vrot.lane.b32.xlu0 %v373, 32
    %v375 = vpop.permute.xlu0 %374
    %s377 = scalar_lea.vmem %s130, 12
    %378 = vst.msk [vmem:[%s377] sm:$0xf] %vm259, %v375
    %s379 = sadd.s32 %s143, 1
    %p380 = scmp.lt.s32.totalorder %s379, 4
    %s381 = scalar_select %p380, 1, 0
    %s382 = scvt.s32.f32 %s381
    %s383 = scalar_lea.vmem [#allocation6], 8
    %v384 = vld [vmem:[%s383] sm:$0xff]
    %v385 = vld [vmem:[%s2] sm:$0xf]
    %v386 = vld [vmem:[%s2 + $0x4] sm:$0xf]
    %v387 = vld [vmem:[%s2 + $0x8] sm:$0xf]
    %v388 = vld [vmem:[%s2 + $0xc] sm:$0xf]
    %v389 = vld [vmem:[#allocation2] sm:$0xff]
    %v390 = vld [vmem:[#allocation3] sm:$0xff]
    %v391 = vpack.c.bf16 %v389, %v389
    %v396 = vunpack.c.l.b16 %v385
    %v397 = vunpack.c.l.b16 %v386
    %v398 = vunpack.c.l.b16 %v387
    %v399 = vunpack.c.l.b16 %v388
    %v400 = vpack.c.b16 %v397, %v396
    %v401 = vpack.c.b16 %v399, %v398
    %v405 = vsel %vm167, %v391, 0
    %407 = vmatprep.subr.bf16.mxu0 0
    %408 = vmatpush1.bf16.msra.mxu0 %v400
    %409 = vmatprep.subr.bf16.mxu0 0
    %410 = vmatpush1.bf16.msra.mxu0 %v401
    %411 = vmatprep.subr.bf16.mxu0 0
    %412 = vmatpush1.bf16.msra.mxu0 0
    %413 = vmatprep.subr.bf16.mxu0 0
    %414 = vmatpush1.bf16.msra.mxu0 0
    %415 = vmatprep.subr.bf16.mxu0 0
    %416 = vmatpush1.bf16.msra.mxu0 0
    %417 = vmatprep.subr.bf16.mxu0 0
    %418 = vmatpush1.bf16.msra.mxu0 0
    %419 = vmatprep.subr.bf16.mxu0 0
    %420 = vmatpush1.bf16.msra.mxu0 0
    %421 = vmatprep.subr.bf16.mxu0 0
    %422 = vmatpush1.bf16.msra.mxu0 0
    %423 = vmatprep.subr.bf16.mxu0 0
    %424 = vmatpush1.bf16.msra.mxu0 0
    %425 = vmatprep.subr.bf16.mxu0 0
    %426 = vmatpush1.bf16.msra.mxu0 0
    %427 = vmatprep.subr.bf16.mxu0 0
    %428 = vmatpush1.bf16.msra.mxu0 0
    %429 = vmatprep.subr.bf16.mxu0 0
    %430 = vmatpush1.bf16.msra.mxu0 0
    %431 = vmatprep.subr.bf16.mxu0 0
    %432 = vmatpush1.bf16.msra.mxu0 0
    %433 = vmatprep.subr.bf16.mxu0 0
    %434 = vmatpush1.bf16.msra.mxu0 0
    %435 = vmatprep.subr.bf16.mxu0 0
    %436 = vmatpush1.bf16.msra.mxu0 0
    %437 = vmatprep.subr.bf16.mxu0 0
    %438 = vmatpush1.bf16.msra.mxu0 0
    %439 = vmatprep.mubr.bf16.mxu0 0
    %440 = vmatmul.mubr.bf16.gmra.mrb[0].mxu0 %v405
    %v441 = vpop.f32.mrb[0].mxu0
    %v442 = vadd.f32 0.0, %v441
    %v443 = vpop.f32.mrb[0].mxu0
    %v444 = vpop.f32.mrb[0].mxu0
    %v445 = vpop.f32.mrb[0].mxu0
    %446 = vdwg.mxu0
    %v447 = vadd.f32 %v384, %v442
    %v448 = vxor.u32 %v447, 2147483648
    %v449 = vmul.f32 %v448, 1.442695
    %v450 = vpow.pop %v449
    %v451 = vadd.f32 %v450, 1.0
    %v452 = vrcp.pop %v451
    %v453 = vmul.f32 1.0, %v452
    %v454 = vtanh.pop %v447
    %456 = vrot.lane.b32.xlu0 %v390, 32
    %v457 = vpop.permute.xlu0 %456
    %v459 = vmul.f32 %v453, %v457
    %461 = vrot.lane.b32.xlu0 %v454, 64
    %v462 = vpop.permute.xlu0 %461
    %v464 = vmul.f32 %v453, %v462
    %466 = vrot.lane.b32.xlu0 %v464, 32
    %v467 = vpop.permute.xlu0 %466
    %v469 = vadd.f32 %v459, %v467
    %v470 = vstv %s382
    %v471 = vmul.f32 %v469, %v470
    %v472 = vtanh.pop %v471
    %474 = vrot.lane.b32.xlu0 %v472, 64
    %v475 = vpop.permute.xlu0 %474
    %v477 = vmul.f32 %v453, %v475
    %479 = vrot.lane.b32.xlu0 %v477, 32
    %v480 = vpop.permute.xlu0 %479
    %482 = vst.msk [vmem:[#allocation2] sm:$0xff] %vm167, %v480
    %484 = vrot.lane.b32.xlu0 %v471, 96
    %v485 = vpop.permute.xlu0 %484
    %487 = vst.msk [vmem:[#allocation3] sm:$0xff] %vm167, %v485
    %v488 = vpack.c.bf16 %v477, %v477
    %v490 = vunpack.c.l.b16 %v488
    %v491 = vpack.c.b16 %v490, %v490
    %492 = vrot.lane.b32.xlu0 %v491, 32
    %v493 = vpop.permute.xlu0 %492
    %s495 = scalar_lea.vmem %s4, 4
    %496 = vst.msk [vmem:[%s495] sm:$0xf] %vm259, %v493
    %s497 = ssub.s32 2, %s143
    %p498 = scmp.lt.s32.totalorder %s497, 4
    %s499 = scalar_select %p498, 1, 0
    %s500 = scvt.s32.f32 %s499
    %s501 = scalar_lea.vmem [#allocation7], 16
    %v502 = vld [vmem:[%s501] sm:$0xff]
    %v503 = vld [vmem:[%s3] sm:$0xf]
    %v504 = vld [vmem:[%s3 + $0x4] sm:$0xf]
    %v505 = vld [vmem:[%s3 + $0x8] sm:$0xf]
    %v506 = vld [vmem:[%s3 + $0xc] sm:$0xf]
    %v507 = vld [vmem:[#allocation4] sm:$0xff]
    %v508 = vld [vmem:[#allocation5] sm:$0xff]
    %v509 = vpack.c.bf16 %v507, %v507
    %v514 = vunpack.c.l.b16 %v503
    %v515 = vunpack.c.l.b16 %v504
    %v516 = vunpack.c.l.b16 %v505
    %v517 = vunpack.c.l.b16 %v506
    %v518 = vpack.c.b16 %v515, %v514
    %v519 = vpack.c.b16 %v517, %v516
    %v523 = vsel %vm167, %v509, 0
    %525 = vmatprep.subr.bf16.mxu0 0
    %526 = vmatpush1.bf16.msra.mxu0 %v518
    %527 = vmatprep.subr.bf16.mxu0 0
    %528 = vmatpush1.bf16.msra.mxu0 %v519
    %529 = vmatprep.subr.bf16.mxu0 0
    %530 = vmatpush1.bf16.msra.mxu0 0
    %531 = vmatprep.subr.bf16.mxu0 0
    %532 = vmatpush1.bf16.msra.mxu0 0
    %533 = vmatprep.subr.bf16.mxu0 0
    %534 = vmatpush1.bf16.msra.mxu0 0
    %535 = vmatprep.subr.bf16.mxu0 0
    %536 = vmatpush1.bf16.msra.mxu0 0
    %537 = vmatprep.subr.bf16.mxu0 0
    %538 = vmatpush1.bf16.msra.mxu0 0
    %539 = vmatprep.subr.bf16.mxu0 0
    %540 = vmatpush1.bf16.msra.mxu0 0
    %541 = vmatprep.subr.bf16.mxu0 0
    %542 = vmatpush1.bf16.msra.mxu0 0
    %543 = vmatprep.subr.bf16.mxu0 0
    %544 = vmatpush1.bf16.msra.mxu0 0
    %545 = vmatprep.subr.bf16.mxu0 0
    %546 = vmatpush1.bf16.msra.mxu0 0
    %547 = vmatprep.subr.bf16.mxu0 0
    %548 = vmatpush1.bf16.msra.mxu0 0
    %549 = vmatprep.subr.bf16.mxu0 0
    %550 = vmatpush1.bf16.msra.mxu0 0
    %551 = vmatprep.subr.bf16.mxu0 0
    %552 = vmatpush1.bf16.msra.mxu0 0
    %553 = vmatprep.subr.bf16.mxu0 0
    %554 = vmatpush1.bf16.msra.mxu0 0
    %555 = vmatprep.subr.bf16.mxu0 0
    %556 = vmatpush1.bf16.msra.mxu0 0
    %557 = vmatprep.mubr.bf16.mxu0 0
    %558 = vmatmul.mubr.bf16.gmra.mrb[0].mxu0 %v523
    %v559 = vpop.f32.mrb[0].mxu0
    %v560 = vadd.f32 0.0, %v559
    %v561 = vpop.f32.mrb[0].mxu0
    %v562 = vpop.f32.mrb[0].mxu0
    %v563 = vpop.f32.mrb[0].mxu0
    %564 = vdwg.mxu0
    %v565 = vadd.f32 %v502, %v560
    %v566 = vxor.u32 %v565, 2147483648
    %v567 = vmul.f32 %v566, 1.442695
    %v568 = vpow.pop %v567
    %v569 = vadd.f32 %v568, 1.0
    %v570 = vrcp.pop %v569
    %v571 = vmul.f32 1.0, %v570
    %v572 = vtanh.pop %v565
    %574 = vrot.lane.b32.xlu0 %v508, 32
    %v575 = vpop.permute.xlu0 %574
    %v577 = vmul.f32 %v571, %v575
    %579 = vrot.lane.b32.xlu0 %v572, 64
    %v580 = vpop.permute.xlu0 %579
    %v582 = vmul.f32 %v571, %v580
    %584 = vrot.lane.b32.xlu0 %v582, 32
    %v585 = vpop.permute.xlu0 %584
    %v587 = vadd.f32 %v577, %v585
    %v588 = vstv %s500
    %v589 = vmul.f32 %v587, %v588
    %v590 = vtanh.pop %v589
    %592 = vrot.lane.b32.xlu0 %v590, 64
    %v593 = vpop.permute.xlu0 %592
    %v595 = vmul.f32 %v571, %v593
    %597 = vrot.lane.b32.xlu0 %v595, 32
    %v598 = vpop.permute.xlu0 %597
    %600 = vst.msk [vmem:[#allocation4] sm:$0xff] %vm167, %v598
    %602 = vrot.lane.b32.xlu0 %v589, 96
    %v603 = vpop.permute.xlu0 %602
    %605 = vst.msk [vmem:[#allocation5] sm:$0xff] %vm167, %v603
    %v606 = vpack.c.bf16 %v595, %v595
    %v608 = vunpack.c.l.b16 %v606
    %v609 = vpack.c.b16 %v608, %v608
    %610 = vrot.lane.b32.xlu0 %v609, 32
    %v611 = vpop.permute.xlu0 %610
    %s613 = scalar_lea.vmem %s130, 8
    %614 = vst.msk [vmem:[%s613] sm:$0xf] %vm259, %v611
    %s615 = sadd.s32 %s143, 2
    %p616 = scmp.lt.s32.totalorder %s615, 4
    %s617 = scalar_select %p616, 1, 0
    %s618 = scvt.s32.f32 %s617
    %s619 = scalar_lea.vmem [#allocation6], 16
    %v620 = vld [vmem:[%s619] sm:$0xff]
    %v621 = vld [vmem:[%s2] sm:$0xf]
    %v622 = vld [vmem:[%s2 + $0x4] sm:$0xf]
    %v623 = vld [vmem:[%s2 + $0x8] sm:$0xf]
    %v624 = vld [vmem:[%s2 + $0xc] sm:$0xf]
    %v625 = vld [vmem:[#allocation2] sm:$0xff]
    %v626 = vld [vmem:[#allocation3] sm:$0xff]
    %v627 = vpack.c.bf16 %v625, %v625
    %v632 = vunpack.c.l.b16 %v621
    %v633 = vunpack.c.l.b16 %v622
    %v634 = vunpack.c.l.b16 %v623
    %v635 = vunpack.c.l.b16 %v624
    %v636 = vpack.c.b16 %v633, %v632
    %v637 = vpack.c.b16 %v635, %v634
    %v641 = vsel %vm167, %v627, 0
    %643 = vmatprep.subr.bf16.mxu0 0
    %644 = vmatpush1.bf16.msra.mxu0 %v636
    %645 = vmatprep.subr.bf16.mxu0 0
    %646 = vmatpush1.bf16.msra.mxu0 %v637
    %647 = vmatprep.subr.bf16.mxu0 0
    %648 = vmatpush1.bf16.msra.mxu0 0
    %649 = vmatprep.subr.bf16.mxu0 0
    %650 = vmatpush1.bf16.msra.mxu0 0
    %651 = vmatprep.subr.bf16.mxu0 0
    %652 = vmatpush1.bf16.msra.mxu0 0
    %653 = vmatprep.subr.bf16.mxu0 0
    %654 = vmatpush1.bf16.msra.mxu0 0
    %655 = vmatprep.subr.bf16.mxu0 0
    %656 = vmatpush1.bf16.msra.mxu0 0
    %657 = vmatprep.subr.bf16.mxu0 0
    %658 = vmatpush1.bf16.msra.mxu0 0
    %659 = vmatprep.subr.bf16.mxu0 0
    %660 = vmatpush1.bf16.msra.mxu0 0
    %661 = vmatprep.subr.bf16.mxu0 0
    %662 = vmatpush1.bf16.msra.mxu0 0
    %663 = vmatprep.subr.bf16.mxu0 0
    %664 = vmatpush1.bf16.msra.mxu0 0
    %665 = vmatprep.subr.bf16.mxu0 0
    %666 = vmatpush1.bf16.msra.mxu0 0
    %667 = vmatprep.subr.bf16.mxu0 0
    %668 = vmatpush1.bf16.msra.mxu0 0
    %669 = vmatprep.subr.bf16.mxu0 0
    %670 = vmatpush1.bf16.msra.mxu0 0
    %671 = vmatprep.subr.bf16.mxu0 0
    %672 = vmatpush1.bf16.msra.mxu0 0
    %673 = vmatprep.subr.bf16.mxu0 0
    %674 = vmatpush1.bf16.msra.mxu0 0
    %675 = vmatprep.mubr.bf16.mxu0 0
    %676 = vmatmul.mubr.bf16.gmra.mrb[0].mxu0 %v641
    %v677 = vpop.f32.mrb[0].mxu0
    %v678 = vadd.f32 0.0, %v677
    %v679 = vpop.f32.mrb[0].mxu0
    %v680 = vpop.f32.mrb[0].mxu0
    %v681 = vpop.f32.mrb[0].mxu0
    %682 = vdwg.mxu0
    %v683 = vadd.f32 %v620, %v678
    %v684 = vxor.u32 %v683, 2147483648
    %v685 = vmul.f32 %v684, 1.442695
    %v686 = vpow.pop %v685
    %v687 = vadd.f32 %v686, 1.0
    %v688 = vrcp.pop %v687
    %v689 = vmul.f32 1.0, %v688
    %v690 = vtanh.pop %v683
    %692 = vrot.lane.b32.xlu0 %v626, 32
    %v693 = vpop.permute.xlu0 %692
    %v695 = vmul.f32 %v689, %v693
    %697 = vrot.lane.b32.xlu0 %v690, 64
    %v698 = vpop.permute.xlu0 %697
    %v700 = vmul.f32 %v689, %v698
    %702 = vrot.lane.b32.xlu0 %v700, 32
    %v703 = vpop.permute.xlu0 %702
    %v705 = vadd.f32 %v695, %v703
    %v706 = vstv %s618
    %v707 = vmul.f32 %v705, %v706
    %v708 = vtanh.pop %v707
    %710 = vrot.lane.b32.xlu0 %v708, 64
    %v711 = vpop.permute.xlu0 %710
    %v713 = vmul.f32 %v689, %v711
    %715 = vrot.lane.b32.xlu0 %v713, 32
    %v716 = vpop.permute.xlu0 %715
    %718 = vst.msk [vmem:[#allocation2] sm:$0xff] %vm167, %v716
    %720 = vrot.lane.b32.xlu0 %v707, 96
    %v721 = vpop.permute.xlu0 %720
    %723 = vst.msk [vmem:[#allocation3] sm:$0xff] %vm167, %v721
    %v724 = vpack.c.bf16 %v713, %v713
    %v726 = vunpack.c.l.b16 %v724
    %v727 = vpack.c.b16 %v726, %v726
    %728 = vrot.lane.b32.xlu0 %v727, 32
    %v729 = vpop.permute.xlu0 %728
    %s731 = scalar_lea.vmem %s4, 8
    %732 = vst.msk [vmem:[%s731] sm:$0xf] %vm259, %v729
    %s733 = ssub.s32 1, %s143
    %p734 = scmp.lt.s32.totalorder %s733, 4
    %s735 = scalar_select %p734, 1, 0
    %s736 = scvt.s32.f32 %s735
    %s737 = scalar_lea.vmem [#allocation7], 8
    %v738 = vld [vmem:[%s737] sm:$0xff]
    %v739 = vld [vmem:[%s3] sm:$0xf]
    %v740 = vld [vmem:[%s3 + $0x4] sm:$0xf]
    %v741 = vld [vmem:[%s3 + $0x8] sm:$0xf]
    %v742 = vld [vmem:[%s3 + $0xc] sm:$0xf]
    %v743 = vld [vmem:[#allocation4] sm:$0xff]
    %v744 = vld [vmem:[#allocation5] sm:$0xff]
    %v745 = vpack.c.bf16 %v743, %v743
    %v750 = vunpack.c.l.b16 %v739
    %v751 = vunpack.c.l.b16 %v740
    %v752 = vunpack.c.l.b16 %v741
    %v753 = vunpack.c.l.b16 %v742
    %v754 = vpack.c.b16 %v751, %v750
    %v755 = vpack.c.b16 %v753, %v752
    %v759 = vsel %vm167, %v745, 0
    %761 = vmatprep.subr.bf16.mxu0 0
    %762 = vmatpush1.bf16.msra.mxu0 %v754
    %763 = vmatprep.subr.bf16.mxu0 0
    %764 = vmatpush1.bf16.msra.mxu0 %v755
    %765 = vmatprep.subr.bf16.mxu0 0
    %766 = vmatpush1.bf16.msra.mxu0 0
    %767 = vmatprep.subr.bf16.mxu0 0
    %768 = vmatpush1.bf16.msra.mxu0 0
    %769 = vmatprep.subr.bf16.mxu0 0
    %770 = vmatpush1.bf16.msra.mxu0 0
    %771 = vmatprep.subr.bf16.mxu0 0
    %772 = vmatpush1.bf16.msra.mxu0 0
    %773 = vmatprep.subr.bf16.mxu0 0
    %774 = vmatpush1.bf16.msra.mxu0 0
    %775 = vmatprep.subr.bf16.mxu0 0
    %776 = vmatpush1.bf16.msra.mxu0 0
    %777 = vmatprep.subr.bf16.mxu0 0
    %778 = vmatpush1.bf16.msra.mxu0 0
    %779 = vmatprep.subr.bf16.mxu0 0
    %780 = vmatpush1.bf16.msra.mxu0 0
    %781 = vmatprep.subr.bf16.mxu0 0
    %782 = vmatpush1.bf16.msra.mxu0 0
    %783 = vmatprep.subr.bf16.mxu0 0
    %784 = vmatpush1.bf16.msra.mxu0 0
    %785 = vmatprep.subr.bf16.mxu0 0
    %786 = vmatpush1.bf16.msra.mxu0 0
    %787 = vmatprep.subr.bf16.mxu0 0
    %788 = vmatpush1.bf16.msra.mxu0 0
    %789 = vmatprep.subr.bf16.mxu0 0
    %790 = vmatpush1.bf16.msra.mxu0 0
    %791 = vmatprep.subr.bf16.mxu0 0
    %792 = vmatpush1.bf16.msra.mxu0 0
    %793 = vmatprep.mubr.bf16.mxu0 0
    %794 = vmatmul.mubr.bf16.gmra.mrb[0].mxu0 %v759
    %v795 = vpop.f32.mrb[0].mxu0
    %v796 = vadd.f32 0.0, %v795
    %v797 = vpop.f32.mrb[0].mxu0
    %v798 = vpop.f32.mrb[0].mxu0
    %v799 = vpop.f32.mrb[0].mxu0
    %800 = vdwg.mxu0
    %v801 = vadd.f32 %v738, %v796
    %v802 = vxor.u32 %v801, 2147483648
    %v803 = vmul.f32 %v802, 1.442695
    %v804 = vpow.pop %v803
    %v805 = vadd.f32 %v804, 1.0
    %v806 = vrcp.pop %v805
    %v807 = vmul.f32 1.0, %v806
    %v808 = vtanh.pop %v801
    %810 = vrot.lane.b32.xlu0 %v744, 32
    %v811 = vpop.permute.xlu0 %810
    %v813 = vmul.f32 %v807, %v811
    %815 = vrot.lane.b32.xlu0 %v808, 64
    %v816 = vpop.permute.xlu0 %815
    %v818 = vmul.f32 %v807, %v816
    %820 = vrot.lane.b32.xlu0 %v818, 32
    %v821 = vpop.permute.xlu0 %820
    %v823 = vadd.f32 %v813, %v821
    %v824 = vstv %s736
    %v825 = vmul.f32 %v823, %v824
    %v826 = vtanh.pop %v825
    %828 = vrot.lane.b32.xlu0 %v826, 64
    %v829 = vpop.permute.xlu0 %828
    %v831 = vmul.f32 %v807, %v829
    %833 = vrot.lane.b32.xlu0 %v831, 32
    %v834 = vpop.permute.xlu0 %833
    %836 = vst.msk [vmem:[#allocation4] sm:$0xff] %vm167, %v834
    %838 = vrot.lane.b32.xlu0 %v825, 96
    %v839 = vpop.permute.xlu0 %838
    %841 = vst.msk [vmem:[#allocation5] sm:$0xff] %vm167, %v839
    %v842 = vpack.c.bf16 %v831, %v831
    %v844 = vunpack.c.l.b16 %v842
    %v845 = vpack.c.b16 %v844, %v844
    %846 = vrot.lane.b32.xlu0 %v845, 32
    %v847 = vpop.permute.xlu0 %846
    %s849 = scalar_lea.vmem %s130, 4
    %850 = vst.msk [vmem:[%s849] sm:$0xf] %vm259, %v847
    %s851 = sadd.s32 %s143, 3
    %p852 = scmp.lt.s32.totalorder %s851, 4
    %s853 = scalar_select %p852, 1, 0
    %s854 = scvt.s32.f32 %s853
    %s855 = scalar_lea.vmem [#allocation6], 24
    %v856 = vld [vmem:[%s855] sm:$0xff]
    %v857 = vld [vmem:[%s2] sm:$0xf]
    %v858 = vld [vmem:[%s2 + $0x4] sm:$0xf]
    %v859 = vld [vmem:[%s2 + $0x8] sm:$0xf]
    %v860 = vld [vmem:[%s2 + $0xc] sm:$0xf]
    %v861 = vld [vmem:[#allocation2] sm:$0xff]
    %v862 = vld [vmem:[#allocation3] sm:$0xff]
    %v863 = vpack.c.bf16 %v861, %v861
    %v868 = vunpack.c.l.b16 %v857
    %v869 = vunpack.c.l.b16 %v858
    %v870 = vunpack.c.l.b16 %v859
    %v871 = vunpack.c.l.b16 %v860
    %v872 = vpack.c.b16 %v869, %v868
    %v873 = vpack.c.b16 %v871, %v870
    %v877 = vsel %vm167, %v863, 0
    %879 = vmatprep.subr.bf16.mxu0 0
    %880 = vmatpush1.bf16.msra.mxu0 %v872
    %881 = vmatprep.subr.bf16.mxu0 0
    %882 = vmatpush1.bf16.msra.mxu0 %v873
    %883 = vmatprep.subr.bf16.mxu0 0
    %884 = vmatpush1.bf16.msra.mxu0 0
    %885 = vmatprep.subr.bf16.mxu0 0
    %886 = vmatpush1.bf16.msra.mxu0 0
    %887 = vmatprep.subr.bf16.mxu0 0
    %888 = vmatpush1.bf16.msra.mxu0 0
    %889 = vmatprep.subr.bf16.mxu0 0
    %890 = vmatpush1.bf16.msra.mxu0 0
    %891 = vmatprep.subr.bf16.mxu0 0
    %892 = vmatpush1.bf16.msra.mxu0 0
    %893 = vmatprep.subr.bf16.mxu0 0
    %894 = vmatpush1.bf16.msra.mxu0 0
    %895 = vmatprep.subr.bf16.mxu0 0
    %896 = vmatpush1.bf16.msra.mxu0 0
    %897 = vmatprep.subr.bf16.mxu0 0
    %898 = vmatpush1.bf16.msra.mxu0 0
    %899 = vmatprep.subr.bf16.mxu0 0
    %900 = vmatpush1.bf16.msra.mxu0 0
    %901 = vmatprep.subr.bf16.mxu0 0
    %902 = vmatpush1.bf16.msra.mxu0 0
    %903 = vmatprep.subr.bf16.mxu0 0
    %904 = vmatpush1.bf16.msra.mxu0 0
    %905 = vmatprep.subr.bf16.mxu0 0
    %906 = vmatpush1.bf16.msra.mxu0 0
    %907 = vmatprep.subr.bf16.mxu0 0
    %908 = vmatpush1.bf16.msra.mxu0 0
    %909 = vmatprep.subr.bf16.mxu0 0
    %910 = vmatpush1.bf16.msra.mxu0 0
    %911 = vmatprep.mubr.bf16.mxu0 0
    %912 = vmatmul.mubr.bf16.gmra.mrb[0].mxu0 %v877
    %v913 = vpop.f32.mrb[0].mxu0
    %v914 = vadd.f32 0.0, %v913
    %v915 = vpop.f32.mrb[0].mxu0
    %v916 = vpop.f32.mrb[0].mxu0
    %v917 = vpop.f32.mrb[0].mxu0
    %918 = vdwg.mxu0
    %v919 = vadd.f32 %v856, %v914
    %v920 = vxor.u32 %v919, 2147483648
    %v921 = vmul.f32 %v920, 1.442695
    %v922 = vpow.pop %v921
    %v923 = vadd.f32 %v922, 1.0
    %v924 = vrcp.pop %v923
    %v925 = vmul.f32 1.0, %v924
    %v926 = vtanh.pop %v919
    %928 = vrot.lane.b32.xlu0 %v862, 32
    %v929 = vpop.permute.xlu0 %928
    %v931 = vmul.f32 %v925, %v929
    %933 = vrot.lane.b32.xlu0 %v926, 64
    %v934 = vpop.permute.xlu0 %933
    %v936 = vmul.f32 %v925, %v934
    %938 = vrot.lane.b32.xlu0 %v936, 32
    %v939 = vpop.permute.xlu0 %938
    %v941 = vadd.f32 %v931, %v939
    %v942 = vstv %s854
    %v943 = vmul.f32 %v941, %v942
    %v944 = vtanh.pop %v943
    %946 = vrot.lane.b32.xlu0 %v944, 64
    %v947 = vpop.permute.xlu0 %946
    %v949 = vmul.f32 %v925, %v947
    %951 = vrot.lane.b32.xlu0 %v949, 32
    %v952 = vpop.permute.xlu0 %951
    %954 = vst.msk [vmem:[#allocation2] sm:$0xff] %vm167, %v952
    %956 = vrot.lane.b32.xlu0 %v943, 96
    %v957 = vpop.permute.xlu0 %956
    %959 = vst.msk [vmem:[#allocation3] sm:$0xff] %vm167, %v957
    %v960 = vpack.c.bf16 %v949, %v949
    %v962 = vunpack.c.l.b16 %v960
    %v963 = vpack.c.b16 %v962, %v962
    %964 = vrot.lane.b32.xlu0 %v963, 32
    %v965 = vpop.permute.xlu0 %964
    %s967 = scalar_lea.vmem %s4, 12
    %968 = vst.msk [vmem:[%s967] sm:$0xf] %vm259, %v965
    %s969 = ssub.s32 0, %s143
    %p970 = scmp.lt.s32.totalorder %s969, 4
    %s971 = scalar_select %p970, 1, 0
    %s972 = scvt.s32.f32 %s971
    %v973 = vld [vmem:[#allocation7] sm:$0xff]
    %v974 = vld [vmem:[%s3] sm:$0xf]
    %v975 = vld [vmem:[%s3 + $0x4] sm:$0xf]
    %v976 = vld [vmem:[%s3 + $0x8] sm:$0xf]
    %v977 = vld [vmem:[%s3 + $0xc] sm:$0xf]
    %v978 = vld [vmem:[#allocation4] sm:$0xff]
    %v979 = vld [vmem:[#allocation5] sm:$0xff]
    %v980 = vpack.c.bf16 %v978, %v978
    %v985 = vunpack.c.l.b16 %v974
    %v986 = vunpack.c.l.b16 %v975
    %v987 = vunpack.c.l.b16 %v976
    %v988 = vunpack.c.l.b16 %v977
    %v989 = vpack.c.b16 %v986, %v985
    %v990 = vpack.c.b16 %v988, %v987
    %v994 = vsel %vm167, %v980, 0
    %996 = vmatprep.subr.bf16.mxu0 0
    %997 = vmatpush1.bf16.msra.mxu0 %v989
    %998 = vmatprep.subr.bf16.mxu0 0
    %999 = vmatpush1.bf16.msra.mxu0 %v990
    %1000 = vmatprep.subr.bf16.mxu0 0
    %1001 = vmatpush1.bf16.msra.mxu0 0
    %1002 = vmatprep.subr.bf16.mxu0 0
    %1003 = vmatpush1.bf16.msra.mxu0 0
    %1004 = vmatprep.subr.bf16.mxu0 0
    %1005 = vmatpush1.bf16.msra.mxu0 0
    %1006 = vmatprep.subr.bf16.mxu0 0
    %1007 = vmatpush1.bf16.msra.mxu0 0
    %1008 = vmatprep.subr.bf16.mxu0 0
    %1009 = vmatpush1.bf16.msra.mxu0 0
    %1010 = vmatprep.subr.bf16.mxu0 0
    %1011 = vmatpush1.bf16.msra.mxu0 0
    %1012 = vmatprep.subr.bf16.mxu0 0
    %1013 = vmatpush1.bf16.msra.mxu0 0
    %1014 = vmatprep.subr.bf16.mxu0 0
    %1015 = vmatpush1.bf16.msra.mxu0 0
    %1016 = vmatprep.subr.bf16.mxu0 0
    %1017 = vmatpush1.bf16.msra.mxu0 0
    %1018 = vmatprep.subr.bf16.mxu0 0
    %1019 = vmatpush1.bf16.msra.mxu0 0
    %1020 = vmatprep.subr.bf16.mxu0 0
    %1021 = vmatpush1.bf16.msra.mxu0 0
    %1022 = vmatprep.subr.bf16.mxu0 0
    %1023 = vmatpush1.bf16.msra.mxu0 0
    %1024 = vmatprep.subr.bf16.mxu0 0
    %1025 = vmatpush1.bf16.msra.mxu0 0
    %1026 = vmatprep.subr.bf16.mxu0 0
    %1027 = vmatpush1.bf16.msra.mxu0 0
    %1028 = vmatprep.mubr.bf16.mxu0 0
    %1029 = vmatmul.mubr.bf16.gmra.mrb[0].mxu0 %v994
    %v1030 = vpop.f32.mrb[0].mxu0
    %v1031 = vadd.f32 0.0, %v1030
    %v1032 = vpop.f32.mrb[0].mxu0
    %v1033 = vpop.f32.mrb[0].mxu0
    %v1034 = vpop.f32.mrb[0].mxu0
    %1035 = vdwg.mxu0
    %v1036 = vadd.f32 %v973, %v1031
    %v1037 = vxor.u32 %v1036, 2147483648
    %v1038 = vmul.f32 %v1037, 1.442695
    %v1039 = vpow.pop %v1038
    %v1040 = vadd.f32 %v1039, 1.0
    %v1041 = vrcp.pop %v1040
    %v1042 = vmul.f32 1.0, %v1041
    %v1043 = vtanh.pop %v1036
    %1045 = vrot.lane.b32.xlu0 %v979, 32
    %v1046 = vpop.permute.xlu0 %1045
    %v1048 = vmul.f32 %v1042, %v1046
    %1050 = vrot.lane.b32.xlu0 %v1043, 64
    %v1051 = vpop.permute.xlu0 %1050
    %v1053 = vmul.f32 %v1042, %v1051
    %1055 = vrot.lane.b32.xlu0 %v1053, 32
    %v1056 = vpop.permute.xlu0 %1055
    %v1058 = vadd.f32 %v1048, %v1056
    %v1059 = vstv %s972
    %v1060 = vmul.f32 %v1058, %v1059
    %v1061 = vtanh.pop %v1060
    %1063 = vrot.lane.b32.xlu0 %v1061, 64
    %v1064 = vpop.permute.xlu0 %1063
    %v1066 = vmul.f32 %v1042, %v1064
    %1068 = vrot.lane.b32.xlu0 %v1066, 32
    %v1069 = vpop.permute.xlu0 %1068
    %1071 = vst.msk [vmem:[#allocation4] sm:$0xff] %vm167, %v1069
    %1073 = vrot.lane.b32.xlu0 %v1060, 96
    %v1074 = vpop.permute.xlu0 %1073
    %1076 = vst.msk [vmem:[#allocation5] sm:$0xff] %vm167, %v1074
    %v1077 = vpack.c.bf16 %v1066, %v1066
    %v1079 = vunpack.c.l.b16 %v1077
    %v1080 = vpack.c.b16 %v1079, %v1079
    %1081 = vrot.lane.b32.xlu0 %v1080, 32
    %v1082 = vpop.permute.xlu0 %1081
    %1084 = vst.msk [vmem:[%s130] sm:$0xf] %vm259, %v1082
    %s1085 = ssub.s32 0, 0
    %s1086 = smul.u32 4, %s1085
    %p1087 = scmp.lt.s32.totalorder %s1086, 3
    %s1088 = scalar_select %p1087, %s1086, 3
    %s1089 = smul.addr %s1088, 4
    %s1090 = scalar_lea.vmem %s5, %s1089
    // Predicated region
    $region98: #{_lambda_.12} parent=1 // pred_check
      _
    $region99: #{_lambda_.12} parent=1 // pred_check_branch
      %1092 = sbr.rel (0) target = $region101
    $region100: #{_lambda_.12} parent=1 // pred_region
      _
    $region101: #{_lambda_.12} parent=1 // pred_fallthru
      _
    // Predicated region
    $region102: #{_lambda_.12} parent=1 // pred_check
      _
    $region103: #{_lambda_.12} parent=1 // pred_check_branch
      %1094 = sbr.rel (0) target = $region105
    $region104: #{_lambda_.12} parent=1 // pred_region
      %s1095 = ssub.s32 0, 0
      %s1096 = smul.u32 4, %s1095
    $region105: #{_lambda_.12} parent=1 // pred_fallthru
      _
    // Predicated region
    $region106: #{_lambda_.12} parent=1 // pred_check
      _
    $region107: #{_lambda_.12} parent=1 // pred_check_branch
      %1098 = sbr.rel (0) target = $region109
    $region108: #{_lambda_.12} parent=1 // pred_region
      _
    $region109: #{_lambda_.12} parent=1 // pred_fallthru
      _
    // Predicated region
    $region110: #{_lambda_.12} parent=1 // pred_check
      _
    $region111: #{_lambda_.12} parent=1 // pred_check_branch
      %1100 = sbr.rel (0) target = $region113
    $region112: #{_lambda_.12} parent=1 // pred_region
      %s1101 = ssub.s32 0, 0
      %s1102 = smul.u32 4, %s1101
      %p1103 = scmp.lt.s32.totalorder %s1102, 3
      %s1104 = scalar_select %p1103, %s1102, 3
      %s1105 = smul.addr %s1104, 4
      %s1106 = scalar_lea.vmem %s5, %s1105
    $region113: #{_lambda_.12} parent=1 // pred_fallthru
      _

</llo_original>
